<compile_context>
chip_gen: v6e
topology: v6e:2x2x1
jax: 0.10.0
libtpu: 0.0.40
codegen_flags: <defaults>
</compile_context>

<pallas_src>
import functools
import math

import numpy as np
import jax
import jax.numpy as jnp
from jax.experimental import pallas as pl
from jax.experimental.pallas import tpu as pltpu  # noqa: F401  (not needed: no grid / default VMEM specs)


# ----------------------------- config -----------------------------
class Config:
    vocab_size = 64
    block_size = 8
    n_embd = 32
    n_head = 4
    n_layer = 2
    isconditional = False


# ----------------------------- in-kernel helpers -----------------------------
def _layer_norm(x, w, b, eps=1e-5):
    mu = jnp.mean(x, axis=-1, keepdims=True)
    var = jnp.mean((x - mu) ** 2, axis=-1, keepdims=True)
    return (x - mu) * jax.lax.rsqrt(var + eps) * w + b


def _gelu(x):
    # TODO(synk): PyTorch nn.GELU() default is exact erf-based GELU; tanh approximation
    #             used here to guarantee Mosaic lowering (max abs diff ~1e-3).
    c = math.sqrt(2.0 / math.pi)
    return 0.5 * x * (1.0 + jnp.tanh(c * (x + 0.044715 * x * x * x)))


# ----------------------------- fully fused GPT kernel -----------------------------
def _gpt_kernel(n_layer, n_head,
                x_ref, bias_ref,
                ln1w_ref, ln1b_ref, wqkv_ref, bqkv_ref, wp_ref, bp_ref,
                ln2w_ref, ln2b_ref, w1_ref, b1_ref, w2_ref, b2_ref,
                lnfw_ref, lnfb_ref, wh_ref,
                logits_ref, attn_ref):
    x = x_ref[...]                       # (B*L, C)  residual stream, stays resident
    bias = bias_ref[...]                 # (B*L, B*L) block-diagonal causal additive bias
    BL, C = x.shape
    Dh = C // n_head
    scale = 1.0 / math.sqrt(Dh)

    for li in range(n_layer):            # static unrolled layer loop (weights stacked on axis 0)
        # ---- ln1 + fused QKV projection (one MXU op) ----
        h1 = _layer_norm(x, ln1w_ref[li], ln1b_ref[li])
        qkv = jnp.dot(h1, wqkv_ref[li], preferred_element_type=jnp.float32) + bqkv_ref[li]
        q = qkv[:, 0:C]
        k = qkv[:, C:2 * C]
        v = qkv[:, 2 * C:3 * C]

        # ---- attention: batch folded into rows, per-head static loop ----
        p_heads = []
        y_heads = []
        for h in range(n_head):
            sl = slice(h * Dh, (h + 1) * Dh)
            s = jnp.dot(q[:, sl], k[:, sl].T, preferred_element_type=jnp.float32) * scale + bias
            s = s - jnp.max(s, axis=-1, keepdims=True)
            e = jnp.exp(s)
            p = e * pl.reciprocal(jnp.sum(e, axis=-1, keepdims=True), approx=True)
            p_heads.append(p)
            y_heads.append(jnp.dot(p, v[:, sl], preferred_element_type=jnp.float32))

        # single lane-dense attention-map store per layer: (B*L, H*B*L)
        attn_ref[li] = jnp.concatenate(p_heads, axis=-1)

        # ---- output projection + residual ----
        y = jnp.concatenate(y_heads, axis=-1)                       # (B*L, C)
        x = x + jnp.dot(y, wp_ref[li], preferred_element_type=jnp.float32) + bp_ref[li]

        # ---- ln2 + MLP + residual ----
        h2 = _layer_norm(x, ln2w_ref[li], ln2b_ref[li])
        m = jnp.dot(h2, w1_ref[li], preferred_element_type=jnp.float32) + b1_ref[li]
        m = _gelu(m)
        x = x + jnp.dot(m, w2_ref[li], preferred_element_type=jnp.float32) + b2_ref[li]

    # ---- final layer norm + padded head (lane-dense 128-wide store) ----
    hf = _layer_norm(x, lnfw_ref[0], lnfb_ref[0])
    logits_ref[...] = jnp.dot(hf, wh_ref[...], preferred_element_type=jnp.float32)


def run_gpt_fused(x_flat, attn_bias, params, cfg):
    """One pallas_call for the whole transformer stack + head. No grid."""
    BL, C = x_flat.shape
    H = cfg.n_head
    nl = cfg.n_layer
    Vp = params["w_head_pad"].shape[1]

    args = [x_flat, attn_bias,
            params["ln1_w"], params["ln1_b"],
            params["wqkv"], params["bqkv"],
            params["wp"], params["bp"],
            params["ln2_w"], params["ln2_b"],
            params["w1"], params["b1"],
            params["w2"], params["b2"],
            params["lnf_w"], params["lnf_b"],
            params["w_head_pad"]]

    out_shape = (jax.ShapeDtypeStruct((BL, Vp), jnp.float32),           # padded logits
                 jax.ShapeDtypeStruct((nl, BL, H * BL), jnp.float32))   # attn maps, lane-dense

    return pl.pallas_call(
        functools.partial(_gpt_kernel, nl, H),
        out_shape=out_shape,
    )(*args)


# ----------------------------- parameter init (deterministic) -----------------------------
def init_params(cfg, key):
    C, V, H4, nl = cfg.n_embd, cfg.vocab_size, 4 * cfg.n_embd, cfg.n_layer
    std = 0.02
    keys = iter(jax.random.split(key, 3 + 6 * nl))

    def normal(shape):
        return std * jax.random.normal(next(keys), shape, dtype=jnp.float32)

    # globals
    tok_emb = normal((V, C))
    type_emb = normal((2, C))
    w_head = normal((C, V))                                   # head has no bias
    Vp = max(128, ((V + 127) // 128) * 128)                   # lane-dense padded head width
    w_head_pad = jnp.zeros((C, Vp), jnp.float32).at[:, :V].set(w_head)

    # per-layer (stacked along leading n_layer axis)
    wqkv, wp, w1, w2 = [], [], [], []
    for _ in range(nl):
        wq, wk, wv = normal((C, C)), normal((C, C)), normal((C, C))
        wqkv.append(jnp.concatenate([wq, wk, wv], axis=1))    # (C, 3C), slice order q|k|v
        wp.append(normal((C, C)))
        w1.append(normal((C, H4)))
        w2.append(normal((H4, C)))

    params = {
        "tok_emb": tok_emb,
        "type_emb": type_emb,
        "pos_emb": jnp.zeros((1, cfg.block_size, C), jnp.float32),    # nn.Parameter(zeros)
        "lnf_w": jnp.ones((1, C), jnp.float32),
        "lnf_b": jnp.zeros((1, C), jnp.float32),
        "w_head": w_head,
        "w_head_pad": w_head_pad,
        "ln1_w": jnp.ones((nl, C), jnp.float32), "ln1_b": jnp.zeros((nl, C), jnp.float32),
        "wqkv": jnp.stack(wqkv), "bqkv": jnp.zeros((nl, 3 * C), jnp.float32),
        "wp": jnp.stack(wp), "bp": jnp.zeros((nl, C), jnp.float32),
        "ln2_w": jnp.ones((nl, C), jnp.float32), "ln2_b": jnp.zeros((nl, C), jnp.float32),
        "w1": jnp.stack(w1), "b1": jnp.zeros((nl, H4), jnp.float32),
        "w2": jnp.stack(w2), "b2": jnp.zeros((nl, C), jnp.float32),
    }
    return params


# ----------------------------- full GPT forward -----------------------------
def _block_diag_causal_bias(b, t):
    """Static additive mask: 0 where key is visible (same batch, key<=query), -1e30 elsewhere."""
    bias = np.full((b * t, b * t), -1e30, dtype=np.float32)
    tril = np.tril(np.ones((t, t), dtype=np.float32))
    for bb in range(b):
        sl = slice(bb * t, (bb + 1) * t)
        bias[sl, sl] = np.where(tril > 0, 0.0, -1e30)
    return jnp.asarray(bias)


def gpt_forward(params, cfg, idx, targets=None, condition_split_id=None):
    b, t = idx.shape
    assert t <= cfg.block_size
    C, V, H, nl = cfg.n_embd, cfg.vocab_size, cfg.n_head, cfg.n_layer

    # embedding glue (gather + add) in plain JAX; embd dropout = identity (eval)
    tok = params["tok_emb"][idx]                          # (b, t, C)
    pos = params["pos_emb"][:, :t, :]                     # (1, t, C)
    typ = params["type_emb"][1][None, None, :]            # torch.ones -> type id 1
    x = (tok + pos + typ).reshape(b * t, C).astype(jnp.float32)

    attn_bias = _block_diag_causal_bias(b, t)

    logits_pad, attn_flat = run_gpt_fused(x, attn_bias, params, cfg)

    logits = logits_pad[:, :V].reshape(b, t, V)

    # unpack lane-dense attn slabs into PyTorch layout (B, H, L, L) per layer (cheap XLA glue)
    attn_maps = []
    for li in range(nl):
        a = attn_flat[li].reshape(b * t, H, b * t)        # [query, head, key]
        per_batch = []
        for bb in range(b):
            blk = a[bb * t:(bb + 1) * t, :, bb * t:(bb + 1) * t]   # (L, H, L)
            per_batch.append(jnp.transpose(blk, (1, 0, 2)))        # (H, L, L)
        attn_maps.append(jnp.stack(per_batch, axis=0))             # (B, H, L, L)

    loss = None
    if targets is not None:
        mask = targets != 0
        if cfg.isconditional:
            rng = jnp.arange(t)[None, :]
            mask = jnp.where(rng < condition_split_id[:, None], False, mask)
        logp = jax.nn.log_softmax(logits.reshape(-1, V), axis=-1)
        nll = -jnp.take_along_axis(logp, targets.reshape(-1, 1), axis=-1)[:, 0]
        # guard denominator (PyTorch would produce NaN if every target is padding)
        loss = (nll * mask.reshape(-1)).sum() / jnp.maximum(mask.sum(), 1)
    return logits, loss, attn_maps


# ----------------------------- main -----------------------------
if __name__ == "__main__":
    cfg = Config()
    key = jax.random.PRNGKey(0)
    pkey, dkey = jax.random.split(key)

    params = init_params(cfg, pkey)

    B, T = 2, cfg.block_size
    idx = jax.random.randint(dkey, (B, T), 1, cfg.vocab_size, dtype=jnp.int32)

    logits, loss, attn_maps = gpt_forward(params, cfg, idx)
    jax.block_until_ready(logits)
    for a in attn_maps:
        jax.block_until_ready(a)

    assert logits.shape == (B, T, cfg.vocab_size)
    assert all(a.shape == (B, cfg.n_head, T, T) for a in attn_maps)
    assert bool(jnp.all(jnp.isfinite(logits)))
    print("KERNEL_OK")
</pallas_src>

<mosaic_0001>
module attributes {stable_mosaic.version = 11 : i64} {
  func.func @_gpt_kernel(%arg0: memref<16x32xf32, #tpu.memory_space<vmem>>, %arg1: memref<16x16xf32, #tpu.memory_space<vmem>>, %arg2: memref<2x32xf32, #tpu.memory_space<vmem>>, %arg3: memref<2x32xf32, #tpu.memory_space<vmem>>, %arg4: memref<2x32x96xf32, #tpu.memory_space<vmem>>, %arg5: memref<2x96xf32, #tpu.memory_space<vmem>>, %arg6: memref<2x32x32xf32, #tpu.memory_space<vmem>>, %arg7: memref<2x32xf32, #tpu.memory_space<vmem>>, %arg8: memref<2x32xf32, #tpu.memory_space<vmem>>, %arg9: memref<2x32xf32, #tpu.memory_space<vmem>>, %arg10: memref<2x32x128xf32, #tpu.memory_space<vmem>>, %arg11: memref<2x128xf32, #tpu.memory_space<vmem>>, %arg12: memref<2x128x32xf32, #tpu.memory_space<vmem>>, %arg13: memref<2x32xf32, #tpu.memory_space<vmem>>, %arg14: memref<1x32xf32, #tpu.memory_space<vmem>>, %arg15: memref<1x32xf32, #tpu.memory_space<vmem>>, %arg16: memref<32x128xf32, #tpu.memory_space<vmem>>, %arg17: memref<16x128xf32, #tpu.memory_space<vmem>>, %arg18: memref<2x16x64xf32, #tpu.memory_space<vmem>>) attributes {dimension_semantics = [], scalar_prefetch = 0 : i64, scratch_operands = 0 : i64, tpu.core_type = #tpu.core_type<tc>} {
    %c0 = arith.constant 0 : index
    %c0_0 = arith.constant 0 : index
    %0 = vector.load %arg0[%c0, %c0_0] : memref<16x32xf32, #tpu.memory_space<vmem>>, vector<16x32xf32>
    %c0_1 = arith.constant 0 : index
    %c0_2 = arith.constant 0 : index
    %1 = vector.load %arg1[%c0_1, %c0_2] : memref<16x16xf32, #tpu.memory_space<vmem>>, vector<16x16xf32>
    %c0_3 = arith.constant 0 : index
    %c0_4 = arith.constant 0 : index
    %2 = vector.load %arg2[%c0_3, %c0_4] : memref<2x32xf32, #tpu.memory_space<vmem>>, vector<1x32xf32>
    %3 = vector.shape_cast %2 : vector<1x32xf32> to vector<32xf32>
    %c0_5 = arith.constant 0 : index
    %c0_6 = arith.constant 0 : index
    %4 = vector.load %arg3[%c0_5, %c0_6] : memref<2x32xf32, #tpu.memory_space<vmem>>, vector<1x32xf32>
    %5 = vector.shape_cast %4 : vector<1x32xf32> to vector<32xf32>
    %cst = arith.constant dense<0.000000e+00> : vector<16xf32>
    %6 = vector.multi_reduction <add>, %0, %cst [1] : vector<16x32xf32> to vector<16xf32>
    %7 = vector.shape_cast %6 : vector<16xf32> to vector<16x1xf32>
    %cst_7 = arith.constant 3.200000e+01 : f32
    %8 = vector.broadcast %cst_7 : f32 to vector<16x1xf32>
    %9 = arith.divf %7, %8 : vector<16x1xf32>
    %10 = vector.broadcast %9 : vector<16x1xf32> to vector<16x32xf32>
    %11 = arith.subf %0, %10 : vector<16x32xf32>
    %12 = arith.mulf %11, %11 : vector<16x32xf32>
    %cst_8 = arith.constant dense<0.000000e+00> : vector<16xf32>
    %13 = vector.multi_reduction <add>, %12, %cst_8 [1] : vector<16x32xf32> to vector<16xf32>
    %14 = vector.shape_cast %13 : vector<16xf32> to vector<16x1xf32>
    %cst_9 = arith.constant 3.200000e+01 : f32
    %15 = vector.broadcast %cst_9 : f32 to vector<16x1xf32>
    %16 = arith.divf %14, %15 : vector<16x1xf32>
    %17 = vector.broadcast %9 : vector<16x1xf32> to vector<16x32xf32>
    %18 = arith.subf %0, %17 : vector<16x32xf32>
    %cst_10 = arith.constant 9.99999974E-6 : f32
    %19 = vector.broadcast %cst_10 : f32 to vector<16x1xf32>
    %20 = arith.addf %16, %19 : vector<16x1xf32>
    %21 = math.rsqrt %20 : vector<16x1xf32>
    %22 = vector.broadcast %21 : vector<16x1xf32> to vector<16x32xf32>
    %23 = arith.mulf %18, %22 : vector<16x32xf32>
    %24 = vector.shape_cast %3 : vector<32xf32> to vector<1x32xf32>
    %25 = vector.broadcast %24 : vector<1x32xf32> to vector<16x32xf32>
    %26 = arith.mulf %23, %25 : vector<16x32xf32>
    %27 = vector.shape_cast %5 : vector<32xf32> to vector<1x32xf32>
    %28 = vector.broadcast %27 : vector<1x32xf32> to vector<16x32xf32>
    %29 = arith.addf %26, %28 : vector<16x32xf32>
    %c0_11 = arith.constant 0 : index
    %c0_12 = arith.constant 0 : index
    %c0_13 = arith.constant 0 : index
    %30 = vector.load %arg4[%c0_11, %c0_12, %c0_13] : memref<2x32x96xf32, #tpu.memory_space<vmem>>, vector<1x32x96xf32>
    %31 = vector.shape_cast %30 : vector<1x32x96xf32> to vector<32x96xf32>
    %cst_14 = arith.constant dense<0.000000e+00> : vector<16x96xf32>
    %32 = tpu.matmul %29, %31, %cst_14 {dimension_numbers = #tpu.dot_dimension_numbers<[1], [0], [0], [1], [0, 0, 1, 1], [], []>} : vector<16x32xf32>, vector<32x96xf32>, vector<16x96xf32> -> vector<16x96xf32>
    %c0_15 = arith.constant 0 : index
    %c0_16 = arith.constant 0 : index
    %33 = vector.load %arg5[%c0_15, %c0_16] : memref<2x96xf32, #tpu.memory_space<vmem>>, vector<1x96xf32>
    %34 = vector.shape_cast %33 : vector<1x96xf32> to vector<96xf32>
    %35 = vector.shape_cast %34 : vector<96xf32> to vector<1x96xf32>
    %36 = vector.broadcast %35 : vector<1x96xf32> to vector<16x96xf32>
    %37 = arith.addf %32, %36 : vector<16x96xf32>
    %38 = vector.extract_strided_slice %37 {offsets = [0, 0], sizes = [16, 32], strides = [1, 1]} : vector<16x96xf32> to vector<16x32xf32>
    %39 = vector.extract_strided_slice %37 {offsets = [0, 32], sizes = [16, 32], strides = [1, 1]} : vector<16x96xf32> to vector<16x32xf32>
    %40 = vector.extract_strided_slice %37 {offsets = [0, 64], sizes = [16, 32], strides = [1, 1]} : vector<16x96xf32> to vector<16x32xf32>
    %41 = vector.extract_strided_slice %38 {offsets = [0, 0], sizes = [16, 8], strides = [1, 1]} : vector<16x32xf32> to vector<16x8xf32>
    %42 = vector.extract_strided_slice %39 {offsets = [0, 0], sizes = [16, 8], strides = [1, 1]} : vector<16x32xf32> to vector<16x8xf32>
    %43 = tpu.transpose %42, [1, 0] : vector<16x8xf32> -> vector<8x16xf32>
    %cst_17 = arith.constant dense<0.000000e+00> : vector<16x16xf32>
    %44 = tpu.matmul %41, %43, %cst_17 {dimension_numbers = #tpu.dot_dimension_numbers<[1], [0], [0], [1], [0, 0, 1, 1], [], []>} : vector<16x8xf32>, vector<8x16xf32>, vector<16x16xf32> -> vector<16x16xf32>
    %cst_18 = arith.constant 0.353553385 : f32
    %45 = vector.broadcast %cst_18 : f32 to vector<16x16xf32>
    %46 = arith.mulf %44, %45 : vector<16x16xf32>
    %47 = arith.addf %46, %1 : vector<16x16xf32>
    %cst_19 = arith.constant dense<0xFF800000> : vector<16xf32>
    %48 = vector.multi_reduction <maximumf>, %47, %cst_19 [1] : vector<16x16xf32> to vector<16xf32>
    %49 = vector.shape_cast %48 : vector<16xf32> to vector<16x1xf32>
    %50 = vector.broadcast %49 : vector<16x1xf32> to vector<16x16xf32>
    %51 = arith.subf %47, %50 : vector<16x16xf32>
    %52 = math.exp %51 : vector<16x16xf32>
    %cst_20 = arith.constant dense<0.000000e+00> : vector<16xf32>
    %53 = vector.multi_reduction <add>, %52, %cst_20 [1] : vector<16x16xf32> to vector<16xf32>
    %54 = vector.shape_cast %53 : vector<16xf32> to vector<16x1xf32>
    %55 = tpu.reciprocal %54 {approx = true} : vector<16x1xf32> -> vector<16x1xf32>
    %56 = vector.broadcast %55 : vector<16x1xf32> to vector<16x16xf32>
    %57 = arith.mulf %52, %56 : vector<16x16xf32>
    %58 = vector.extract_strided_slice %40 {offsets = [0, 0], sizes = [16, 8], strides = [1, 1]} : vector<16x32xf32> to vector<16x8xf32>
    %cst_21 = arith.constant dense<0.000000e+00> : vector<16x8xf32>
    %59 = tpu.matmul %57, %58, %cst_21 {dimension_numbers = #tpu.dot_dimension_numbers<[1], [0], [0], [1], [0, 0, 1, 1], [], []>} : vector<16x16xf32>, vector<16x8xf32>, vector<16x8xf32> -> vector<16x8xf32>
    %60 = vector.extract_strided_slice %38 {offsets = [0, 8], sizes = [16, 8], strides = [1, 1]} : vector<16x32xf32> to vector<16x8xf32>
    %61 = vector.extract_strided_slice %39 {offsets = [0, 8], sizes = [16, 8], strides = [1, 1]} : vector<16x32xf32> to vector<16x8xf32>
    %62 = tpu.transpose %61, [1, 0] : vector<16x8xf32> -> vector<8x16xf32>
    %cst_22 = arith.constant dense<0.000000e+00> : vector<16x16xf32>
    %63 = tpu.matmul %60, %62, %cst_22 {dimension_numbers = #tpu.dot_dimension_numbers<[1], [0], [0], [1], [0, 0, 1, 1], [], []>} : vector<16x8xf32>, vector<8x16xf32>, vector<16x16xf32> -> vector<16x16xf32>
    %cst_23 = arith.constant 0.353553385 : f32
    %64 = vector.broadcast %cst_23 : f32 to vector<16x16xf32>
    %65 = arith.mulf %63, %64 : vector<16x16xf32>
    %66 = arith.addf %65, %1 : vector<16x16xf32>
    %cst_24 = arith.constant dense<0xFF800000> : vector<16xf32>
    %67 = vector.multi_reduction <maximumf>, %66, %cst_24 [1] : vector<16x16xf32> to vector<16xf32>
    %68 = vector.shape_cast %67 : vector<16xf32> to vector<16x1xf32>
    %69 = vector.broadcast %68 : vector<16x1xf32> to vector<16x16xf32>
    %70 = arith.subf %66, %69 : vector<16x16xf32>
    %71 = math.exp %70 : vector<16x16xf32>
    %cst_25 = arith.constant dense<0.000000e+00> : vector<16xf32>
    %72 = vector.multi_reduction <add>, %71, %cst_25 [1] : vector<16x16xf32> to vector<16xf32>
    %73 = vector.shape_cast %72 : vector<16xf32> to vector<16x1xf32>
    %74 = tpu.reciprocal %73 {approx = true} : vector<16x1xf32> -> vector<16x1xf32>
    %75 = vector.broadcast %74 : vector<16x1xf32> to vector<16x16xf32>
    %76 = arith.mulf %71, %75 : vector<16x16xf32>
    %77 = vector.extract_strided_slice %40 {offsets = [0, 8], sizes = [16, 8], strides = [1, 1]} : vector<16x32xf32> to vector<16x8xf32>
    %cst_26 = arith.constant dense<0.000000e+00> : vector<16x8xf32>
    %78 = tpu.matmul %76, %77, %cst_26 {dimension_numbers = #tpu.dot_dimension_numbers<[1], [0], [0], [1], [0, 0, 1, 1], [], []>} : vector<16x16xf32>, vector<16x8xf32>, vector<16x8xf32> -> vector<16x8xf32>
    %79 = vector.extract_strided_slice %38 {offsets = [0, 16], sizes = [16, 8], strides = [1, 1]} : vector<16x32xf32> to vector<16x8xf32>
    %80 = vector.extract_strided_slice %39 {offsets = [0, 16], sizes = [16, 8], strides = [1, 1]} : vector<16x32xf32> to vector<16x8xf32>
    %81 = tpu.transpose %80, [1, 0] : vector<16x8xf32> -> vector<8x16xf32>
    %cst_27 = arith.constant dense<0.000000e+00> : vector<16x16xf32>
    %82 = tpu.matmul %79, %81, %cst_27 {dimension_numbers = #tpu.dot_dimension_numbers<[1], [0], [0], [1], [0, 0, 1, 1], [], []>} : vector<16x8xf32>, vector<8x16xf32>, vector<16x16xf32> -> vector<16x16xf32>
    %cst_28 = arith.constant 0.353553385 : f32
    %83 = vector.broadcast %cst_28 : f32 to vector<16x16xf32>
    %84 = arith.mulf %82, %83 : vector<16x16xf32>
    %85 = arith.addf %84, %1 : vector<16x16xf32>
    %cst_29 = arith.constant dense<0xFF800000> : vector<16xf32>
    %86 = vector.multi_reduction <maximumf>, %85, %cst_29 [1] : vector<16x16xf32> to vector<16xf32>
    %87 = vector.shape_cast %86 : vector<16xf32> to vector<16x1xf32>
    %88 = vector.broadcast %87 : vector<16x1xf32> to vector<16x16xf32>
    %89 = arith.subf %85, %88 : vector<16x16xf32>
    %90 = math.exp %89 : vector<16x16xf32>
    %cst_30 = arith.constant dense<0.000000e+00> : vector<16xf32>
    %91 = vector.multi_reduction <add>, %90, %cst_30 [1] : vector<16x16xf32> to vector<16xf32>
    %92 = vector.shape_cast %91 : vector<16xf32> to vector<16x1xf32>
    %93 = tpu.reciprocal %92 {approx = true} : vector<16x1xf32> -> vector<16x1xf32>
    %94 = vector.broadcast %93 : vector<16x1xf32> to vector<16x16xf32>
    %95 = arith.mulf %90, %94 : vector<16x16xf32>
    %96 = vector.extract_strided_slice %40 {offsets = [0, 16], sizes = [16, 8], strides = [1, 1]} : vector<16x32xf32> to vector<16x8xf32>
    %cst_31 = arith.constant dense<0.000000e+00> : vector<16x8xf32>
    %97 = tpu.matmul %95, %96, %cst_31 {dimension_numbers = #tpu.dot_dimension_numbers<[1], [0], [0], [1], [0, 0, 1, 1], [], []>} : vector<16x16xf32>, vector<16x8xf32>, vector<16x8xf32> -> vector<16x8xf32>
    %98 = vector.extract_strided_slice %38 {offsets = [0, 24], sizes = [16, 8], strides = [1, 1]} : vector<16x32xf32> to vector<16x8xf32>
    %99 = vector.extract_strided_slice %39 {offsets = [0, 24], sizes = [16, 8], strides = [1, 1]} : vector<16x32xf32> to vector<16x8xf32>
    %100 = tpu.transpose %99, [1, 0] : vector<16x8xf32> -> vector<8x16xf32>
    %cst_32 = arith.constant dense<0.000000e+00> : vector<16x16xf32>
    %101 = tpu.matmul %98, %100, %cst_32 {dimension_numbers = #tpu.dot_dimension_numbers<[1], [0], [0], [1], [0, 0, 1, 1], [], []>} : vector<16x8xf32>, vector<8x16xf32>, vector<16x16xf32> -> vector<16x16xf32>
    %cst_33 = arith.constant 0.353553385 : f32
    %102 = vector.broadcast %cst_33 : f32 to vector<16x16xf32>
    %103 = arith.mulf %101, %102 : vector<16x16xf32>
    %104 = arith.addf %103, %1 : vector<16x16xf32>
    %cst_34 = arith.constant dense<0xFF800000> : vector<16xf32>
    %105 = vector.multi_reduction <maximumf>, %104, %cst_34 [1] : vector<16x16xf32> to vector<16xf32>
    %106 = vector.shape_cast %105 : vector<16xf32> to vector<16x1xf32>
    %107 = vector.broadcast %106 : vector<16x1xf32> to vector<16x16xf32>
    %108 = arith.subf %104, %107 : vector<16x16xf32>
    %109 = math.exp %108 : vector<16x16xf32>
    %cst_35 = arith.constant dense<0.000000e+00> : vector<16xf32>
    %110 = vector.multi_reduction <add>, %109, %cst_35 [1] : vector<16x16xf32> to vector<16xf32>
    %111 = vector.shape_cast %110 : vector<16xf32> to vector<16x1xf32>
    %112 = tpu.reciprocal %111 {approx = true} : vector<16x1xf32> -> vector<16x1xf32>
    %113 = vector.broadcast %112 : vector<16x1xf32> to vector<16x16xf32>
    %114 = arith.mulf %109, %113 : vector<16x16xf32>
    %115 = vector.extract_strided_slice %40 {offsets = [0, 24], sizes = [16, 8], strides = [1, 1]} : vector<16x32xf32> to vector<16x8xf32>
    %cst_36 = arith.constant dense<0.000000e+00> : vector<16x8xf32>
    %116 = tpu.matmul %114, %115, %cst_36 {dimension_numbers = #tpu.dot_dimension_numbers<[1], [0], [0], [1], [0, 0, 1, 1], [], []>} : vector<16x16xf32>, vector<16x8xf32>, vector<16x8xf32> -> vector<16x8xf32>
    %117 = tpu.concatenate %57, %76, %95, %114 in 1 : vector<16x16xf32>, vector<16x16xf32>, vector<16x16xf32>, vector<16x16xf32> -> vector<16x64xf32>
    %c0_37 = arith.constant 0 : index
    %c0_38 = arith.constant 0 : index
    %c0_39 = arith.constant 0 : index
    %118 = vector.load %arg18[%c0_37, %c0_38, %c0_39] : memref<2x16x64xf32, #tpu.memory_space<vmem>>, vector<1x16x64xf32>
    %119 = vector.shape_cast %118 : vector<1x16x64xf32> to vector<16x64xf32>
    %120 = vector.shape_cast %117 : vector<16x64xf32> to vector<1x16x64xf32>
    tpu.vector_store %arg18[%c0_37, %c0_38, %c0_39], %120 {strides = array<i32>} : memref<2x16x64xf32, #tpu.memory_space<vmem>>, vector<1x16x64xf32>,
    %121 = tpu.concatenate %59, %78, %97, %116 in 1 : vector<16x8xf32>, vector<16x8xf32>, vector<16x8xf32>, vector<16x8xf32> -> vector<16x32xf32>
    %c0_40 = arith.constant 0 : index
    %c0_41 = arith.constant 0 : index
    %c0_42 = arith.constant 0 : index
    %122 = vector.load %arg6[%c0_40, %c0_41, %c0_42] : memref<2x32x32xf32, #tpu.memory_space<vmem>>, vector<1x32x32xf32>
    %123 = vector.shape_cast %122 : vector<1x32x32xf32> to vector<32x32xf32>
    %cst_43 = arith.constant dense<0.000000e+00> : vector<16x32xf32>
    %124 = tpu.matmul %121, %123, %cst_43 {dimension_numbers = #tpu.dot_dimension_numbers<[1], [0], [0], [1], [0, 0, 1, 1], [], []>} : vector<16x32xf32>, vector<32x32xf32>, vector<16x32xf32> -> vector<16x32xf32>
    %125 = arith.addf %0, %124 : vector<16x32xf32>
    %c0_44 = arith.constant 0 : index
    %c0_45 = arith.constant 0 : index
    %126 = vector.load %arg7[%c0_44, %c0_45] : memref<2x32xf32, #tpu.memory_space<vmem>>, vector<1x32xf32>
    %127 = vector.shape_cast %126 : vector<1x32xf32> to vector<32xf32>
    %128 = vector.shape_cast %127 : vector<32xf32> to vector<1x32xf32>
    %129 = vector.broadcast %128 : vector<1x32xf32> to vector<16x32xf32>
    %130 = arith.addf %125, %129 : vector<16x32xf32>
    %c0_46 = arith.constant 0 : index
    %c0_47 = arith.constant 0 : index
    %131 = vector.load %arg8[%c0_46, %c0_47] : memref<2x32xf32, #tpu.memory_space<vmem>>, vector<1x32xf32>
    %132 = vector.shape_cast %131 : vector<1x32xf32> to vector<32xf32>
    %c0_48 = arith.constant 0 : index
    %c0_49 = arith.constant 0 : index
    %133 = vector.load %arg9[%c0_48, %c0_49] : memref<2x32xf32, #tpu.memory_space<vmem>>, vector<1x32xf32>
    %134 = vector.shape_cast %133 : vector<1x32xf32> to vector<32xf32>
    %cst_50 = arith.constant dense<0.000000e+00> : vector<16xf32>
    %135 = vector.multi_reduction <add>, %130, %cst_50 [1] : vector<16x32xf32> to vector<16xf32>
    %136 = vector.shape_cast %135 : vector<16xf32> to vector<16x1xf32>
    %cst_51 = arith.constant 3.200000e+01 : f32
    %137 = vector.broadcast %cst_51 : f32 to vector<16x1xf32>
    %138 = arith.divf %136, %137 : vector<16x1xf32>
    %139 = vector.broadcast %138 : vector<16x1xf32> to vector<16x32xf32>
    %140 = arith.subf %130, %139 : vector<16x32xf32>
    %141 = arith.mulf %140, %140 : vector<16x32xf32>
    %cst_52 = arith.constant dense<0.000000e+00> : vector<16xf32>
    %142 = vector.multi_reduction <add>, %141, %cst_52 [1] : vector<16x32xf32> to vector<16xf32>
    %143 = vector.shape_cast %142 : vector<16xf32> to vector<16x1xf32>
    %cst_53 = arith.constant 3.200000e+01 : f32
    %144 = vector.broadcast %cst_53 : f32 to vector<16x1xf32>
    %145 = arith.divf %143, %144 : vector<16x1xf32>
    %146 = vector.broadcast %138 : vector<16x1xf32> to vector<16x32xf32>
    %147 = arith.subf %130, %146 : vector<16x32xf32>
    %cst_54 = arith.constant 9.99999974E-6 : f32
    %148 = vector.broadcast %cst_54 : f32 to vector<16x1xf32>
    %149 = arith.addf %145, %148 : vector<16x1xf32>
    %150 = math.rsqrt %149 : vector<16x1xf32>
    %151 = vector.broadcast %150 : vector<16x1xf32> to vector<16x32xf32>
    %152 = arith.mulf %147, %151 : vector<16x32xf32>
    %153 = vector.shape_cast %132 : vector<32xf32> to vector<1x32xf32>
    %154 = vector.broadcast %153 : vector<1x32xf32> to vector<16x32xf32>
    %155 = arith.mulf %152, %154 : vector<16x32xf32>
    %156 = vector.shape_cast %134 : vector<32xf32> to vector<1x32xf32>
    %157 = vector.broadcast %156 : vector<1x32xf32> to vector<16x32xf32>
    %158 = arith.addf %155, %157 : vector<16x32xf32>
    %c0_55 = arith.constant 0 : index
    %c0_56 = arith.constant 0 : index
    %c0_57 = arith.constant 0 : index
    %159 = vector.load %arg10[%c0_55, %c0_56, %c0_57] : memref<2x32x128xf32, #tpu.memory_space<vmem>>, vector<1x32x128xf32>
    %160 = vector.shape_cast %159 : vector<1x32x128xf32> to vector<32x128xf32>
    %cst_58 = arith.constant dense<0.000000e+00> : vector<16x128xf32>
    %161 = tpu.matmul %158, %160, %cst_58 {dimension_numbers = #tpu.dot_dimension_numbers<[1], [0], [0], [1], [0, 0, 1, 1], [], []>} : vector<16x32xf32>, vector<32x128xf32>, vector<16x128xf32> -> vector<16x128xf32>
    %c0_59 = arith.constant 0 : index
    %c0_60 = arith.constant 0 : index
    %162 = vector.load %arg11[%c0_59, %c0_60] : memref<2x128xf32, #tpu.memory_space<vmem>>, vector<1x128xf32>
    %163 = vector.shape_cast %162 : vector<1x128xf32> to vector<128xf32>
    %164 = vector.shape_cast %163 : vector<128xf32> to vector<1x128xf32>
    %165 = vector.broadcast %164 : vector<1x128xf32> to vector<16x128xf32>
    %166 = arith.addf %161, %165 : vector<16x128xf32>
    %cst_61 = arith.constant 5.000000e-01 : f32
    %167 = vector.broadcast %cst_61 : f32 to vector<16x128xf32>
    %168 = arith.mulf %167, %166 : vector<16x128xf32>
    %cst_62 = arith.constant 4.471500e-02 : f32
    %169 = vector.broadcast %cst_62 : f32 to vector<16x128xf32>
    %170 = arith.mulf %169, %166 : vector<16x128xf32>
    %171 = arith.mulf %170, %166 : vector<16x128xf32>
    %172 = arith.mulf %171, %166 : vector<16x128xf32>
    %173 = arith.addf %166, %172 : vector<16x128xf32>
    %cst_63 = arith.constant 0.797884583 : f32
    %174 = vector.broadcast %cst_63 : f32 to vector<16x128xf32>
    %175 = arith.mulf %174, %173 : vector<16x128xf32>
    %176 = math.tanh %175 : vector<16x128xf32>
    %cst_64 = arith.constant 1.000000e+00 : f32
    %177 = vector.broadcast %cst_64 : f32 to vector<16x128xf32>
    %178 = arith.addf %177, %176 : vector<16x128xf32>
    %179 = arith.mulf %168, %178 : vector<16x128xf32>
    %c0_65 = arith.constant 0 : index
    %c0_66 = arith.constant 0 : index
    %c0_67 = arith.constant 0 : index
    %180 = vector.load %arg12[%c0_65, %c0_66, %c0_67] : memref<2x128x32xf32, #tpu.memory_space<vmem>>, vector<1x128x32xf32>
    %181 = vector.shape_cast %180 : vector<1x128x32xf32> to vector<128x32xf32>
    %cst_68 = arith.constant dense<0.000000e+00> : vector<16x32xf32>
    %182 = tpu.matmul %179, %181, %cst_68 {dimension_numbers = #tpu.dot_dimension_numbers<[1], [0], [0], [1], [0, 0, 1, 1], [], []>} : vector<16x128xf32>, vector<128x32xf32>, vector<16x32xf32> -> vector<16x32xf32>
    %183 = arith.addf %130, %182 : vector<16x32xf32>
    %c0_69 = arith.constant 0 : index
    %c0_70 = arith.constant 0 : index
    %184 = vector.load %arg13[%c0_69, %c0_70] : memref<2x32xf32, #tpu.memory_space<vmem>>, vector<1x32xf32>
    %185 = vector.shape_cast %184 : vector<1x32xf32> to vector<32xf32>
    %186 = vector.shape_cast %185 : vector<32xf32> to vector<1x32xf32>
    %187 = vector.broadcast %186 : vector<1x32xf32> to vector<16x32xf32>
    %188 = arith.addf %183, %187 : vector<16x32xf32>
    %c1 = arith.constant 1 : index
    %c0_71 = arith.constant 0 : index
    %189 = vector.load %arg2[%c1, %c0_71] : memref<2x32xf32, #tpu.memory_space<vmem>>, vector<1x32xf32>
    %190 = vector.shape_cast %189 : vector<1x32xf32> to vector<32xf32>
    %c1_72 = arith.constant 1 : index
    %c0_73 = arith.constant 0 : index
    %191 = vector.load %arg3[%c1_72, %c0_73] : memref<2x32xf32, #tpu.memory_space<vmem>>, vector<1x32xf32>
    %192 = vector.shape_cast %191 : vector<1x32xf32> to vector<32xf32>
    %cst_74 = arith.constant dense<0.000000e+00> : vector<16xf32>
    %193 = vector.multi_reduction <add>, %188, %cst_74 [1] : vector<16x32xf32> to vector<16xf32>
    %194 = vector.shape_cast %193 : vector<16xf32> to vector<16x1xf32>
    %cst_75 = arith.constant 3.200000e+01 : f32
    %195 = vector.broadcast %cst_75 : f32 to vector<16x1xf32>
    %196 = arith.divf %194, %195 : vector<16x1xf32>
    %197 = vector.broadcast %196 : vector<16x1xf32> to vector<16x32xf32>
    %198 = arith.subf %188, %197 : vector<16x32xf32>
    %199 = arith.mulf %198, %198 : vector<16x32xf32>
    %cst_76 = arith.constant dense<0.000000e+00> : vector<16xf32>
    %200 = vector.multi_reduction <add>, %199, %cst_76 [1] : vector<16x32xf32> to vector<16xf32>
    %201 = vector.shape_cast %200 : vector<16xf32> to vector<16x1xf32>
    %cst_77 = arith.constant 3.200000e+01 : f32
    %202 = vector.broadcast %cst_77 : f32 to vector<16x1xf32>
    %203 = arith.divf %201, %202 : vector<16x1xf32>
    %204 = vector.broadcast %196 : vector<16x1xf32> to vector<16x32xf32>
    %205 = arith.subf %188, %204 : vector<16x32xf32>
    %cst_78 = arith.constant 9.99999974E-6 : f32
    %206 = vector.broadcast %cst_78 : f32 to vector<16x1xf32>
    %207 = arith.addf %203, %206 : vector<16x1xf32>
    %208 = math.rsqrt %207 : vector<16x1xf32>
    %209 = vector.broadcast %208 : vector<16x1xf32> to vector<16x32xf32>
    %210 = arith.mulf %205, %209 : vector<16x32xf32>
    %211 = vector.shape_cast %190 : vector<32xf32> to vector<1x32xf32>
    %212 = vector.broadcast %211 : vector<1x32xf32> to vector<16x32xf32>
    %213 = arith.mulf %210, %212 : vector<16x32xf32>
    %214 = vector.shape_cast %192 : vector<32xf32> to vector<1x32xf32>
    %215 = vector.broadcast %214 : vector<1x32xf32> to vector<16x32xf32>
    %216 = arith.addf %213, %215 : vector<16x32xf32>
    %c1_79 = arith.constant 1 : index
    %c0_80 = arith.constant 0 : index
    %c0_81 = arith.constant 0 : index
    %217 = vector.load %arg4[%c1_79, %c0_80, %c0_81] : memref<2x32x96xf32, #tpu.memory_space<vmem>>, vector<1x32x96xf32>
    %218 = vector.shape_cast %217 : vector<1x32x96xf32> to vector<32x96xf32>
    %cst_82 = arith.constant dense<0.000000e+00> : vector<16x96xf32>
    %219 = tpu.matmul %216, %218, %cst_82 {dimension_numbers = #tpu.dot_dimension_numbers<[1], [0], [0], [1], [0, 0, 1, 1], [], []>} : vector<16x32xf32>, vector<32x96xf32>, vector<16x96xf32> -> vector<16x96xf32>
    %c1_83 = arith.constant 1 : index
    %c0_84 = arith.constant 0 : index
    %220 = vector.load %arg5[%c1_83, %c0_84] : memref<2x96xf32, #tpu.memory_space<vmem>>, vector<1x96xf32>
    %221 = vector.shape_cast %220 : vector<1x96xf32> to vector<96xf32>
    %222 = vector.shape_cast %221 : vector<96xf32> to vector<1x96xf32>
    %223 = vector.broadcast %222 : vector<1x96xf32> to vector<16x96xf32>
    %224 = arith.addf %219, %223 : vector<16x96xf32>
    %225 = vector.extract_strided_slice %224 {offsets = [0, 0], sizes = [16, 32], strides = [1, 1]} : vector<16x96xf32> to vector<16x32xf32>
    %226 = vector.extract_strided_slice %224 {offsets = [0, 32], sizes = [16, 32], strides = [1, 1]} : vector<16x96xf32> to vector<16x32xf32>
    %227 = vector.extract_strided_slice %224 {offsets = [0, 64], sizes = [16, 32], strides = [1, 1]} : vector<16x96xf32> to vector<16x32xf32>
    %228 = vector.extract_strided_slice %225 {offsets = [0, 0], sizes = [16, 8], strides = [1, 1]} : vector<16x32xf32> to vector<16x8xf32>
    %229 = vector.extract_strided_slice %226 {offsets = [0, 0], sizes = [16, 8], strides = [1, 1]} : vector<16x32xf32> to vector<16x8xf32>
    %230 = tpu.transpose %229, [1, 0] : vector<16x8xf32> -> vector<8x16xf32>
    %cst_85 = arith.constant dense<0.000000e+00> : vector<16x16xf32>
    %231 = tpu.matmul %228, %230, %cst_85 {dimension_numbers = #tpu.dot_dimension_numbers<[1], [0], [0], [1], [0, 0, 1, 1], [], []>} : vector<16x8xf32>, vector<8x16xf32>, vector<16x16xf32> -> vector<16x16xf32>
    %cst_86 = arith.constant 0.353553385 : f32
    %232 = vector.broadcast %cst_86 : f32 to vector<16x16xf32>
    %233 = arith.mulf %231, %232 : vector<16x16xf32>
    %234 = arith.addf %233, %1 : vector<16x16xf32>
    %cst_87 = arith.constant dense<0xFF800000> : vector<16xf32>
    %235 = vector.multi_reduction <maximumf>, %234, %cst_87 [1] : vector<16x16xf32> to vector<16xf32>
    %236 = vector.shape_cast %235 : vector<16xf32> to vector<16x1xf32>
    %237 = vector.broadcast %236 : vector<16x1xf32> to vector<16x16xf32>
    %238 = arith.subf %234, %237 : vector<16x16xf32>
    %239 = math.exp %238 : vector<16x16xf32>
    %cst_88 = arith.constant dense<0.000000e+00> : vector<16xf32>
    %240 = vector.multi_reduction <add>, %239, %cst_88 [1] : vector<16x16xf32> to vector<16xf32>
    %241 = vector.shape_cast %240 : vector<16xf32> to vector<16x1xf32>
    %242 = tpu.reciprocal %241 {approx = true} : vector<16x1xf32> -> vector<16x1xf32>
    %243 = vector.broadcast %242 : vector<16x1xf32> to vector<16x16xf32>
    %244 = arith.mulf %239, %243 : vector<16x16xf32>
    %245 = vector.extract_strided_slice %227 {offsets = [0, 0], sizes = [16, 8], strides = [1, 1]} : vector<16x32xf32> to vector<16x8xf32>
    %cst_89 = arith.constant dense<0.000000e+00> : vector<16x8xf32>
    %246 = tpu.matmul %244, %245, %cst_89 {dimension_numbers = #tpu.dot_dimension_numbers<[1], [0], [0], [1], [0, 0, 1, 1], [], []>} : vector<16x16xf32>, vector<16x8xf32>, vector<16x8xf32> -> vector<16x8xf32>
    %247 = vector.extract_strided_slice %225 {offsets = [0, 8], sizes = [16, 8], strides = [1, 1]} : vector<16x32xf32> to vector<16x8xf32>
    %248 = vector.extract_strided_slice %226 {offsets = [0, 8], sizes = [16, 8], strides = [1, 1]} : vector<16x32xf32> to vector<16x8xf32>
    %249 = tpu.transpose %248, [1, 0] : vector<16x8xf32> -> vector<8x16xf32>
    %cst_90 = arith.constant dense<0.000000e+00> : vector<16x16xf32>
    %250 = tpu.matmul %247, %249, %cst_90 {dimension_numbers = #tpu.dot_dimension_numbers<[1], [0], [0], [1], [0, 0, 1, 1], [], []>} : vector<16x8xf32>, vector<8x16xf32>, vector<16x16xf32> -> vector<16x16xf32>
    %cst_91 = arith.constant 0.353553385 : f32
    %251 = vector.broadcast %cst_91 : f32 to vector<16x16xf32>
    %252 = arith.mulf %250, %251 : vector<16x16xf32>
    %253 = arith.addf %252, %1 : vector<16x16xf32>
    %cst_92 = arith.constant dense<0xFF800000> : vector<16xf32>
    %254 = vector.multi_reduction <maximumf>, %253, %cst_92 [1] : vector<16x16xf32> to vector<16xf32>
    %255 = vector.shape_cast %254 : vector<16xf32> to vector<16x1xf32>
    %256 = vector.broadcast %255 : vector<16x1xf32> to vector<16x16xf32>
    %257 = arith.subf %253, %256 : vector<16x16xf32>
    %258 = math.exp %257 : vector<16x16xf32>
    %cst_93 = arith.constant dense<0.000000e+00> : vector<16xf32>
    %259 = vector.multi_reduction <add>, %258, %cst_93 [1] : vector<16x16xf32> to vector<16xf32>
    %260 = vector.shape_cast %259 : vector<16xf32> to vector<16x1xf32>
    %261 = tpu.reciprocal %260 {approx = true} : vector<16x1xf32> -> vector<16x1xf32>
    %262 = vector.broadcast %261 : vector<16x1xf32> to vector<16x16xf32>
    %263 = arith.mulf %258, %262 : vector<16x16xf32>
    %264 = vector.extract_strided_slice %227 {offsets = [0, 8], sizes = [16, 8], strides = [1, 1]} : vector<16x32xf32> to vector<16x8xf32>
    %cst_94 = arith.constant dense<0.000000e+00> : vector<16x8xf32>
    %265 = tpu.matmul %263, %264, %cst_94 {dimension_numbers = #tpu.dot_dimension_numbers<[1], [0], [0], [1], [0, 0, 1, 1], [], []>} : vector<16x16xf32>, vector<16x8xf32>, vector<16x8xf32> -> vector<16x8xf32>
    %266 = vector.extract_strided_slice %225 {offsets = [0, 16], sizes = [16, 8], strides = [1, 1]} : vector<16x32xf32> to vector<16x8xf32>
    %267 = vector.extract_strided_slice %226 {offsets = [0, 16], sizes = [16, 8], strides = [1, 1]} : vector<16x32xf32> to vector<16x8xf32>
    %268 = tpu.transpose %267, [1, 0] : vector<16x8xf32> -> vector<8x16xf32>
    %cst_95 = arith.constant dense<0.000000e+00> : vector<16x16xf32>
    %269 = tpu.matmul %266, %268, %cst_95 {dimension_numbers = #tpu.dot_dimension_numbers<[1], [0], [0], [1], [0, 0, 1, 1], [], []>} : vector<16x8xf32>, vector<8x16xf32>, vector<16x16xf32> -> vector<16x16xf32>
    %cst_96 = arith.constant 0.353553385 : f32
    %270 = vector.broadcast %cst_96 : f32 to vector<16x16xf32>
    %271 = arith.mulf %269, %270 : vector<16x16xf32>
    %272 = arith.addf %271, %1 : vector<16x16xf32>
    %cst_97 = arith.constant dense<0xFF800000> : vector<16xf32>
    %273 = vector.multi_reduction <maximumf>, %272, %cst_97 [1] : vector<16x16xf32> to vector<16xf32>
    %274 = vector.shape_cast %273 : vector<16xf32> to vector<16x1xf32>
    %275 = vector.broadcast %274 : vector<16x1xf32> to vector<16x16xf32>
    %276 = arith.subf %272, %275 : vector<16x16xf32>
    %277 = math.exp %276 : vector<16x16xf32>
    %cst_98 = arith.constant dense<0.000000e+00> : vector<16xf32>
    %278 = vector.multi_reduction <add>, %277, %cst_98 [1] : vector<16x16xf32> to vector<16xf32>
    %279 = vector.shape_cast %278 : vector<16xf32> to vector<16x1xf32>
    %280 = tpu.reciprocal %279 {approx = true} : vector<16x1xf32> -> vector<16x1xf32>
    %281 = vector.broadcast %280 : vector<16x1xf32> to vector<16x16xf32>
    %282 = arith.mulf %277, %281 : vector<16x16xf32>
    %283 = vector.extract_strided_slice %227 {offsets = [0, 16], sizes = [16, 8], strides = [1, 1]} : vector<16x32xf32> to vector<16x8xf32>
    %cst_99 = arith.constant dense<0.000000e+00> : vector<16x8xf32>
    %284 = tpu.matmul %282, %283, %cst_99 {dimension_numbers = #tpu.dot_dimension_numbers<[1], [0], [0], [1], [0, 0, 1, 1], [], []>} : vector<16x16xf32>, vector<16x8xf32>, vector<16x8xf32> -> vector<16x8xf32>
    %285 = vector.extract_strided_slice %225 {offsets = [0, 24], sizes = [16, 8], strides = [1, 1]} : vector<16x32xf32> to vector<16x8xf32>
    %286 = vector.extract_strided_slice %226 {offsets = [0, 24], sizes = [16, 8], strides = [1, 1]} : vector<16x32xf32> to vector<16x8xf32>
    %287 = tpu.transpose %286, [1, 0] : vector<16x8xf32> -> vector<8x16xf32>
    %cst_100 = arith.constant dense<0.000000e+00> : vector<16x16xf32>
    %288 = tpu.matmul %285, %287, %cst_100 {dimension_numbers = #tpu.dot_dimension_numbers<[1], [0], [0], [1], [0, 0, 1, 1], [], []>} : vector<16x8xf32>, vector<8x16xf32>, vector<16x16xf32> -> vector<16x16xf32>
    %cst_101 = arith.constant 0.353553385 : f32
    %289 = vector.broadcast %cst_101 : f32 to vector<16x16xf32>
    %290 = arith.mulf %288, %289 : vector<16x16xf32>
    %291 = arith.addf %290, %1 : vector<16x16xf32>
    %cst_102 = arith.constant dense<0xFF800000> : vector<16xf32>
    %292 = vector.multi_reduction <maximumf>, %291, %cst_102 [1] : vector<16x16xf32> to vector<16xf32>
    %293 = vector.shape_cast %292 : vector<16xf32> to vector<16x1xf32>
    %294 = vector.broadcast %293 : vector<16x1xf32> to vector<16x16xf32>
    %295 = arith.subf %291, %294 : vector<16x16xf32>
    %296 = math.exp %295 : vector<16x16xf32>
    %cst_103 = arith.constant dense<0.000000e+00> : vector<16xf32>
    %297 = vector.multi_reduction <add>, %296, %cst_103 [1] : vector<16x16xf32> to vector<16xf32>
    %298 = vector.shape_cast %297 : vector<16xf32> to vector<16x1xf32>
    %299 = tpu.reciprocal %298 {approx = true} : vector<16x1xf32> -> vector<16x1xf32>
    %300 = vector.broadcast %299 : vector<16x1xf32> to vector<16x16xf32>
    %301 = arith.mulf %296, %300 : vector<16x16xf32>
    %302 = vector.extract_strided_slice %227 {offsets = [0, 24], sizes = [16, 8], strides = [1, 1]} : vector<16x32xf32> to vector<16x8xf32>
    %cst_104 = arith.constant dense<0.000000e+00> : vector<16x8xf32>
    %303 = tpu.matmul %301, %302, %cst_104 {dimension_numbers = #tpu.dot_dimension_numbers<[1], [0], [0], [1], [0, 0, 1, 1], [], []>} : vector<16x16xf32>, vector<16x8xf32>, vector<16x8xf32> -> vector<16x8xf32>
    %304 = tpu.concatenate %244, %263, %282, %301 in 1 : vector<16x16xf32>, vector<16x16xf32>, vector<16x16xf32>, vector<16x16xf32> -> vector<16x64xf32>
    %c1_105 = arith.constant 1 : index
    %c0_106 = arith.constant 0 : index
    %c0_107 = arith.constant 0 : index
    %305 = vector.load %arg18[%c1_105, %c0_106, %c0_107] : memref<2x16x64xf32, #tpu.memory_space<vmem>>, vector<1x16x64xf32>
    %306 = vector.shape_cast %305 : vector<1x16x64xf32> to vector<16x64xf32>
    %307 = vector.shape_cast %304 : vector<16x64xf32> to vector<1x16x64xf32>
    tpu.vector_store %arg18[%c1_105, %c0_106, %c0_107], %307 {strides = array<i32>} : memref<2x16x64xf32, #tpu.memory_space<vmem>>, vector<1x16x64xf32>,
    %308 = tpu.concatenate %246, %265, %284, %303 in 1 : vector<16x8xf32>, vector<16x8xf32>, vector<16x8xf32>, vector<16x8xf32> -> vector<16x32xf32>
    %c1_108 = arith.constant 1 : index
    %c0_109 = arith.constant 0 : index
    %c0_110 = arith.constant 0 : index
    %309 = vector.load %arg6[%c1_108, %c0_109, %c0_110] : memref<2x32x32xf32, #tpu.memory_space<vmem>>, vector<1x32x32xf32>
    %310 = vector.shape_cast %309 : vector<1x32x32xf32> to vector<32x32xf32>
    %cst_111 = arith.constant dense<0.000000e+00> : vector<16x32xf32>
    %311 = tpu.matmul %308, %310, %cst_111 {dimension_numbers = #tpu.dot_dimension_numbers<[1], [0], [0], [1], [0, 0, 1, 1], [], []>} : vector<16x32xf32>, vector<32x32xf32>, vector<16x32xf32> -> vector<16x32xf32>
    %312 = arith.addf %188, %311 : vector<16x32xf32>
    %c1_112 = arith.constant 1 : index
    %c0_113 = arith.constant 0 : index
    %313 = vector.load %arg7[%c1_112, %c0_113] : memref<2x32xf32, #tpu.memory_space<vmem>>, vector<1x32xf32>
    %314 = vector.shape_cast %313 : vector<1x32xf32> to vector<32xf32>
    %315 = vector.shape_cast %314 : vector<32xf32> to vector<1x32xf32>
    %316 = vector.broadcast %315 : vector<1x32xf32> to vector<16x32xf32>
    %317 = arith.addf %312, %316 : vector<16x32xf32>
    %c1_114 = arith.constant 1 : index
    %c0_115 = arith.constant 0 : index
    %318 = vector.load %arg8[%c1_114, %c0_115] : memref<2x32xf32, #tpu.memory_space<vmem>>, vector<1x32xf32>
    %319 = vector.shape_cast %318 : vector<1x32xf32> to vector<32xf32>
    %c1_116 = arith.constant 1 : index
    %c0_117 = arith.constant 0 : index
    %320 = vector.load %arg9[%c1_116, %c0_117] : memref<2x32xf32, #tpu.memory_space<vmem>>, vector<1x32xf32>
    %321 = vector.shape_cast %320 : vector<1x32xf32> to vector<32xf32>
    %cst_118 = arith.constant dense<0.000000e+00> : vector<16xf32>
    %322 = vector.multi_reduction <add>, %317, %cst_118 [1] : vector<16x32xf32> to vector<16xf32>
    %323 = vector.shape_cast %322 : vector<16xf32> to vector<16x1xf32>
    %cst_119 = arith.constant 3.200000e+01 : f32
    %324 = vector.broadcast %cst_119 : f32 to vector<16x1xf32>
    %325 = arith.divf %323, %324 : vector<16x1xf32>
    %326 = vector.broadcast %325 : vector<16x1xf32> to vector<16x32xf32>
    %327 = arith.subf %317, %326 : vector<16x32xf32>
    %328 = arith.mulf %327, %327 : vector<16x32xf32>
    %cst_120 = arith.constant dense<0.000000e+00> : vector<16xf32>
    %329 = vector.multi_reduction <add>, %328, %cst_120 [1] : vector<16x32xf32> to vector<16xf32>
    %330 = vector.shape_cast %329 : vector<16xf32> to vector<16x1xf32>
    %cst_121 = arith.constant 3.200000e+01 : f32
    %331 = vector.broadcast %cst_121 : f32 to vector<16x1xf32>
    %332 = arith.divf %330, %331 : vector<16x1xf32>
    %333 = vector.broadcast %325 : vector<16x1xf32> to vector<16x32xf32>
    %334 = arith.subf %317, %333 : vector<16x32xf32>
    %cst_122 = arith.constant 9.99999974E-6 : f32
    %335 = vector.broadcast %cst_122 : f32 to vector<16x1xf32>
    %336 = arith.addf %332, %335 : vector<16x1xf32>
    %337 = math.rsqrt %336 : vector<16x1xf32>
    %338 = vector.broadcast %337 : vector<16x1xf32> to vector<16x32xf32>
    %339 = arith.mulf %334, %338 : vector<16x32xf32>
    %340 = vector.shape_cast %319 : vector<32xf32> to vector<1x32xf32>
    %341 = vector.broadcast %340 : vector<1x32xf32> to vector<16x32xf32>
    %342 = arith.mulf %339, %341 : vector<16x32xf32>
    %343 = vector.shape_cast %321 : vector<32xf32> to vector<1x32xf32>
    %344 = vector.broadcast %343 : vector<1x32xf32> to vector<16x32xf32>
    %345 = arith.addf %342, %344 : vector<16x32xf32>
    %c1_123 = arith.constant 1 : index
    %c0_124 = arith.constant 0 : index
    %c0_125 = arith.constant 0 : index
    %346 = vector.load %arg10[%c1_123, %c0_124, %c0_125] : memref<2x32x128xf32, #tpu.memory_space<vmem>>, vector<1x32x128xf32>
    %347 = vector.shape_cast %346 : vector<1x32x128xf32> to vector<32x128xf32>
    %cst_126 = arith.constant dense<0.000000e+00> : vector<16x128xf32>
    %348 = tpu.matmul %345, %347, %cst_126 {dimension_numbers = #tpu.dot_dimension_numbers<[1], [0], [0], [1], [0, 0, 1, 1], [], []>} : vector<16x32xf32>, vector<32x128xf32>, vector<16x128xf32> -> vector<16x128xf32>
    %c1_127 = arith.constant 1 : index
    %c0_128 = arith.constant 0 : index
    %349 = vector.load %arg11[%c1_127, %c0_128] : memref<2x128xf32, #tpu.memory_space<vmem>>, vector<1x128xf32>
    %350 = vector.shape_cast %349 : vector<1x128xf32> to vector<128xf32>
    %351 = vector.shape_cast %350 : vector<128xf32> to vector<1x128xf32>
    %352 = vector.broadcast %351 : vector<1x128xf32> to vector<16x128xf32>
    %353 = arith.addf %348, %352 : vector<16x128xf32>
    %cst_129 = arith.constant 5.000000e-01 : f32
    %354 = vector.broadcast %cst_129 : f32 to vector<16x128xf32>
    %355 = arith.mulf %354, %353 : vector<16x128xf32>
    %cst_130 = arith.constant 4.471500e-02 : f32
    %356 = vector.broadcast %cst_130 : f32 to vector<16x128xf32>
    %357 = arith.mulf %356, %353 : vector<16x128xf32>
    %358 = arith.mulf %357, %353 : vector<16x128xf32>
    %359 = arith.mulf %358, %353 : vector<16x128xf32>
    %360 = arith.addf %353, %359 : vector<16x128xf32>
    %cst_131 = arith.constant 0.797884583 : f32
    %361 = vector.broadcast %cst_131 : f32 to vector<16x128xf32>
    %362 = arith.mulf %361, %360 : vector<16x128xf32>
    %363 = math.tanh %362 : vector<16x128xf32>
    %cst_132 = arith.constant 1.000000e+00 : f32
    %364 = vector.broadcast %cst_132 : f32 to vector<16x128xf32>
    %365 = arith.addf %364, %363 : vector<16x128xf32>
    %366 = arith.mulf %355, %365 : vector<16x128xf32>
    %c1_133 = arith.constant 1 : index
    %c0_134 = arith.constant 0 : index
    %c0_135 = arith.constant 0 : index
    %367 = vector.load %arg12[%c1_133, %c0_134, %c0_135] : memref<2x128x32xf32, #tpu.memory_space<vmem>>, vector<1x128x32xf32>
    %368 = vector.shape_cast %367 : vector<1x128x32xf32> to vector<128x32xf32>
    %cst_136 = arith.constant dense<0.000000e+00> : vector<16x32xf32>
    %369 = tpu.matmul %366, %368, %cst_136 {dimension_numbers = #tpu.dot_dimension_numbers<[1], [0], [0], [1], [0, 0, 1, 1], [], []>} : vector<16x128xf32>, vector<128x32xf32>, vector<16x32xf32> -> vector<16x32xf32>
    %370 = arith.addf %317, %369 : vector<16x32xf32>
    %c1_137 = arith.constant 1 : index
    %c0_138 = arith.constant 0 : index
    %371 = vector.load %arg13[%c1_137, %c0_138] : memref<2x32xf32, #tpu.memory_space<vmem>>, vector<1x32xf32>
    %372 = vector.shape_cast %371 : vector<1x32xf32> to vector<32xf32>
    %373 = vector.shape_cast %372 : vector<32xf32> to vector<1x32xf32>
    %374 = vector.broadcast %373 : vector<1x32xf32> to vector<16x32xf32>
    %375 = arith.addf %370, %374 : vector<16x32xf32>
    %c0_139 = arith.constant 0 : index
    %c0_140 = arith.constant 0 : index
    %376 = vector.load %arg14[%c0_139, %c0_140] : memref<1x32xf32, #tpu.memory_space<vmem>>, vector<1x32xf32>
    %377 = vector.shape_cast %376 : vector<1x32xf32> to vector<32xf32>
    %c0_141 = arith.constant 0 : index
    %c0_142 = arith.constant 0 : index
    %378 = vector.load %arg15[%c0_141, %c0_142] : memref<1x32xf32, #tpu.memory_space<vmem>>, vector<1x32xf32>
    %379 = vector.shape_cast %378 : vector<1x32xf32> to vector<32xf32>
    %cst_143 = arith.constant dense<0.000000e+00> : vector<16xf32>
    %380 = vector.multi_reduction <add>, %375, %cst_143 [1] : vector<16x32xf32> to vector<16xf32>
    %381 = vector.shape_cast %380 : vector<16xf32> to vector<16x1xf32>
    %cst_144 = arith.constant 3.200000e+01 : f32
    %382 = vector.broadcast %cst_144 : f32 to vector<16x1xf32>
    %383 = arith.divf %381, %382 : vector<16x1xf32>
    %384 = vector.broadcast %383 : vector<16x1xf32> to vector<16x32xf32>
    %385 = arith.subf %375, %384 : vector<16x32xf32>
    %386 = arith.mulf %385, %385 : vector<16x32xf32>
    %cst_145 = arith.constant dense<0.000000e+00> : vector<16xf32>
    %387 = vector.multi_reduction <add>, %386, %cst_145 [1] : vector<16x32xf32> to vector<16xf32>
    %388 = vector.shape_cast %387 : vector<16xf32> to vector<16x1xf32>
    %cst_146 = arith.constant 3.200000e+01 : f32
    %389 = vector.broadcast %cst_146 : f32 to vector<16x1xf32>
    %390 = arith.divf %388, %389 : vector<16x1xf32>
    %391 = vector.broadcast %383 : vector<16x1xf32> to vector<16x32xf32>
    %392 = arith.subf %375, %391 : vector<16x32xf32>
    %cst_147 = arith.constant 9.99999974E-6 : f32
    %393 = vector.broadcast %cst_147 : f32 to vector<16x1xf32>
    %394 = arith.addf %390, %393 : vector<16x1xf32>
    %395 = math.rsqrt %394 : vector<16x1xf32>
    %396 = vector.broadcast %395 : vector<16x1xf32> to vector<16x32xf32>
    %397 = arith.mulf %392, %396 : vector<16x32xf32>
    %398 = vector.shape_cast %377 : vector<32xf32> to vector<1x32xf32>
    %399 = vector.broadcast %398 : vector<1x32xf32> to vector<16x32xf32>
    %400 = arith.mulf %397, %399 : vector<16x32xf32>
    %401 = vector.shape_cast %379 : vector<32xf32> to vector<1x32xf32>
    %402 = vector.broadcast %401 : vector<1x32xf32> to vector<16x32xf32>
    %403 = arith.addf %400, %402 : vector<16x32xf32>
    %c0_148 = arith.constant 0 : index
    %c0_149 = arith.constant 0 : index
    %404 = vector.load %arg16[%c0_148, %c0_149] : memref<32x128xf32, #tpu.memory_space<vmem>>, vector<32x128xf32>
    %cst_150 = arith.constant dense<0.000000e+00> : vector<16x128xf32>
    %405 = tpu.matmul %403, %404, %cst_150 {dimension_numbers = #tpu.dot_dimension_numbers<[1], [0], [0], [1], [0, 0, 1, 1], [], []>} : vector<16x32xf32>, vector<32x128xf32>, vector<16x128xf32> -> vector<16x128xf32>
    %c0_151 = arith.constant 0 : index
    %c0_152 = arith.constant 0 : index
    %406 = vector.load %arg17[%c0_151, %c0_152] : memref<16x128xf32, #tpu.memory_space<vmem>>, vector<16x128xf32>
    tpu.vector_store %arg17[%c0_151, %c0_152], %405 {strides = array<i32>} : memref<16x128xf32, #tpu.memory_space<vmem>>, vector<16x128xf32>,
    return
  }
}

</mosaic_0001>

<llo_original>
// kernel: tpu_custom_call.1
$region0: #{tpu_custom_call.1}
  #allocation0 [shape = 'u32[]', space=smem, size = 0x4, offset = 0x4, fixed_abs, tag = 'smem constant byte address 0x4 - core index']
  #allocation1 [shape = 'u32[144,128]{1,0:T(1,128)}', space=vmem, size = 0x12000, scoped, tag = 'internal scratch']
  %s0 = inlined_call_operand.vmem [shape: f32[16,32], index: 0, kind: input, shape index: {}]
  %s1 = inlined_call_operand.vmem [shape: f32[16,16], index: 1, kind: input, shape index: {}]
  %s2 = inlined_call_operand.vmem [shape: f32[2,32], index: 2, kind: input, shape index: {}]
  %s3 = inlined_call_operand.vmem [shape: f32[2,32], index: 3, kind: input, shape index: {}]
  %s4 = inlined_call_operand.vmem [shape: f32[2,32,96], index: 4, kind: input, shape index: {}]
  %s5 = inlined_call_operand.vmem [shape: f32[2,96], index: 5, kind: input, shape index: {}]
  %s6 = inlined_call_operand.vmem [shape: f32[2,32,32], index: 6, kind: input, shape index: {}]
  %s7 = inlined_call_operand.vmem [shape: f32[2,32], index: 7, kind: input, shape index: {}]
  %s8 = inlined_call_operand.vmem [shape: f32[2,32], index: 8, kind: input, shape index: {}]
  %s9 = inlined_call_operand.vmem [shape: f32[2,32], index: 9, kind: input, shape index: {}]
  %s10 = inlined_call_operand.vmem [shape: f32[2,32,128], index: 10, kind: input, shape index: {}]
  %s11 = inlined_call_operand.vmem [shape: f32[2,128], index: 11, kind: input, shape index: {}]
  %s12 = inlined_call_operand.vmem [shape: f32[2,128,32], index: 12, kind: input, shape index: {}]
  %s13 = inlined_call_operand.vmem [shape: f32[2,32], index: 13, kind: input, shape index: {}]
  %s14 = inlined_call_operand.vmem [shape: f32[1,32], index: 14, kind: input, shape index: {}]
  %s15 = inlined_call_operand.vmem [shape: f32[1,32], index: 15, kind: input, shape index: {}]
  %s16 = inlined_call_operand.vmem [shape: f32[32,128], index: 16, kind: input, shape index: {}]
  %s17 = inlined_call_operand.hbm [shape: f32[16,128], index: 17, kind: output, shape index: {0}]
  %s18 = inlined_call_operand.hbm [shape: f32[2,16,64], index: 18, kind: output, shape index: {1}]
  %19 = xla_tuple %s17, %s18
  %s20 = sld [smem:[#allocation0]]
  $region86: #{tpu_custom_call.1} parent=0
    _
  %s22 = ssub.s32 1, %s20
  %s23 = scalar_select 0, %s22, %s20
  $region1: #{tpu_custom_call.1} parent=0
    #allocation2 [shape = 'u8[8192]{0}', space=vmem, size = 0x2000, scoped, tag = 'output window, operand 0, single buffered']
    #allocation3 [shape = 's32[1]{0}', space=sflag, size = 0x4, scoped, tag = 'scoped memory for tpu_custom_call.1']
    #allocation4 [shape = 'u8[16384]{0}', space=vmem, size = 0x4000, scoped, tag = 'output window, operand 1, single buffered']
    #allocation5 [shape = 's32[1]{0}', space=sflag, size = 0x4, scoped, tag = 'scoped memory for tpu_custom_call.1']
    %24 = vsyncpa [#allocation3], 0
    %25 = vsyncpa [#allocation5], 0
    // Predicated region
    $region2: #{tpu_custom_call.1} parent=1 // pred_check
      _
    $region3: #{tpu_custom_call.1} parent=1 // pred_check_branch
      %27 = sbr.rel (0) target = $region5
    $region4: #{tpu_custom_call.1} parent=1 // pred_region
      _
    $region5: #{tpu_custom_call.1} parent=1 // pred_fallthru
      _
    // Predicated region
    $region6: #{tpu_custom_call.1} parent=1 // pred_check
      _
    $region7: #{tpu_custom_call.1} parent=1 // pred_check_branch
      %29 = sbr.rel (0) target = $region9
    $region8: #{tpu_custom_call.1} parent=1 // pred_region
      _
    $region9: #{tpu_custom_call.1} parent=1 // pred_fallthru
      _
    // Predicated region
    $region10: #{tpu_custom_call.1} parent=1 // pred_check
      _
    $region11: #{tpu_custom_call.1} parent=1 // pred_check_branch
      %31 = sbr.rel (0) target = $region13
    $region12: #{tpu_custom_call.1} parent=1 // pred_region
      _
    $region13: #{tpu_custom_call.1} parent=1 // pred_fallthru
      _
    // Predicated region
    $region14: #{tpu_custom_call.1} parent=1 // pred_check
      _
    $region15: #{tpu_custom_call.1} parent=1 // pred_check_branch
      %33 = sbr.rel (0) target = $region17
    $region16: #{tpu_custom_call.1} parent=1 // pred_region
      _
    $region17: #{tpu_custom_call.1} parent=1 // pred_fallthru
      _
    // Predicated region
    $region18: #{tpu_custom_call.1} parent=1 // pred_check
      _
    $region19: #{tpu_custom_call.1} parent=1 // pred_check_branch
      %35 = sbr.rel (0) target = $region21
    $region20: #{tpu_custom_call.1} parent=1 // pred_region
      _
    $region21: #{tpu_custom_call.1} parent=1 // pred_fallthru
      _
    // Predicated region
    $region22: #{tpu_custom_call.1} parent=1 // pred_check
      _
    $region23: #{tpu_custom_call.1} parent=1 // pred_check_branch
      %37 = sbr.rel (0) target = $region25
    $region24: #{tpu_custom_call.1} parent=1 // pred_region
      _
    $region25: #{tpu_custom_call.1} parent=1 // pred_fallthru
      _
    // Predicated region
    $region26: #{tpu_custom_call.1} parent=1 // pred_check
      _
    $region27: #{tpu_custom_call.1} parent=1 // pred_check_branch
      %39 = sbr.rel (0) target = $region29
    $region28: #{tpu_custom_call.1} parent=1 // pred_region
      _
    $region29: #{tpu_custom_call.1} parent=1 // pred_fallthru
      _
    // Predicated region
    $region30: #{tpu_custom_call.1} parent=1 // pred_check
      _
    $region31: #{tpu_custom_call.1} parent=1 // pred_check_branch
      %41 = sbr.rel (0) target = $region33
    $region32: #{tpu_custom_call.1} parent=1 // pred_region
      _
    $region33: #{tpu_custom_call.1} parent=1 // pred_fallthru
      _
    // Predicated region
    $region34: #{tpu_custom_call.1} parent=1 // pred_check
      _
    $region35: #{tpu_custom_call.1} parent=1 // pred_check_branch
      %43 = sbr.rel (0) target = $region37
    $region36: #{tpu_custom_call.1} parent=1 // pred_region
      _
    $region37: #{tpu_custom_call.1} parent=1 // pred_fallthru
      _
    // Predicated region
    $region38: #{tpu_custom_call.1} parent=1 // pred_check
      _
    $region39: #{tpu_custom_call.1} parent=1 // pred_check_branch
      %45 = sbr.rel (0) target = $region41
    $region40: #{tpu_custom_call.1} parent=1 // pred_region
      _
    $region41: #{tpu_custom_call.1} parent=1 // pred_fallthru
      _
    // Predicated region
    $region42: #{tpu_custom_call.1} parent=1 // pred_check
      _
    $region43: #{tpu_custom_call.1} parent=1 // pred_check_branch
      %47 = sbr.rel (0) target = $region45
    $region44: #{tpu_custom_call.1} parent=1 // pred_region
      _
    $region45: #{tpu_custom_call.1} parent=1 // pred_fallthru
      _
    // Predicated region
    $region46: #{tpu_custom_call.1} parent=1 // pred_check
      _
    $region47: #{tpu_custom_call.1} parent=1 // pred_check_branch
      %49 = sbr.rel (0) target = $region49
    $region48: #{tpu_custom_call.1} parent=1 // pred_region
      _
    $region49: #{tpu_custom_call.1} parent=1 // pred_fallthru
      _
    // Predicated region
    $region50: #{tpu_custom_call.1} parent=1 // pred_check
      _
    $region51: #{tpu_custom_call.1} parent=1 // pred_check_branch
      %51 = sbr.rel (0) target = $region53
    $region52: #{tpu_custom_call.1} parent=1 // pred_region
      _
    $region53: #{tpu_custom_call.1} parent=1 // pred_fallthru
      _
    // Predicated region
    $region54: #{tpu_custom_call.1} parent=1 // pred_check
      _
    $region55: #{tpu_custom_call.1} parent=1 // pred_check_branch
      %53 = sbr.rel (0) target = $region57
    $region56: #{tpu_custom_call.1} parent=1 // pred_region
      _
    $region57: #{tpu_custom_call.1} parent=1 // pred_fallthru
      _
    // Predicated region
    $region58: #{tpu_custom_call.1} parent=1 // pred_check
      _
    $region59: #{tpu_custom_call.1} parent=1 // pred_check_branch
      %55 = sbr.rel (0) target = $region61
    $region60: #{tpu_custom_call.1} parent=1 // pred_region
      _
    $region61: #{tpu_custom_call.1} parent=1 // pred_fallthru
      _
    // Predicated region
    $region62: #{tpu_custom_call.1} parent=1 // pred_check
      _
    $region63: #{tpu_custom_call.1} parent=1 // pred_check_branch
      %57 = sbr.rel (0) target = $region65
    $region64: #{tpu_custom_call.1} parent=1 // pred_region
      _
    $region65: #{tpu_custom_call.1} parent=1 // pred_fallthru
      _
    // Predicated region
    $region66: #{tpu_custom_call.1} parent=1 // pred_check
      _
    $region67: #{tpu_custom_call.1} parent=1 // pred_check_branch
      %59 = sbr.rel (0) target = $region69
    $region68: #{tpu_custom_call.1} parent=1 // pred_region
      _
    $region69: #{tpu_custom_call.1} parent=1 // pred_fallthru
      _
    %v60 = vld [vmem:[%s0] sm:$0xff]
    %v61 = vld [vmem:[%s0 + $0x8] sm:$0xff]
    %v62 = vld [vmem:[%s1] sm:$0xff]
    %v63 = vld [vmem:[%s1 + $0x8] sm:$0xff]
    %v64 = vld [vmem:[%s2] sm:$0x1]
    %v65 = vld [vmem:[%s3] sm:$0x1]
    %vm66 = vcmask 261120
    %v67 = vsel %vm66, %v60, 0.0
    %68 = vadd.xlane.f32.xlu0 %v67
    %v69 = vpop.xlane.xlu0 %68
    %v70 = vsel %vm66, %v61, 0.0
    %71 = vadd.xlane.f32.xlu0 %v70
    %v72 = vpop.xlane.xlu0 %71
    %v73 = vrcp.pop 32.0
    %v74 = vmul.f32 %v69, %v73
    %v75 = vmul.f32 %v72, %v73
    %v76 = vsub.f32 %v60, %v74
    %v77 = vsub.f32 %v61, %v75
    %v78 = vmul.f32 %v76, %v76
    %v79 = vmul.f32 %v77, %v77
    %v80 = vsel %vm66, %v78, 0.0
    %81 = vadd.xlane.f32.xlu0 %v80
    %v82 = vpop.xlane.xlu0 %81
    %v83 = vsel %vm66, %v79, 0.0
    %84 = vadd.xlane.f32.xlu0 %v83
    %v85 = vpop.xlane.xlu0 %84
    %v86 = vmul.f32 %v82, %v73
    %v87 = vmul.f32 %v85, %v73
    %v88 = vadd.f32 %v86, 1e-05
    %v89 = vadd.f32 %v87, 1e-05
    %v90 = vrsqrt.pop %v88
    %v91 = vrsqrt.pop %v89
    %v92 = vmul.f32 %v76, %v90
    %v93 = vmul.f32 %v77, %v91
    %v94 = vlaneseq
    %v95 = vshrl.u32 %v94, 7
    %v96 = vsub.s32 0, %v95
    %v97 = vrot.slane %v64, %v96
    %v98 = vmul.f32 %v92, %v97
    %v99 = vmul.f32 %v93, %v97
    %v100 = vlaneseq
    %v101 = vshrl.u32 %v100, 7
    %v102 = vsub.s32 0, %v101
    %v103 = vrot.slane %v65, %v102
    %v104 = vadd.f32 %v98, %v103
    %v105 = vadd.f32 %v99, %v103
    %v106 = vld [vmem:[%s4] sm:$0xff]
    %v107 = vld [vmem:[%s4 + $0x8] sm:$0xff]
    %v108 = vld [vmem:[%s4 + $0x10] sm:$0xff]
    %v109 = vld [vmem:[%s4 + $0x18] sm:$0xff]
    %v110 = vld [vmem:[%s5] sm:$0x1]
    %v111 = vlaneseq
    %v112 = vshrl.u32 %v111, 7
    %v113 = vsub.s32 0, %v112
    %v114 = vrot.slane %v110, %v113
    %v116 = vsel %vm66, %v104, 0
    %v119 = vsel %vm66, %v105, 0
    %121 = vmatprep.subr.mxu0 0.0
    %122 = vmatpush1.msra.mxu0 0.0
    %123 = vmatprep.subr.mxu0 0.0
    %124 = vmatpush1.msra.mxu0 0.0
    %125 = vmatprep.subr.mxu0 0.0
    %126 = vmatpush1.msra.mxu0 0.0
    %127 = vmatprep.subr.mxu0 0.0
    %128 = vmatpush1.msra.mxu0 0.0
    %129 = vmatprep.subr.mxu0 0.0
    %130 = vmatpush1.msra.mxu0 0.0
    %131 = vmatprep.subr.mxu0 0.0
    %132 = vmatpush1.msra.mxu0 0.0
    %133 = vmatprep.subr.mxu0 0.0
    %134 = vmatpush1.msra.mxu0 0.0
    %135 = vmatprep.subr.mxu0 0.0
    %136 = vmatpush1.msra.mxu0 0.0
    %137 = vmatprep.subr.mxu0 0.0
    %138 = vmatpush1.msra.mxu0 0.0
    %139 = vmatprep.subr.mxu0 0.0
    %140 = vmatpush1.msra.mxu0 0.0
    %141 = vmatprep.subr.mxu0 0.0
    %142 = vmatpush1.msra.mxu0 0.0
    %143 = vmatprep.subr.mxu0 0.0
    %144 = vmatpush1.msra.mxu0 0.0
    %145 = vmatprep.subr.mxu0 0.0
    %146 = vmatpush1.msra.mxu0 %v109
    %147 = vmatprep.subr.mxu0 0.0
    %148 = vmatpush1.msra.mxu0 %v108
    %149 = vmatprep.subr.mxu0 0.0
    %150 = vmatpush1.msra.mxu0 %v107
    %151 = vmatprep.subr.mxu0 0.0
    %152 = vmatpush1.msra.mxu0 %v106
    %153 = vmatprep.subr.mxu0 0.0
    %154 = vmatpush2.msra.mxu0 0.0
    %155 = vmatprep.subr.mxu0 0.0
    %156 = vmatpush2.msra.mxu0 0.0
    %157 = vmatprep.subr.mxu0 0.0
    %158 = vmatpush2.msra.mxu0 0.0
    %159 = vmatprep.subr.mxu0 0.0
    %160 = vmatpush2.msra.mxu0 0.0
    %161 = vmatprep.subr.mxu0 0.0
    %162 = vmatpush2.msra.mxu0 0.0
    %163 = vmatprep.subr.mxu0 0.0
    %164 = vmatpush2.msra.mxu0 0.0
    %165 = vmatprep.subr.mxu0 0.0
    %166 = vmatpush2.msra.mxu0 0.0
    %167 = vmatprep.subr.mxu0 0.0
    %168 = vmatpush2.msra.mxu0 0.0
    %169 = vmatprep.subr.mxu0 0.0
    %170 = vmatpush2.msra.mxu0 0.0
    %171 = vmatprep.subr.mxu0 0.0
    %172 = vmatpush2.msra.mxu0 0.0
    %173 = vmatprep.subr.mxu0 0.0
    %174 = vmatpush2.msra.mxu0 0.0
    %175 = vmatprep.subr.mxu0 0.0
    %176 = vmatpush2.msra.mxu0 0.0
    %177 = vmatprep.subr.mxu0 0.0
    %178 = vmatpush2.msra.mxu0 0.0
    %179 = vmatprep.subr.mxu0 0.0
    %180 = vmatpush2.msra.mxu0 0.0
    %181 = vmatprep.subr.mxu0 0.0
    %182 = vmatpush2.msra.mxu0 0.0
    %183 = vmatprep.subr.mxu0 0.0
    %184 = vmatpush2.msra.mxu0 0.0
    %185 = vmatprep.mubr.f32.mxu0 0.0
    %186 = vmatmul.mubr.f32.gmra.mxu0 %v116
    %v187 = vpop.f32.mrf.mxu0
    %v188 = vadd.f32 %v114, %v187
    %v189 = vpop.f32.mrf.mxu0
    %190 = vmatprep.mubr.f32.mxu0 0.0
    %191 = vmatmul.mubr.f32.gmra.mxu0 %v119
    %v192 = vpop.f32.mrf.mxu0
    %v193 = vadd.f32 %v114, %v192
    %v194 = vpop.f32.mrf.mxu0
    %195 = vdwg.mxu0
    %198 = vrot.lane.b32.xlu0 %v188, 96
    %v199 = vpop.permute.xlu0 %198
    %200 = vrot.lane.b32.xlu0 %v193, 96
    %v201 = vpop.permute.xlu0 %200
    %vm202 = vcmask 64512
    %v203 = vsel %vm202, %v188, 0
    %v205 = vsel %vm202, %v193, 0
    %v207 = vsel %vm202, %v199, 0
    %v209 = vsel %vm202, %v201, 0
    %211 = vmatprep.subr.mxu0 0.0
    %212 = vmatpush1.xpose.msra.mxu0 0.0
    %213 = vmatprep.subr.mxu0 0.0
    %214 = vmatpush1.xpose.msra.mxu0 0.0
    %215 = vmatprep.subr.mxu0 0.0
    %216 = vmatpush1.xpose.msra.mxu0 0.0
    %217 = vmatprep.subr.mxu0 0.0
    %218 = vmatpush1.xpose.msra.mxu0 0.0
    %219 = vmatprep.subr.mxu0 0.0
    %220 = vmatpush1.xpose.msra.mxu0 0.0
    %221 = vmatprep.subr.mxu0 0.0
    %222 = vmatpush1.xpose.msra.mxu0 0.0
    %223 = vmatprep.subr.mxu0 0.0
    %224 = vmatpush1.xpose.msra.mxu0 0.0
    %225 = vmatprep.subr.mxu0 0.0
    %226 = vmatpush1.xpose.msra.mxu0 0.0
    %227 = vmatprep.subr.mxu0 0.0
    %228 = vmatpush1.xpose.msra.mxu0 0.0
    %229 = vmatprep.subr.mxu0 0.0
    %230 = vmatpush1.xpose.msra.mxu0 0.0
    %231 = vmatprep.subr.mxu0 0.0
    %232 = vmatpush1.xpose.msra.mxu0 0.0
    %233 = vmatprep.subr.mxu0 0.0
    %234 = vmatpush1.xpose.msra.mxu0 0.0
    %235 = vmatprep.subr.mxu0 0.0
    %236 = vmatpush1.xpose.msra.mxu0 0.0
    %237 = vmatprep.subr.mxu0 0.0
    %238 = vmatpush1.xpose.msra.mxu0 0.0
    %239 = vmatprep.subr.mxu0 0.0
    %240 = vmatpush1.xpose.msra.mxu0 %v209
    %241 = vmatprep.subr.mxu0 0.0
    %242 = vmatpush1.xpose.msra.mxu0 %v207
    %243 = vmatprep.subr.mxu0 0.0
    %244 = vmatpush2.xpose.msra.mxu0 0.0
    %245 = vmatprep.subr.mxu0 0.0
    %246 = vmatpush2.xpose.msra.mxu0 0.0
    %247 = vmatprep.subr.mxu0 0.0
    %248 = vmatpush2.xpose.msra.mxu0 0.0
    %249 = vmatprep.subr.mxu0 0.0
    %250 = vmatpush2.xpose.msra.mxu0 0.0
    %251 = vmatprep.subr.mxu0 0.0
    %252 = vmatpush2.xpose.msra.mxu0 0.0
    %253 = vmatprep.subr.mxu0 0.0
    %254 = vmatpush2.xpose.msra.mxu0 0.0
    %255 = vmatprep.subr.mxu0 0.0
    %256 = vmatpush2.xpose.msra.mxu0 0.0
    %257 = vmatprep.subr.mxu0 0.0
    %258 = vmatpush2.xpose.msra.mxu0 0.0
    %259 = vmatprep.subr.mxu0 0.0
    %260 = vmatpush2.xpose.msra.mxu0 0.0
    %261 = vmatprep.subr.mxu0 0.0
    %262 = vmatpush2.xpose.msra.mxu0 0.0
    %263 = vmatprep.subr.mxu0 0.0
    %264 = vmatpush2.xpose.msra.mxu0 0.0
    %265 = vmatprep.subr.mxu0 0.0
    %266 = vmatpush2.xpose.msra.mxu0 0.0
    %267 = vmatprep.subr.mxu0 0.0
    %268 = vmatpush2.xpose.msra.mxu0 0.0
    %269 = vmatprep.subr.mxu0 0.0
    %270 = vmatpush2.xpose.msra.mxu0 0.0
    %271 = vmatprep.subr.mxu0 0.0
    %272 = vmatpush2.xpose.msra.mxu0 0.0
    %273 = vmatprep.subr.mxu0 0.0
    %274 = vmatpush2.xpose.msra.mxu0 0.0
    %275 = vmatprep.mubr.f32.mxu0 0.0
    %276 = vmatmul.mubr.f32.gmra.mxu0 %v203
    %v277 = vpop.f32.mrf.mxu0
    %v278 = vadd.f32 0.0, %v277
    %v279 = vpop.f32.mrf.mxu0
    %280 = vmatprep.mubr.f32.mxu0 0.0
    %281 = vmatmul.mubr.f32.gmra.mxu0 %v205
    %v282 = vpop.f32.mrf.mxu0
    %v283 = vadd.f32 0.0, %v282
    %v284 = vpop.f32.mrf.mxu0
    %285 = vdwg.mxu0
    %v286 = vmul.f32 %v278, 0.35355338
    %v287 = vmul.f32 %v283, 0.35355338
    %v288 = vadd.f32 %v286, %v62
    %v289 = vadd.f32 %v287, %v63
    %vm290 = vcmask 130048
    %v291 = vsel %vm290, %v288, -inf
    %292 = vmax.xlane.f32.xlu0 %v291
    %v293 = vpop.xlane.xlu0 %292
    %v294 = vsel %vm290, %v289, -inf
    %295 = vmax.xlane.f32.xlu0 %v294
    %v296 = vpop.xlane.xlu0 %295
    %v297 = vsub.f32 %v288, %v293
    %v298 = vsub.f32 %v289, %v296
    %v299 = vmul.f32 %v297, 1.442695
    %v300 = vpow.pop %v299
    %v301 = vmul.f32 %v298, 1.442695
    %v302 = vpow.pop %v301
    %v303 = vsel %vm290, %v300, 0.0
    %304 = vadd.xlane.f32.xlu0 %v303
    %v305 = vpop.xlane.xlu0 %304
    %v306 = vsel %vm290, %v302, 0.0
    %307 = vadd.xlane.f32.xlu0 %v306
    %v308 = vpop.xlane.xlu0 %307
    %v309 = vrcp.pop %v305
    %v310 = vrcp.pop %v308
    %v311 = vmul.f32 %v300, %v309
    %v312 = vmul.f32 %v302, %v310
    %313 = vrot.lane.b32.xlu0 %v188, 64
    %v314 = vpop.permute.xlu0 %313
    %315 = vrot.lane.b32.xlu0 %v193, 64
    %v316 = vpop.permute.xlu0 %315
    %v320 = vsel %vm290, %v311, 0
    %v323 = vsel %vm290, %v312, 0
    %325 = vmatprep.subr.mxu0 0.0
    %326 = vmatpush1.msra.mxu0 0.0
    %327 = vmatprep.subr.mxu0 0.0
    %328 = vmatpush1.msra.mxu0 0.0
    %329 = vmatprep.subr.mxu0 0.0
    %330 = vmatpush1.msra.mxu0 0.0
    %331 = vmatprep.subr.mxu0 0.0
    %332 = vmatpush1.msra.mxu0 0.0
    %333 = vmatprep.subr.mxu0 0.0
    %334 = vmatpush1.msra.mxu0 0.0
    %335 = vmatprep.subr.mxu0 0.0
    %336 = vmatpush1.msra.mxu0 0.0
    %337 = vmatprep.subr.mxu0 0.0
    %338 = vmatpush1.msra.mxu0 0.0
    %339 = vmatprep.subr.mxu0 0.0
    %340 = vmatpush1.msra.mxu0 0.0
    %341 = vmatprep.subr.mxu0 0.0
    %342 = vmatpush1.msra.mxu0 0.0
    %343 = vmatprep.subr.mxu0 0.0
    %344 = vmatpush1.msra.mxu0 0.0
    %345 = vmatprep.subr.mxu0 0.0
    %346 = vmatpush1.msra.mxu0 0.0
    %347 = vmatprep.subr.mxu0 0.0
    %348 = vmatpush1.msra.mxu0 0.0
    %349 = vmatprep.subr.mxu0 0.0
    %350 = vmatpush1.msra.mxu0 0.0
    %351 = vmatprep.subr.mxu0 0.0
    %352 = vmatpush1.msra.mxu0 0.0
    %353 = vmatprep.subr.mxu0 0.0
    %354 = vmatpush1.msra.mxu0 %v316
    %355 = vmatprep.subr.mxu0 0.0
    %356 = vmatpush1.msra.mxu0 %v314
    %357 = vmatprep.subr.mxu0 0.0
    %358 = vmatpush2.msra.mxu0 0.0
    %359 = vmatprep.subr.mxu0 0.0
    %360 = vmatpush2.msra.mxu0 0.0
    %361 = vmatprep.subr.mxu0 0.0
    %362 = vmatpush2.msra.mxu0 0.0
    %363 = vmatprep.subr.mxu0 0.0
    %364 = vmatpush2.msra.mxu0 0.0
    %365 = vmatprep.subr.mxu0 0.0
    %366 = vmatpush2.msra.mxu0 0.0
    %367 = vmatprep.subr.mxu0 0.0
    %368 = vmatpush2.msra.mxu0 0.0
    %369 = vmatprep.subr.mxu0 0.0
    %370 = vmatpush2.msra.mxu0 0.0
    %371 = vmatprep.subr.mxu0 0.0
    %372 = vmatpush2.msra.mxu0 0.0
    %373 = vmatprep.subr.mxu0 0.0
    %374 = vmatpush2.msra.mxu0 0.0
    %375 = vmatprep.subr.mxu0 0.0
    %376 = vmatpush2.msra.mxu0 0.0
    %377 = vmatprep.subr.mxu0 0.0
    %378 = vmatpush2.msra.mxu0 0.0
    %379 = vmatprep.subr.mxu0 0.0
    %380 = vmatpush2.msra.mxu0 0.0
    %381 = vmatprep.subr.mxu0 0.0
    %382 = vmatpush2.msra.mxu0 0.0
    %383 = vmatprep.subr.mxu0 0.0
    %384 = vmatpush2.msra.mxu0 0.0
    %385 = vmatprep.subr.mxu0 0.0
    %386 = vmatpush2.msra.mxu0 0.0
    %387 = vmatprep.subr.mxu0 0.0
    %388 = vmatpush2.msra.mxu0 0.0
    %389 = vmatprep.mubr.f32.mxu0 0.0
    %390 = vmatmul.mubr.f32.gmra.mxu0 %v320
    %v391 = vpop.f32.mrf.mxu0
    %v392 = vadd.f32 0.0, %v391
    %v393 = vpop.f32.mrf.mxu0
    %394 = vmatprep.mubr.f32.mxu0 0.0
    %395 = vmatmul.mubr.f32.gmra.mxu0 %v323
    %v396 = vpop.f32.mrf.mxu0
    %v397 = vadd.f32 0.0, %v396
    %v398 = vpop.f32.mrf.mxu0
    %399 = vdwg.mxu0
    %400 = vrot.lane.b32.xlu0 %v188, 120
    %v401 = vpop.permute.xlu0 %400
    %402 = vrot.lane.b32.xlu0 %v193, 120
    %v403 = vpop.permute.xlu0 %402
    %404 = vrot.lane.b32.xlu0 %v188, 88
    %v405 = vpop.permute.xlu0 %404
    %406 = vrot.lane.b32.xlu0 %v193, 88
    %v407 = vpop.permute.xlu0 %406
    %v408 = vsel %vm202, %v401, 0
    %v410 = vsel %vm202, %v403, 0
    %v412 = vsel %vm202, %v405, 0
    %v414 = vsel %vm202, %v407, 0
    %416 = vmatprep.subr.mxu0 0.0
    %417 = vmatpush1.xpose.msra.mxu0 0.0
    %418 = vmatprep.subr.mxu0 0.0
    %419 = vmatpush1.xpose.msra.mxu0 0.0
    %420 = vmatprep.subr.mxu0 0.0
    %421 = vmatpush1.xpose.msra.mxu0 0.0
    %422 = vmatprep.subr.mxu0 0.0
    %423 = vmatpush1.xpose.msra.mxu0 0.0
    %424 = vmatprep.subr.mxu0 0.0
    %425 = vmatpush1.xpose.msra.mxu0 0.0
    %426 = vmatprep.subr.mxu0 0.0
    %427 = vmatpush1.xpose.msra.mxu0 0.0
    %428 = vmatprep.subr.mxu0 0.0
    %429 = vmatpush1.xpose.msra.mxu0 0.0
    %430 = vmatprep.subr.mxu0 0.0
    %431 = vmatpush1.xpose.msra.mxu0 0.0
    %432 = vmatprep.subr.mxu0 0.0
    %433 = vmatpush1.xpose.msra.mxu0 0.0
    %434 = vmatprep.subr.mxu0 0.0
    %435 = vmatpush1.xpose.msra.mxu0 0.0
    %436 = vmatprep.subr.mxu0 0.0
    %437 = vmatpush1.xpose.msra.mxu0 0.0
    %438 = vmatprep.subr.mxu0 0.0
    %439 = vmatpush1.xpose.msra.mxu0 0.0
    %440 = vmatprep.subr.mxu0 0.0
    %441 = vmatpush1.xpose.msra.mxu0 0.0
    %442 = vmatprep.subr.mxu0 0.0
    %443 = vmatpush1.xpose.msra.mxu0 0.0
    %444 = vmatprep.subr.mxu0 0.0
    %445 = vmatpush1.xpose.msra.mxu0 %v414
    %446 = vmatprep.subr.mxu0 0.0
    %447 = vmatpush1.xpose.msra.mxu0 %v412
    %448 = vmatprep.subr.mxu0 0.0
    %449 = vmatpush2.xpose.msra.mxu0 0.0
    %450 = vmatprep.subr.mxu0 0.0
    %451 = vmatpush2.xpose.msra.mxu0 0.0
    %452 = vmatprep.subr.mxu0 0.0
    %453 = vmatpush2.xpose.msra.mxu0 0.0
    %454 = vmatprep.subr.mxu0 0.0
    %455 = vmatpush2.xpose.msra.mxu0 0.0
    %456 = vmatprep.subr.mxu0 0.0
    %457 = vmatpush2.xpose.msra.mxu0 0.0
    %458 = vmatprep.subr.mxu0 0.0
    %459 = vmatpush2.xpose.msra.mxu0 0.0
    %460 = vmatprep.subr.mxu0 0.0
    %461 = vmatpush2.xpose.msra.mxu0 0.0
    %462 = vmatprep.subr.mxu0 0.0
    %463 = vmatpush2.xpose.msra.mxu0 0.0
    %464 = vmatprep.subr.mxu0 0.0
    %465 = vmatpush2.xpose.msra.mxu0 0.0
    %466 = vmatprep.subr.mxu0 0.0
    %467 = vmatpush2.xpose.msra.mxu0 0.0
    %468 = vmatprep.subr.mxu0 0.0
    %469 = vmatpush2.xpose.msra.mxu0 0.0
    %470 = vmatprep.subr.mxu0 0.0
    %471 = vmatpush2.xpose.msra.mxu0 0.0
    %472 = vmatprep.subr.mxu0 0.0
    %473 = vmatpush2.xpose.msra.mxu0 0.0
    %474 = vmatprep.subr.mxu0 0.0
    %475 = vmatpush2.xpose.msra.mxu0 0.0
    %476 = vmatprep.subr.mxu0 0.0
    %477 = vmatpush2.xpose.msra.mxu0 0.0
    %478 = vmatprep.subr.mxu0 0.0
    %479 = vmatpush2.xpose.msra.mxu0 0.0
    %480 = vmatprep.mubr.f32.mxu0 0.0
    %481 = vmatmul.mubr.f32.gmra.mxu0 %v408
    %v482 = vpop.f32.mrf.mxu0
    %v483 = vadd.f32 0.0, %v482
    %v484 = vpop.f32.mrf.mxu0
    %485 = vmatprep.mubr.f32.mxu0 0.0
    %486 = vmatmul.mubr.f32.gmra.mxu0 %v410
    %v487 = vpop.f32.mrf.mxu0
    %v488 = vadd.f32 0.0, %v487
    %v489 = vpop.f32.mrf.mxu0
    %490 = vdwg.mxu0
    %v491 = vmul.f32 %v483, 0.35355338
    %v492 = vmul.f32 %v488, 0.35355338
    %v493 = vadd.f32 %v491, %v62
    %v494 = vadd.f32 %v492, %v63
    %v495 = vsel %vm290, %v493, -inf
    %496 = vmax.xlane.f32.xlu0 %v495
    %v497 = vpop.xlane.xlu0 %496
    %v498 = vsel %vm290, %v494, -inf
    %499 = vmax.xlane.f32.xlu0 %v498
    %v500 = vpop.xlane.xlu0 %499
    %v501 = vsub.f32 %v493, %v497
    %v502 = vsub.f32 %v494, %v500
    %v503 = vmul.f32 %v501, 1.442695
    %v504 = vpow.pop %v503
    %v505 = vmul.f32 %v502, 1.442695
    %v506 = vpow.pop %v505
    %v507 = vsel %vm290, %v504, 0.0
    %508 = vadd.xlane.f32.xlu0 %v507
    %v509 = vpop.xlane.xlu0 %508
    %v510 = vsel %vm290, %v506, 0.0
    %511 = vadd.xlane.f32.xlu0 %v510
    %v512 = vpop.xlane.xlu0 %511
    %v513 = vrcp.pop %v509
    %v514 = vrcp.pop %v512
    %v515 = vmul.f32 %v504, %v513
    %v516 = vmul.f32 %v506, %v514
    %517 = vrot.lane.b32.xlu0 %v188, 56
    %v518 = vpop.permute.xlu0 %517
    %519 = vrot.lane.b32.xlu0 %v193, 56
    %v520 = vpop.permute.xlu0 %519
    %v524 = vsel %vm290, %v515, 0
    %v527 = vsel %vm290, %v516, 0
    %529 = vmatprep.subr.mxu0 0.0
    %530 = vmatpush1.msra.mxu0 0.0
    %531 = vmatprep.subr.mxu0 0.0
    %532 = vmatpush1.msra.mxu0 0.0
    %533 = vmatprep.subr.mxu0 0.0
    %534 = vmatpush1.msra.mxu0 0.0
    %535 = vmatprep.subr.mxu0 0.0
    %536 = vmatpush1.msra.mxu0 0.0
    %537 = vmatprep.subr.mxu0 0.0
    %538 = vmatpush1.msra.mxu0 0.0
    %539 = vmatprep.subr.mxu0 0.0
    %540 = vmatpush1.msra.mxu0 0.0
    %541 = vmatprep.subr.mxu0 0.0
    %542 = vmatpush1.msra.mxu0 0.0
    %543 = vmatprep.subr.mxu0 0.0
    %544 = vmatpush1.msra.mxu0 0.0
    %545 = vmatprep.subr.mxu0 0.0
    %546 = vmatpush1.msra.mxu0 0.0
    %547 = vmatprep.subr.mxu0 0.0
    %548 = vmatpush1.msra.mxu0 0.0
    %549 = vmatprep.subr.mxu0 0.0
    %550 = vmatpush1.msra.mxu0 0.0
    %551 = vmatprep.subr.mxu0 0.0
    %552 = vmatpush1.msra.mxu0 0.0
    %553 = vmatprep.subr.mxu0 0.0
    %554 = vmatpush1.msra.mxu0 0.0
    %555 = vmatprep.subr.mxu0 0.0
    %556 = vmatpush1.msra.mxu0 0.0
    %557 = vmatprep.subr.mxu0 0.0
    %558 = vmatpush1.msra.mxu0 %v520
    %559 = vmatprep.subr.mxu0 0.0
    %560 = vmatpush1.msra.mxu0 %v518
    %561 = vmatprep.subr.mxu0 0.0
    %562 = vmatpush2.msra.mxu0 0.0
    %563 = vmatprep.subr.mxu0 0.0
    %564 = vmatpush2.msra.mxu0 0.0
    %565 = vmatprep.subr.mxu0 0.0
    %566 = vmatpush2.msra.mxu0 0.0
    %567 = vmatprep.subr.mxu0 0.0
    %568 = vmatpush2.msra.mxu0 0.0
    %569 = vmatprep.subr.mxu0 0.0
    %570 = vmatpush2.msra.mxu0 0.0
    %571 = vmatprep.subr.mxu0 0.0
    %572 = vmatpush2.msra.mxu0 0.0
    %573 = vmatprep.subr.mxu0 0.0
    %574 = vmatpush2.msra.mxu0 0.0
    %575 = vmatprep.subr.mxu0 0.0
    %576 = vmatpush2.msra.mxu0 0.0
    %577 = vmatprep.subr.mxu0 0.0
    %578 = vmatpush2.msra.mxu0 0.0
    %579 = vmatprep.subr.mxu0 0.0
    %580 = vmatpush2.msra.mxu0 0.0
    %581 = vmatprep.subr.mxu0 0.0
    %582 = vmatpush2.msra.mxu0 0.0
    %583 = vmatprep.subr.mxu0 0.0
    %584 = vmatpush2.msra.mxu0 0.0
    %585 = vmatprep.subr.mxu0 0.0
    %586 = vmatpush2.msra.mxu0 0.0
    %587 = vmatprep.subr.mxu0 0.0
    %588 = vmatpush2.msra.mxu0 0.0
    %589 = vmatprep.subr.mxu0 0.0
    %590 = vmatpush2.msra.mxu0 0.0
    %591 = vmatprep.subr.mxu0 0.0
    %592 = vmatpush2.msra.mxu0 0.0
    %593 = vmatprep.mubr.f32.mxu0 0.0
    %594 = vmatmul.mubr.f32.gmra.mxu0 %v524
    %v595 = vpop.f32.mrf.mxu0
    %v596 = vadd.f32 0.0, %v595
    %v597 = vpop.f32.mrf.mxu0
    %598 = vmatprep.mubr.f32.mxu0 0.0
    %599 = vmatmul.mubr.f32.gmra.mxu0 %v527
    %v600 = vpop.f32.mrf.mxu0
    %v601 = vadd.f32 0.0, %v600
    %v602 = vpop.f32.mrf.mxu0
    %603 = vdwg.mxu0
    %604 = vrot.lane.b32.xlu0 %v188, 112
    %v605 = vpop.permute.xlu0 %604
    %606 = vrot.lane.b32.xlu0 %v193, 112
    %v607 = vpop.permute.xlu0 %606
    %608 = vrot.lane.b32.xlu0 %v188, 80
    %v609 = vpop.permute.xlu0 %608
    %610 = vrot.lane.b32.xlu0 %v193, 80
    %v611 = vpop.permute.xlu0 %610
    %v612 = vsel %vm202, %v605, 0
    %v614 = vsel %vm202, %v607, 0
    %v616 = vsel %vm202, %v609, 0
    %v618 = vsel %vm202, %v611, 0
    %620 = vmatprep.subr.mxu0 0.0
    %621 = vmatpush1.xpose.msra.mxu0 0.0
    %622 = vmatprep.subr.mxu0 0.0
    %623 = vmatpush1.xpose.msra.mxu0 0.0
    %624 = vmatprep.subr.mxu0 0.0
    %625 = vmatpush1.xpose.msra.mxu0 0.0
    %626 = vmatprep.subr.mxu0 0.0
    %627 = vmatpush1.xpose.msra.mxu0 0.0
    %628 = vmatprep.subr.mxu0 0.0
    %629 = vmatpush1.xpose.msra.mxu0 0.0
    %630 = vmatprep.subr.mxu0 0.0
    %631 = vmatpush1.xpose.msra.mxu0 0.0
    %632 = vmatprep.subr.mxu0 0.0
    %633 = vmatpush1.xpose.msra.mxu0 0.0
    %634 = vmatprep.subr.mxu0 0.0
    %635 = vmatpush1.xpose.msra.mxu0 0.0
    %636 = vmatprep.subr.mxu0 0.0
    %637 = vmatpush1.xpose.msra.mxu0 0.0
    %638 = vmatprep.subr.mxu0 0.0
    %639 = vmatpush1.xpose.msra.mxu0 0.0
    %640 = vmatprep.subr.mxu0 0.0
    %641 = vmatpush1.xpose.msra.mxu0 0.0
    %642 = vmatprep.subr.mxu0 0.0
    %643 = vmatpush1.xpose.msra.mxu0 0.0
    %644 = vmatprep.subr.mxu0 0.0
    %645 = vmatpush1.xpose.msra.mxu0 0.0
    %646 = vmatprep.subr.mxu0 0.0
    %647 = vmatpush1.xpose.msra.mxu0 0.0
    %648 = vmatprep.subr.mxu0 0.0
    %649 = vmatpush1.xpose.msra.mxu0 %v618
    %650 = vmatprep.subr.mxu0 0.0
    %651 = vmatpush1.xpose.msra.mxu0 %v616
    %652 = vmatprep.subr.mxu0 0.0
    %653 = vmatpush2.xpose.msra.mxu0 0.0
    %654 = vmatprep.subr.mxu0 0.0
    %655 = vmatpush2.xpose.msra.mxu0 0.0
    %656 = vmatprep.subr.mxu0 0.0
    %657 = vmatpush2.xpose.msra.mxu0 0.0
    %658 = vmatprep.subr.mxu0 0.0
    %659 = vmatpush2.xpose.msra.mxu0 0.0
    %660 = vmatprep.subr.mxu0 0.0
    %661 = vmatpush2.xpose.msra.mxu0 0.0
    %662 = vmatprep.subr.mxu0 0.0
    %663 = vmatpush2.xpose.msra.mxu0 0.0
    %664 = vmatprep.subr.mxu0 0.0
    %665 = vmatpush2.xpose.msra.mxu0 0.0
    %666 = vmatprep.subr.mxu0 0.0
    %667 = vmatpush2.xpose.msra.mxu0 0.0
    %668 = vmatprep.subr.mxu0 0.0
    %669 = vmatpush2.xpose.msra.mxu0 0.0
    %670 = vmatprep.subr.mxu0 0.0
    %671 = vmatpush2.xpose.msra.mxu0 0.0
    %672 = vmatprep.subr.mxu0 0.0
    %673 = vmatpush2.xpose.msra.mxu0 0.0
    %674 = vmatprep.subr.mxu0 0.0
    %675 = vmatpush2.xpose.msra.mxu0 0.0
    %676 = vmatprep.subr.mxu0 0.0
    %677 = vmatpush2.xpose.msra.mxu0 0.0
    %678 = vmatprep.subr.mxu0 0.0
    %679 = vmatpush2.xpose.msra.mxu0 0.0
    %680 = vmatprep.subr.mxu0 0.0
    %681 = vmatpush2.xpose.msra.mxu0 0.0
    %682 = vmatprep.subr.mxu0 0.0
    %683 = vmatpush2.xpose.msra.mxu0 0.0
    %684 = vmatprep.mubr.f32.mxu0 0.0
    %685 = vmatmul.mubr.f32.gmra.mxu0 %v612
    %v686 = vpop.f32.mrf.mxu0
    %v687 = vadd.f32 0.0, %v686
    %v688 = vpop.f32.mrf.mxu0
    %689 = vmatprep.mubr.f32.mxu0 0.0
    %690 = vmatmul.mubr.f32.gmra.mxu0 %v614
    %v691 = vpop.f32.mrf.mxu0
    %v692 = vadd.f32 0.0, %v691
    %v693 = vpop.f32.mrf.mxu0
    %694 = vdwg.mxu0
    %v695 = vmul.f32 %v687, 0.35355338
    %v696 = vmul.f32 %v692, 0.35355338
    %v697 = vadd.f32 %v695, %v62
    %v698 = vadd.f32 %v696, %v63
    %v699 = vsel %vm290, %v697, -inf
    %700 = vmax.xlane.f32.xlu0 %v699
    %v701 = vpop.xlane.xlu0 %700
    %v702 = vsel %vm290, %v698, -inf
    %703 = vmax.xlane.f32.xlu0 %v702
    %v704 = vpop.xlane.xlu0 %703
    %v705 = vsub.f32 %v697, %v701
    %v706 = vsub.f32 %v698, %v704
    %v707 = vmul.f32 %v705, 1.442695
    %v708 = vpow.pop %v707
    %v709 = vmul.f32 %v706, 1.442695
    %v710 = vpow.pop %v709
    %v711 = vsel %vm290, %v708, 0.0
    %712 = vadd.xlane.f32.xlu0 %v711
    %v713 = vpop.xlane.xlu0 %712
    %v714 = vsel %vm290, %v710, 0.0
    %715 = vadd.xlane.f32.xlu0 %v714
    %v716 = vpop.xlane.xlu0 %715
    %v717 = vrcp.pop %v713
    %v718 = vrcp.pop %v716
    %v719 = vmul.f32 %v708, %v717
    %v720 = vmul.f32 %v710, %v718
    %721 = vrot.lane.b32.xlu0 %v188, 48
    %v722 = vpop.permute.xlu0 %721
    %723 = vrot.lane.b32.xlu0 %v193, 48
    %v724 = vpop.permute.xlu0 %723
    %v728 = vsel %vm290, %v719, 0
    %v731 = vsel %vm290, %v720, 0
    %733 = vmatprep.subr.mxu0 0.0
    %734 = vmatpush1.msra.mxu0 0.0
    %735 = vmatprep.subr.mxu0 0.0
    %736 = vmatpush1.msra.mxu0 0.0
    %737 = vmatprep.subr.mxu0 0.0
    %738 = vmatpush1.msra.mxu0 0.0
    %739 = vmatprep.subr.mxu0 0.0
    %740 = vmatpush1.msra.mxu0 0.0
    %741 = vmatprep.subr.mxu0 0.0
    %742 = vmatpush1.msra.mxu0 0.0
    %743 = vmatprep.subr.mxu0 0.0
    %744 = vmatpush1.msra.mxu0 0.0
    %745 = vmatprep.subr.mxu0 0.0
    %746 = vmatpush1.msra.mxu0 0.0
    %747 = vmatprep.subr.mxu0 0.0
    %748 = vmatpush1.msra.mxu0 0.0
    %749 = vmatprep.subr.mxu0 0.0
    %750 = vmatpush1.msra.mxu0 0.0
    %751 = vmatprep.subr.mxu0 0.0
    %752 = vmatpush1.msra.mxu0 0.0
    %753 = vmatprep.subr.mxu0 0.0
    %754 = vmatpush1.msra.mxu0 0.0
    %755 = vmatprep.subr.mxu0 0.0
    %756 = vmatpush1.msra.mxu0 0.0
    %757 = vmatprep.subr.mxu0 0.0
    %758 = vmatpush1.msra.mxu0 0.0
    %759 = vmatprep.subr.mxu0 0.0
    %760 = vmatpush1.msra.mxu0 0.0
    %761 = vmatprep.subr.mxu0 0.0
    %762 = vmatpush1.msra.mxu0 %v724
    %763 = vmatprep.subr.mxu0 0.0
    %764 = vmatpush1.msra.mxu0 %v722
    %765 = vmatprep.subr.mxu0 0.0
    %766 = vmatpush2.msra.mxu0 0.0
    %767 = vmatprep.subr.mxu0 0.0
    %768 = vmatpush2.msra.mxu0 0.0
    %769 = vmatprep.subr.mxu0 0.0
    %770 = vmatpush2.msra.mxu0 0.0
    %771 = vmatprep.subr.mxu0 0.0
    %772 = vmatpush2.msra.mxu0 0.0
    %773 = vmatprep.subr.mxu0 0.0
    %774 = vmatpush2.msra.mxu0 0.0
    %775 = vmatprep.subr.mxu0 0.0
    %776 = vmatpush2.msra.mxu0 0.0
    %777 = vmatprep.subr.mxu0 0.0
    %778 = vmatpush2.msra.mxu0 0.0
    %779 = vmatprep.subr.mxu0 0.0
    %780 = vmatpush2.msra.mxu0 0.0
    %781 = vmatprep.subr.mxu0 0.0
    %782 = vmatpush2.msra.mxu0 0.0
    %783 = vmatprep.subr.mxu0 0.0
    %784 = vmatpush2.msra.mxu0 0.0
    %785 = vmatprep.subr.mxu0 0.0
    %786 = vmatpush2.msra.mxu0 0.0
    %787 = vmatprep.subr.mxu0 0.0
    %788 = vmatpush2.msra.mxu0 0.0
    %789 = vmatprep.subr.mxu0 0.0
    %790 = vmatpush2.msra.mxu0 0.0
    %791 = vmatprep.subr.mxu0 0.0
    %792 = vmatpush2.msra.mxu0 0.0
    %793 = vmatprep.subr.mxu0 0.0
    %794 = vmatpush2.msra.mxu0 0.0
    %795 = vmatprep.subr.mxu0 0.0
    %796 = vmatpush2.msra.mxu0 0.0
    %797 = vmatprep.mubr.f32.mxu0 0.0
    %798 = vmatmul.mubr.f32.gmra.mxu0 %v728
    %v799 = vpop.f32.mrf.mxu0
    %v800 = vadd.f32 0.0, %v799
    %v801 = vpop.f32.mrf.mxu0
    %802 = vmatprep.mubr.f32.mxu0 0.0
    %803 = vmatmul.mubr.f32.gmra.mxu0 %v731
    %v804 = vpop.f32.mrf.mxu0
    %v805 = vadd.f32 0.0, %v804
    %v806 = vpop.f32.mrf.mxu0
    %807 = vdwg.mxu0
    %808 = vrot.lane.b32.xlu0 %v188, 104
    %v809 = vpop.permute.xlu0 %808
    %810 = vrot.lane.b32.xlu0 %v193, 104
    %v811 = vpop.permute.xlu0 %810
    %812 = vrot.lane.b32.xlu0 %v188, 72
    %v813 = vpop.permute.xlu0 %812
    %814 = vrot.lane.b32.xlu0 %v193, 72
    %v815 = vpop.permute.xlu0 %814
    %v816 = vsel %vm202, %v809, 0
    %v818 = vsel %vm202, %v811, 0
    %v820 = vsel %vm202, %v813, 0
    %v822 = vsel %vm202, %v815, 0
    %824 = vmatprep.subr.mxu0 0.0
    %825 = vmatpush1.xpose.msra.mxu0 0.0
    %826 = vmatprep.subr.mxu0 0.0
    %827 = vmatpush1.xpose.msra.mxu0 0.0
    %828 = vmatprep.subr.mxu0 0.0
    %829 = vmatpush1.xpose.msra.mxu0 0.0
    %830 = vmatprep.subr.mxu0 0.0
    %831 = vmatpush1.xpose.msra.mxu0 0.0
    %832 = vmatprep.subr.mxu0 0.0
    %833 = vmatpush1.xpose.msra.mxu0 0.0
    %834 = vmatprep.subr.mxu0 0.0
    %835 = vmatpush1.xpose.msra.mxu0 0.0
    %836 = vmatprep.subr.mxu0 0.0
    %837 = vmatpush1.xpose.msra.mxu0 0.0
    %838 = vmatprep.subr.mxu0 0.0
    %839 = vmatpush1.xpose.msra.mxu0 0.0
    %840 = vmatprep.subr.mxu0 0.0
    %841 = vmatpush1.xpose.msra.mxu0 0.0
    %842 = vmatprep.subr.mxu0 0.0
    %843 = vmatpush1.xpose.msra.mxu0 0.0
    %844 = vmatprep.subr.mxu0 0.0
    %845 = vmatpush1.xpose.msra.mxu0 0.0
    %846 = vmatprep.subr.mxu0 0.0
    %847 = vmatpush1.xpose.msra.mxu0 0.0
    %848 = vmatprep.subr.mxu0 0.0
    %849 = vmatpush1.xpose.msra.mxu0 0.0
    %850 = vmatprep.subr.mxu0 0.0
    %851 = vmatpush1.xpose.msra.mxu0 0.0
    %852 = vmatprep.subr.mxu0 0.0
    %853 = vmatpush1.xpose.msra.mxu0 %v822
    %854 = vmatprep.subr.mxu0 0.0
    %855 = vmatpush1.xpose.msra.mxu0 %v820
    %856 = vmatprep.subr.mxu0 0.0
    %857 = vmatpush2.xpose.msra.mxu0 0.0
    %858 = vmatprep.subr.mxu0 0.0
    %859 = vmatpush2.xpose.msra.mxu0 0.0
    %860 = vmatprep.subr.mxu0 0.0
    %861 = vmatpush2.xpose.msra.mxu0 0.0
    %862 = vmatprep.subr.mxu0 0.0
    %863 = vmatpush2.xpose.msra.mxu0 0.0
    %864 = vmatprep.subr.mxu0 0.0
    %865 = vmatpush2.xpose.msra.mxu0 0.0
    %866 = vmatprep.subr.mxu0 0.0
    %867 = vmatpush2.xpose.msra.mxu0 0.0
    %868 = vmatprep.subr.mxu0 0.0
    %869 = vmatpush2.xpose.msra.mxu0 0.0
    %870 = vmatprep.subr.mxu0 0.0
    %871 = vmatpush2.xpose.msra.mxu0 0.0
    %872 = vmatprep.subr.mxu0 0.0
    %873 = vmatpush2.xpose.msra.mxu0 0.0
    %874 = vmatprep.subr.mxu0 0.0
    %875 = vmatpush2.xpose.msra.mxu0 0.0
    %876 = vmatprep.subr.mxu0 0.0
    %877 = vmatpush2.xpose.msra.mxu0 0.0
    %878 = vmatprep.subr.mxu0 0.0
    %879 = vmatpush2.xpose.msra.mxu0 0.0
    %880 = vmatprep.subr.mxu0 0.0
    %881 = vmatpush2.xpose.msra.mxu0 0.0
    %882 = vmatprep.subr.mxu0 0.0
    %883 = vmatpush2.xpose.msra.mxu0 0.0
    %884 = vmatprep.subr.mxu0 0.0
    %885 = vmatpush2.xpose.msra.mxu0 0.0
    %886 = vmatprep.subr.mxu0 0.0
    %887 = vmatpush2.xpose.msra.mxu0 0.0
    %888 = vmatprep.mubr.f32.mxu0 0.0
    %889 = vmatmul.mubr.f32.gmra.mxu0 %v816
    %v890 = vpop.f32.mrf.mxu0
    %v891 = vadd.f32 0.0, %v890
    %v892 = vpop.f32.mrf.mxu0
    %893 = vmatprep.mubr.f32.mxu0 0.0
    %894 = vmatmul.mubr.f32.gmra.mxu0 %v818
    %v895 = vpop.f32.mrf.mxu0
    %v896 = vadd.f32 0.0, %v895
    %v897 = vpop.f32.mrf.mxu0
    %898 = vdwg.mxu0
    %v899 = vmul.f32 %v891, 0.35355338
    %v900 = vmul.f32 %v896, 0.35355338
    %v901 = vadd.f32 %v899, %v62
    %v902 = vadd.f32 %v900, %v63
    %v903 = vsel %vm290, %v901, -inf
    %904 = vmax.xlane.f32.xlu0 %v903
    %v905 = vpop.xlane.xlu0 %904
    %v906 = vsel %vm290, %v902, -inf
    %907 = vmax.xlane.f32.xlu0 %v906
    %v908 = vpop.xlane.xlu0 %907
    %v909 = vsub.f32 %v901, %v905
    %v910 = vsub.f32 %v902, %v908
    %v911 = vmul.f32 %v909, 1.442695
    %v912 = vpow.pop %v911
    %v913 = vmul.f32 %v910, 1.442695
    %v914 = vpow.pop %v913
    %v915 = vsel %vm290, %v912, 0.0
    %916 = vadd.xlane.f32.xlu0 %v915
    %v917 = vpop.xlane.xlu0 %916
    %v918 = vsel %vm290, %v914, 0.0
    %919 = vadd.xlane.f32.xlu0 %v918
    %v920 = vpop.xlane.xlu0 %919
    %v921 = vrcp.pop %v917
    %v922 = vrcp.pop %v920
    %v923 = vmul.f32 %v912, %v921
    %v924 = vmul.f32 %v914, %v922
    %925 = vrot.lane.b32.xlu0 %v188, 40
    %v926 = vpop.permute.xlu0 %925
    %927 = vrot.lane.b32.xlu0 %v193, 40
    %v928 = vpop.permute.xlu0 %927
    %v932 = vsel %vm290, %v923, 0
    %v935 = vsel %vm290, %v924, 0
    %937 = vmatprep.subr.mxu0 0.0
    %938 = vmatpush1.msra.mxu0 0.0
    %939 = vmatprep.subr.mxu0 0.0
    %940 = vmatpush1.msra.mxu0 0.0
    %941 = vmatprep.subr.mxu0 0.0
    %942 = vmatpush1.msra.mxu0 0.0
    %943 = vmatprep.subr.mxu0 0.0
    %944 = vmatpush1.msra.mxu0 0.0
    %945 = vmatprep.subr.mxu0 0.0
    %946 = vmatpush1.msra.mxu0 0.0
    %947 = vmatprep.subr.mxu0 0.0
    %948 = vmatpush1.msra.mxu0 0.0
    %949 = vmatprep.subr.mxu0 0.0
    %950 = vmatpush1.msra.mxu0 0.0
    %951 = vmatprep.subr.mxu0 0.0
    %952 = vmatpush1.msra.mxu0 0.0
    %953 = vmatprep.subr.mxu0 0.0
    %954 = vmatpush1.msra.mxu0 0.0
    %955 = vmatprep.subr.mxu0 0.0
    %956 = vmatpush1.msra.mxu0 0.0
    %957 = vmatprep.subr.mxu0 0.0
    %958 = vmatpush1.msra.mxu0 0.0
    %959 = vmatprep.subr.mxu0 0.0
    %960 = vmatpush1.msra.mxu0 0.0
    %961 = vmatprep.subr.mxu0 0.0
    %962 = vmatpush1.msra.mxu0 0.0
    %963 = vmatprep.subr.mxu0 0.0
    %964 = vmatpush1.msra.mxu0 0.0
    %965 = vmatprep.subr.mxu0 0.0
    %966 = vmatpush1.msra.mxu0 %v928
    %967 = vmatprep.subr.mxu0 0.0
    %968 = vmatpush1.msra.mxu0 %v926
    %969 = vmatprep.subr.mxu0 0.0
    %970 = vmatpush2.msra.mxu0 0.0
    %971 = vmatprep.subr.mxu0 0.0
    %972 = vmatpush2.msra.mxu0 0.0
    %973 = vmatprep.subr.mxu0 0.0
    %974 = vmatpush2.msra.mxu0 0.0
    %975 = vmatprep.subr.mxu0 0.0
    %976 = vmatpush2.msra.mxu0 0.0
    %977 = vmatprep.subr.mxu0 0.0
    %978 = vmatpush2.msra.mxu0 0.0
    %979 = vmatprep.subr.mxu0 0.0
    %980 = vmatpush2.msra.mxu0 0.0
    %981 = vmatprep.subr.mxu0 0.0
    %982 = vmatpush2.msra.mxu0 0.0
    %983 = vmatprep.subr.mxu0 0.0
    %984 = vmatpush2.msra.mxu0 0.0
    %985 = vmatprep.subr.mxu0 0.0
    %986 = vmatpush2.msra.mxu0 0.0
    %987 = vmatprep.subr.mxu0 0.0
    %988 = vmatpush2.msra.mxu0 0.0
    %989 = vmatprep.subr.mxu0 0.0
    %990 = vmatpush2.msra.mxu0 0.0
    %991 = vmatprep.subr.mxu0 0.0
    %992 = vmatpush2.msra.mxu0 0.0
    %993 = vmatprep.subr.mxu0 0.0
    %994 = vmatpush2.msra.mxu0 0.0
    %995 = vmatprep.subr.mxu0 0.0
    %996 = vmatpush2.msra.mxu0 0.0
    %997 = vmatprep.subr.mxu0 0.0
    %998 = vmatpush2.msra.mxu0 0.0
    %999 = vmatprep.subr.mxu0 0.0
    %1000 = vmatpush2.msra.mxu0 0.0
    %1001 = vmatprep.mubr.f32.mxu0 0.0
    %1002 = vmatmul.mubr.f32.gmra.mxu0 %v932
    %v1003 = vpop.f32.mrf.mxu0
    %v1004 = vadd.f32 0.0, %v1003
    %v1005 = vpop.f32.mrf.mxu0
    %1006 = vmatprep.mubr.f32.mxu0 0.0
    %1007 = vmatmul.mubr.f32.gmra.mxu0 %v935
    %v1008 = vpop.f32.mrf.mxu0
    %v1009 = vadd.f32 0.0, %v1008
    %v1010 = vpop.f32.mrf.mxu0
    %1011 = vdwg.mxu0
    %1012 = vrot.lane.b32.xlu0 %v515, 16
    %v1013 = vpop.permute.xlu0 %1012
    %1014 = vrot.lane.b32.xlu0 %v516, 16
    %v1015 = vpop.permute.xlu0 %1014
    %1018 = vrot.lane.b32.xlu0 %v719, 32
    %v1019 = vpop.permute.xlu0 %1018
    %1020 = vrot.lane.b32.xlu0 %v720, 32
    %v1021 = vpop.permute.xlu0 %1020
    %1024 = vrot.lane.b32.xlu0 %v923, 48
    %v1025 = vpop.permute.xlu0 %1024
    %1026 = vrot.lane.b32.xlu0 %v924, 48
    %v1027 = vpop.permute.xlu0 %1026
    %v1030 = vsel %vm290, %v311, %v1013
    %v1031 = vsel %vm290, %v312, %v1015
    %v1032 = vsel %vm66, %v1030, %v1019
    %v1033 = vsel %vm66, %v1031, %v1021
    %vm1034 = vcmask 392192
    %v1035 = vsel %vm1034, %v1032, %v1025
    %v1036 = vsel %vm1034, %v1033, %v1027
    %vm1037 = vcmask 523264
    %1038 = vst.msk [vmem:[#allocation4] sm:$0xff] %vm1037, %v1035
    %1039 = vst.msk [vmem:[#allocation4 + $0x8] sm:$0xff] %vm1037, %v1036
    %1042 = vrot.lane.b32.xlu0 %v596, 8
    %v1043 = vpop.permute.xlu0 %1042
    %1044 = vrot.lane.b32.xlu0 %v601, 8
    %v1045 = vpop.permute.xlu0 %1044
    %1050 = vrot.lane.b32.xlu0 %v800, 16
    %v1051 = vpop.permute.xlu0 %1050
    %1052 = vrot.lane.b32.xlu0 %v805, 16
    %v1053 = vpop.permute.xlu0 %1052
    %1058 = vrot.lane.b32.xlu0 %v1004, 24
    %v1059 = vpop.permute.xlu0 %1058
    %1060 = vrot.lane.b32.xlu0 %v1009, 24
    %v1061 = vpop.permute.xlu0 %1060
    %v1064 = vsel %vm202, %v392, %v1043
    %v1065 = vsel %vm202, %v397, %v1045
    %v1066 = vsel %vm290, %v1064, %v1051
    %v1067 = vsel %vm290, %v1065, %v1053
    %vm1068 = vcmask 195584
    %v1069 = vsel %vm1068, %v1066, %v1059
    %v1070 = vsel %vm1068, %v1067, %v1061
    %v1071 = vld [vmem:[%s6] sm:$0xff]
    %v1072 = vld [vmem:[%s6 + $0x8] sm:$0xff]
    %v1073 = vld [vmem:[%s6 + $0x10] sm:$0xff]
    %v1074 = vld [vmem:[%s6 + $0x18] sm:$0xff]
    %v1076 = vsel %vm66, %v1069, 0
    %v1079 = vsel %vm66, %v1070, 0
    %1081 = vmatprep.subr.mxu0 0.0
    %1082 = vmatpush1.msra.mxu0 0.0
    %1083 = vmatprep.subr.mxu0 0.0
    %1084 = vmatpush1.msra.mxu0 0.0
    %1085 = vmatprep.subr.mxu0 0.0
    %1086 = vmatpush1.msra.mxu0 0.0
    %1087 = vmatprep.subr.mxu0 0.0
    %1088 = vmatpush1.msra.mxu0 0.0
    %1089 = vmatprep.subr.mxu0 0.0
    %1090 = vmatpush1.msra.mxu0 0.0
    %1091 = vmatprep.subr.mxu0 0.0
    %1092 = vmatpush1.msra.mxu0 0.0
    %1093 = vmatprep.subr.mxu0 0.0
    %1094 = vmatpush1.msra.mxu0 0.0
    %1095 = vmatprep.subr.mxu0 0.0
    %1096 = vmatpush1.msra.mxu0 0.0
    %1097 = vmatprep.subr.mxu0 0.0
    %1098 = vmatpush1.msra.mxu0 0.0
    %1099 = vmatprep.subr.mxu0 0.0
    %1100 = vmatpush1.msra.mxu0 0.0
    %1101 = vmatprep.subr.mxu0 0.0
    %1102 = vmatpush1.msra.mxu0 0.0
    %1103 = vmatprep.subr.mxu0 0.0
    %1104 = vmatpush1.msra.mxu0 0.0
    %1105 = vmatprep.subr.mxu0 0.0
    %1106 = vmatpush1.msra.mxu0 %v1074
    %1107 = vmatprep.subr.mxu0 0.0
    %1108 = vmatpush1.msra.mxu0 %v1073
    %1109 = vmatprep.subr.mxu0 0.0
    %1110 = vmatpush1.msra.mxu0 %v1072
    %1111 = vmatprep.subr.mxu0 0.0
    %1112 = vmatpush1.msra.mxu0 %v1071
    %1113 = vmatprep.subr.mxu0 0.0
    %1114 = vmatpush2.msra.mxu0 0.0
    %1115 = vmatprep.subr.mxu0 0.0
    %1116 = vmatpush2.msra.mxu0 0.0
    %1117 = vmatprep.subr.mxu0 0.0
    %1118 = vmatpush2.msra.mxu0 0.0
    %1119 = vmatprep.subr.mxu0 0.0
    %1120 = vmatpush2.msra.mxu0 0.0
    %1121 = vmatprep.subr.mxu0 0.0
    %1122 = vmatpush2.msra.mxu0 0.0
    %1123 = vmatprep.subr.mxu0 0.0
    %1124 = vmatpush2.msra.mxu0 0.0
    %1125 = vmatprep.subr.mxu0 0.0
    %1126 = vmatpush2.msra.mxu0 0.0
    %1127 = vmatprep.subr.mxu0 0.0
    %1128 = vmatpush2.msra.mxu0 0.0
    %1129 = vmatprep.subr.mxu0 0.0
    %1130 = vmatpush2.msra.mxu0 0.0
    %1131 = vmatprep.subr.mxu0 0.0
    %1132 = vmatpush2.msra.mxu0 0.0
    %1133 = vmatprep.subr.mxu0 0.0
    %1134 = vmatpush2.msra.mxu0 0.0
    %1135 = vmatprep.subr.mxu0 0.0
    %1136 = vmatpush2.msra.mxu0 0.0
    %1137 = vmatprep.subr.mxu0 0.0
    %1138 = vmatpush2.msra.mxu0 0.0
    %1139 = vmatprep.subr.mxu0 0.0
    %1140 = vmatpush2.msra.mxu0 0.0
    %1141 = vmatprep.subr.mxu0 0.0
    %1142 = vmatpush2.msra.mxu0 0.0
    %1143 = vmatprep.subr.mxu0 0.0
    %1144 = vmatpush2.msra.mxu0 0.0
    %1145 = vmatprep.mubr.f32.mxu0 0.0
    %1146 = vmatmul.mubr.f32.gmra.mxu0 %v1076
    %v1147 = vpop.f32.mrf.mxu0
    %v1148 = vadd.f32 0.0, %v1147
    %v1149 = vpop.f32.mrf.mxu0
    %1150 = vmatprep.mubr.f32.mxu0 0.0
    %1151 = vmatmul.mubr.f32.gmra.mxu0 %v1079
    %v1152 = vpop.f32.mrf.mxu0
    %v1153 = vadd.f32 0.0, %v1152
    %v1154 = vpop.f32.mrf.mxu0
    %1155 = vdwg.mxu0
    %v1156 = vadd.f32 %v60, %v1148
    %v1157 = vadd.f32 %v61, %v1153
    %v1158 = vld [vmem:[%s7] sm:$0x1]
    %v1159 = vlaneseq
    %v1160 = vshrl.u32 %v1159, 7
    %v1161 = vsub.s32 0, %v1160
    %v1162 = vrot.slane %v1158, %v1161
    %v1163 = vadd.f32 %v1156, %v1162
    %v1164 = vadd.f32 %v1157, %v1162
    %v1165 = vld [vmem:[%s8] sm:$0x1]
    %v1166 = vld [vmem:[%s9] sm:$0x1]
    %v1167 = vsel %vm66, %v1163, 0.0
    %1168 = vadd.xlane.f32.xlu0 %v1167
    %v1169 = vpop.xlane.xlu0 %1168
    %v1170 = vsel %vm66, %v1164, 0.0
    %1171 = vadd.xlane.f32.xlu0 %v1170
    %v1172 = vpop.xlane.xlu0 %1171
    %v1173 = vmul.f32 %v1169, %v73
    %v1174 = vmul.f32 %v1172, %v73
    %v1175 = vsub.f32 %v1163, %v1173
    %v1176 = vsub.f32 %v1164, %v1174
    %v1177 = vmul.f32 %v1175, %v1175
    %v1178 = vmul.f32 %v1176, %v1176
    %v1179 = vsel %vm66, %v1177, 0.0
    %1180 = vadd.xlane.f32.xlu0 %v1179
    %v1181 = vpop.xlane.xlu0 %1180
    %v1182 = vsel %vm66, %v1178, 0.0
    %1183 = vadd.xlane.f32.xlu0 %v1182
    %v1184 = vpop.xlane.xlu0 %1183
    %v1185 = vmul.f32 %v1181, %v73
    %v1186 = vmul.f32 %v1184, %v73
    %v1187 = vadd.f32 %v1185, 1e-05
    %v1188 = vadd.f32 %v1186, 1e-05
    %v1189 = vrsqrt.pop %v1187
    %v1190 = vrsqrt.pop %v1188
    %v1191 = vmul.f32 %v1175, %v1189
    %v1192 = vmul.f32 %v1176, %v1190
    %v1193 = vlaneseq
    %v1194 = vshrl.u32 %v1193, 7
    %v1195 = vsub.s32 0, %v1194
    %v1196 = vrot.slane %v1165, %v1195
    %v1197 = vmul.f32 %v1191, %v1196
    %v1198 = vmul.f32 %v1192, %v1196
    %v1199 = vlaneseq
    %v1200 = vshrl.u32 %v1199, 7
    %v1201 = vsub.s32 0, %v1200
    %v1202 = vrot.slane %v1166, %v1201
    %v1203 = vadd.f32 %v1197, %v1202
    %v1204 = vadd.f32 %v1198, %v1202
    %v1205 = vld [vmem:[%s10] sm:$0xff]
    %v1206 = vld [vmem:[%s10 + $0x8] sm:$0xff]
    %v1207 = vld [vmem:[%s10 + $0x10] sm:$0xff]
    %v1208 = vld [vmem:[%s10 + $0x18] sm:$0xff]
    %v1209 = vld [vmem:[%s11] sm:$0x1]
    %v1210 = vlaneseq
    %v1211 = vshrl.u32 %v1210, 7
    %v1212 = vsub.s32 0, %v1211
    %v1213 = vrot.slane %v1209, %v1212
    %v1215 = vsel %vm66, %v1203, 0
    %v1218 = vsel %vm66, %v1204, 0
    %1220 = vmatprep.subr.mxu0 0.0
    %1221 = vmatpush1.msra.mxu0 0.0
    %1222 = vmatprep.subr.mxu0 0.0
    %1223 = vmatpush1.msra.mxu0 0.0
    %1224 = vmatprep.subr.mxu0 0.0
    %1225 = vmatpush1.msra.mxu0 0.0
    %1226 = vmatprep.subr.mxu0 0.0
    %1227 = vmatpush1.msra.mxu0 0.0
    %1228 = vmatprep.subr.mxu0 0.0
    %1229 = vmatpush1.msra.mxu0 0.0
    %1230 = vmatprep.subr.mxu0 0.0
    %1231 = vmatpush1.msra.mxu0 0.0
    %1232 = vmatprep.subr.mxu0 0.0
    %1233 = vmatpush1.msra.mxu0 0.0
    %1234 = vmatprep.subr.mxu0 0.0
    %1235 = vmatpush1.msra.mxu0 0.0
    %1236 = vmatprep.subr.mxu0 0.0
    %1237 = vmatpush1.msra.mxu0 0.0
    %1238 = vmatprep.subr.mxu0 0.0
    %1239 = vmatpush1.msra.mxu0 0.0
    %1240 = vmatprep.subr.mxu0 0.0
    %1241 = vmatpush1.msra.mxu0 0.0
    %1242 = vmatprep.subr.mxu0 0.0
    %1243 = vmatpush1.msra.mxu0 0.0
    %1244 = vmatprep.subr.mxu0 0.0
    %1245 = vmatpush1.msra.mxu0 %v1208
    %1246 = vmatprep.subr.mxu0 0.0
    %1247 = vmatpush1.msra.mxu0 %v1207
    %1248 = vmatprep.subr.mxu0 0.0
    %1249 = vmatpush1.msra.mxu0 %v1206
    %1250 = vmatprep.subr.mxu0 0.0
    %1251 = vmatpush1.msra.mxu0 %v1205
    %1252 = vmatprep.subr.mxu0 0.0
    %1253 = vmatpush2.msra.mxu0 0.0
    %1254 = vmatprep.subr.mxu0 0.0
    %1255 = vmatpush2.msra.mxu0 0.0
    %1256 = vmatprep.subr.mxu0 0.0
    %1257 = vmatpush2.msra.mxu0 0.0
    %1258 = vmatprep.subr.mxu0 0.0
    %1259 = vmatpush2.msra.mxu0 0.0
    %1260 = vmatprep.subr.mxu0 0.0
    %1261 = vmatpush2.msra.mxu0 0.0
    %1262 = vmatprep.subr.mxu0 0.0
    %1263 = vmatpush2.msra.mxu0 0.0
    %1264 = vmatprep.subr.mxu0 0.0
    %1265 = vmatpush2.msra.mxu0 0.0
    %1266 = vmatprep.subr.mxu0 0.0
    %1267 = vmatpush2.msra.mxu0 0.0
    %1268 = vmatprep.subr.mxu0 0.0
    %1269 = vmatpush2.msra.mxu0 0.0
    %1270 = vmatprep.subr.mxu0 0.0
    %1271 = vmatpush2.msra.mxu0 0.0
    %1272 = vmatprep.subr.mxu0 0.0
    %1273 = vmatpush2.msra.mxu0 0.0
    %1274 = vmatprep.subr.mxu0 0.0
    %1275 = vmatpush2.msra.mxu0 0.0
    %1276 = vmatprep.subr.mxu0 0.0
    %1277 = vmatpush2.msra.mxu0 0.0
    %1278 = vmatprep.subr.mxu0 0.0
    %1279 = vmatpush2.msra.mxu0 0.0
    %1280 = vmatprep.subr.mxu0 0.0
    %1281 = vmatpush2.msra.mxu0 0.0
    %1282 = vmatprep.subr.mxu0 0.0
    %1283 = vmatpush2.msra.mxu0 0.0
    %1284 = vmatprep.mubr.f32.mxu0 0.0
    %1285 = vmatmul.mubr.f32.gmra.mxu0 %v1215
    %v1286 = vpop.f32.mrf.mxu0
    %v1287 = vadd.f32 %v1213, %v1286
    %v1288 = vpop.f32.mrf.mxu0
    %1289 = vmatprep.mubr.f32.mxu0 0.0
    %1290 = vmatmul.mubr.f32.gmra.mxu0 %v1218
    %v1291 = vpop.f32.mrf.mxu0
    %v1292 = vadd.f32 %v1213, %v1291
    %v1293 = vpop.f32.mrf.mxu0
    %1294 = vdwg.mxu0
    %v1295 = vmul.f32 %v1287, 0.5
    %v1296 = vmul.f32 %v1292, 0.5
    %v1297 = vmul.f32 %v1287, 0.044715
    %v1298 = vmul.f32 %v1292, 0.044715
    %v1299 = vmul.f32 %v1297, %v1287
    %v1300 = vmul.f32 %v1298, %v1292
    %v1301 = vmul.f32 %v1299, %v1287
    %v1302 = vmul.f32 %v1300, %v1292
    %v1303 = vadd.f32 %v1287, %v1301
    %v1304 = vadd.f32 %v1292, %v1302
    %v1305 = vmul.f32 %v1303, 0.7978846
    %v1306 = vmul.f32 %v1304, 0.7978846
    %v1307 = vtanh.pop %v1305
    %v1308 = vtanh.pop %v1306
    %v1309 = vadd.f32 %v1307, 1.0
    %v1310 = vadd.f32 %v1308, 1.0
    %v1311 = vmul.f32 %v1295, %v1309
    %v1312 = vmul.f32 %v1296, %v1310
    %v1313 = vld [vmem:[%s12] sm:$0xff]
    %v1314 = vld [vmem:[%s12 + $0x8] sm:$0xff]
    %v1315 = vld [vmem:[%s12 + $0x10] sm:$0xff]
    %v1316 = vld [vmem:[%s12 + $0x18] sm:$0xff]
    %v1317 = vld [vmem:[%s12 + $0x20] sm:$0xff]
    %v1318 = vld [vmem:[%s12 + $0x28] sm:$0xff]
    %v1319 = vld [vmem:[%s12 + $0x30] sm:$0xff]
    %v1320 = vld [vmem:[%s12 + $0x38] sm:$0xff]
    %v1321 = vld [vmem:[%s12 + $0x40] sm:$0xff]
    %v1322 = vld [vmem:[%s12 + $0x48] sm:$0xff]
    %v1323 = vld [vmem:[%s12 + $0x50] sm:$0xff]
    %v1324 = vld [vmem:[%s12 + $0x58] sm:$0xff]
    %v1325 = vld [vmem:[%s12 + $0x60] sm:$0xff]
    %v1326 = vld [vmem:[%s12 + $0x68] sm:$0xff]
    %v1327 = vld [vmem:[%s12 + $0x70] sm:$0xff]
    %v1328 = vld [vmem:[%s12 + $0x78] sm:$0xff]
    %1329 = vmatprep.subr.mxu0 0.0
    %1330 = vmatpush1.msra.mxu0 %v1328
    %1331 = vmatprep.subr.mxu0 0.0
    %1332 = vmatpush1.msra.mxu0 %v1327
    %1333 = vmatprep.subr.mxu0 0.0
    %1334 = vmatpush1.msra.mxu0 %v1326
    %1335 = vmatprep.subr.mxu0 0.0
    %1336 = vmatpush1.msra.mxu0 %v1325
    %1337 = vmatprep.subr.mxu0 0.0
    %1338 = vmatpush1.msra.mxu0 %v1324
    %1339 = vmatprep.subr.mxu0 0.0
    %1340 = vmatpush1.msra.mxu0 %v1323
    %1341 = vmatprep.subr.mxu0 0.0
    %1342 = vmatpush1.msra.mxu0 %v1322
    %1343 = vmatprep.subr.mxu0 0.0
    %1344 = vmatpush1.msra.mxu0 %v1321
    %1345 = vmatprep.subr.mxu0 0.0
    %1346 = vmatpush1.msra.mxu0 %v1320
    %1347 = vmatprep.subr.mxu0 0.0
    %1348 = vmatpush1.msra.mxu0 %v1319
    %1349 = vmatprep.subr.mxu0 0.0
    %1350 = vmatpush1.msra.mxu0 %v1318
    %1351 = vmatprep.subr.mxu0 0.0
    %1352 = vmatpush1.msra.mxu0 %v1317
    %1353 = vmatprep.subr.mxu0 0.0
    %1354 = vmatpush1.msra.mxu0 %v1316
    %1355 = vmatprep.subr.mxu0 0.0
    %1356 = vmatpush1.msra.mxu0 %v1315
    %1357 = vmatprep.subr.mxu0 0.0
    %1358 = vmatpush1.msra.mxu0 %v1314
    %1359 = vmatprep.subr.mxu0 0.0
    %1360 = vmatpush1.msra.mxu0 %v1313
    %1361 = vmatprep.subr.mxu0 0.0
    %1362 = vmatpush2.msra.mxu0 0.0
    %1363 = vmatprep.subr.mxu0 0.0
    %1364 = vmatpush2.msra.mxu0 0.0
    %1365 = vmatprep.subr.mxu0 0.0
    %1366 = vmatpush2.msra.mxu0 0.0
    %1367 = vmatprep.subr.mxu0 0.0
    %1368 = vmatpush2.msra.mxu0 0.0
    %1369 = vmatprep.subr.mxu0 0.0
    %1370 = vmatpush2.msra.mxu0 0.0
    %1371 = vmatprep.subr.mxu0 0.0
    %1372 = vmatpush2.msra.mxu0 0.0
    %1373 = vmatprep.subr.mxu0 0.0
    %1374 = vmatpush2.msra.mxu0 0.0
    %1375 = vmatprep.subr.mxu0 0.0
    %1376 = vmatpush2.msra.mxu0 0.0
    %1377 = vmatprep.subr.mxu0 0.0
    %1378 = vmatpush2.msra.mxu0 0.0
    %1379 = vmatprep.subr.mxu0 0.0
    %1380 = vmatpush2.msra.mxu0 0.0
    %1381 = vmatprep.subr.mxu0 0.0
    %1382 = vmatpush2.msra.mxu0 0.0
    %1383 = vmatprep.subr.mxu0 0.0
    %1384 = vmatpush2.msra.mxu0 0.0
    %1385 = vmatprep.subr.mxu0 0.0
    %1386 = vmatpush2.msra.mxu0 0.0
    %1387 = vmatprep.subr.mxu0 0.0
    %1388 = vmatpush2.msra.mxu0 0.0
    %1389 = vmatprep.subr.mxu0 0.0
    %1390 = vmatpush2.msra.mxu0 0.0
    %1391 = vmatprep.subr.mxu0 0.0
    %1392 = vmatpush2.msra.mxu0 0.0
    %1393 = vmatprep.mubr.f32.mxu0 0.0
    %1394 = vmatmul.mubr.f32.gmra.mxu0 %v1311
    %v1395 = vpop.f32.mrf.mxu0
    %v1396 = vadd.f32 0.0, %v1395
    %v1397 = vpop.f32.mrf.mxu0
    %1398 = vmatprep.mubr.f32.mxu0 0.0
    %1399 = vmatmul.mubr.f32.gmra.mxu0 %v1312
    %v1400 = vpop.f32.mrf.mxu0
    %v1401 = vadd.f32 0.0, %v1400
    %v1402 = vpop.f32.mrf.mxu0
    %1403 = vdwg.mxu0
    %v1404 = vadd.f32 %v1163, %v1396
    %v1405 = vadd.f32 %v1164, %v1401
    %v1406 = vld [vmem:[%s13] sm:$0x1]
    %v1407 = vlaneseq
    %v1408 = vshrl.u32 %v1407, 7
    %v1409 = vsub.s32 0, %v1408
    %v1410 = vrot.slane %v1406, %v1409
    %v1411 = vadd.f32 %v1404, %v1410
    %v1412 = vadd.f32 %v1405, %v1410
    %v1413 = vld [vmem:[%s2 + $0x1] sm:$0x1]
    %v1414 = vld [vmem:[%s3 + $0x1] sm:$0x1]
    %v1415 = vsel %vm66, %v1411, 0.0
    %1416 = vadd.xlane.f32.xlu0 %v1415
    %v1417 = vpop.xlane.xlu0 %1416
    %v1418 = vsel %vm66, %v1412, 0.0
    %1419 = vadd.xlane.f32.xlu0 %v1418
    %v1420 = vpop.xlane.xlu0 %1419
    %v1421 = vmul.f32 %v1417, %v73
    %v1422 = vmul.f32 %v1420, %v73
    %v1423 = vsub.f32 %v1411, %v1421
    %v1424 = vsub.f32 %v1412, %v1422
    %v1425 = vmul.f32 %v1423, %v1423
    %v1426 = vmul.f32 %v1424, %v1424
    %v1427 = vsel %vm66, %v1425, 0.0
    %1428 = vadd.xlane.f32.xlu0 %v1427
    %v1429 = vpop.xlane.xlu0 %1428
    %v1430 = vsel %vm66, %v1426, 0.0
    %1431 = vadd.xlane.f32.xlu0 %v1430
    %v1432 = vpop.xlane.xlu0 %1431
    %v1433 = vmul.f32 %v1429, %v73
    %v1434 = vmul.f32 %v1432, %v73
    %v1435 = vadd.f32 %v1433, 1e-05
    %v1436 = vadd.f32 %v1434, 1e-05
    %v1437 = vrsqrt.pop %v1435
    %v1438 = vrsqrt.pop %v1436
    %v1439 = vmul.f32 %v1423, %v1437
    %v1440 = vmul.f32 %v1424, %v1438
    %v1441 = vlaneseq
    %v1442 = vshrl.u32 %v1441, 7
    %v1443 = vsub.s32 0, %v1442
    %v1444 = vrot.slane %v1413, %v1443
    %v1445 = vmul.f32 %v1439, %v1444
    %v1446 = vmul.f32 %v1440, %v1444
    %v1447 = vlaneseq
    %v1448 = vshrl.u32 %v1447, 7
    %v1449 = vsub.s32 0, %v1448
    %v1450 = vrot.slane %v1414, %v1449
    %v1451 = vadd.f32 %v1445, %v1450
    %v1452 = vadd.f32 %v1446, %v1450
    %s1453 = scalar_lea.vmem %s4, 32
    %v1454 = vld [vmem:[%s1453] sm:$0xff]
    %v1455 = vld [vmem:[%s1453 + $0x8] sm:$0xff]
    %v1456 = vld [vmem:[%s1453 + $0x10] sm:$0xff]
    %v1457 = vld [vmem:[%s1453 + $0x18] sm:$0xff]
    %v1458 = vld [vmem:[%s5 + $0x1] sm:$0x1]
    %v1459 = vlaneseq
    %v1460 = vshrl.u32 %v1459, 7
    %v1461 = vsub.s32 0, %v1460
    %v1462 = vrot.slane %v1458, %v1461
    %v1464 = vsel %vm66, %v1451, 0
    %v1467 = vsel %vm66, %v1452, 0
    %1469 = vmatprep.subr.mxu0 0.0
    %1470 = vmatpush1.msra.mxu0 0.0
    %1471 = vmatprep.subr.mxu0 0.0
    %1472 = vmatpush1.msra.mxu0 0.0
    %1473 = vmatprep.subr.mxu0 0.0
    %1474 = vmatpush1.msra.mxu0 0.0
    %1475 = vmatprep.subr.mxu0 0.0
    %1476 = vmatpush1.msra.mxu0 0.0
    %1477 = vmatprep.subr.mxu0 0.0
    %1478 = vmatpush1.msra.mxu0 0.0
    %1479 = vmatprep.subr.mxu0 0.0
    %1480 = vmatpush1.msra.mxu0 0.0
    %1481 = vmatprep.subr.mxu0 0.0
    %1482 = vmatpush1.msra.mxu0 0.0
    %1483 = vmatprep.subr.mxu0 0.0
    %1484 = vmatpush1.msra.mxu0 0.0
    %1485 = vmatprep.subr.mxu0 0.0
    %1486 = vmatpush1.msra.mxu0 0.0
    %1487 = vmatprep.subr.mxu0 0.0
    %1488 = vmatpush1.msra.mxu0 0.0
    %1489 = vmatprep.subr.mxu0 0.0
    %1490 = vmatpush1.msra.mxu0 0.0
    %1491 = vmatprep.subr.mxu0 0.0
    %1492 = vmatpush1.msra.mxu0 0.0
    %1493 = vmatprep.subr.mxu0 0.0
    %1494 = vmatpush1.msra.mxu0 %v1457
    %1495 = vmatprep.subr.mxu0 0.0
    %1496 = vmatpush1.msra.mxu0 %v1456
    %1497 = vmatprep.subr.mxu0 0.0
    %1498 = vmatpush1.msra.mxu0 %v1455
    %1499 = vmatprep.subr.mxu0 0.0
    %1500 = vmatpush1.msra.mxu0 %v1454
    %1501 = vmatprep.subr.mxu0 0.0
    %1502 = vmatpush2.msra.mxu0 0.0
    %1503 = vmatprep.subr.mxu0 0.0
    %1504 = vmatpush2.msra.mxu0 0.0
    %1505 = vmatprep.subr.mxu0 0.0
    %1506 = vmatpush2.msra.mxu0 0.0
    %1507 = vmatprep.subr.mxu0 0.0
    %1508 = vmatpush2.msra.mxu0 0.0
    %1509 = vmatprep.subr.mxu0 0.0
    %1510 = vmatpush2.msra.mxu0 0.0
    %1511 = vmatprep.subr.mxu0 0.0
    %1512 = vmatpush2.msra.mxu0 0.0
    %1513 = vmatprep.subr.mxu0 0.0
    %1514 = vmatpush2.msra.mxu0 0.0
    %1515 = vmatprep.subr.mxu0 0.0
    %1516 = vmatpush2.msra.mxu0 0.0
    %1517 = vmatprep.subr.mxu0 0.0
    %1518 = vmatpush2.msra.mxu0 0.0
    %1519 = vmatprep.subr.mxu0 0.0
    %1520 = vmatpush2.msra.mxu0 0.0
    %1521 = vmatprep.subr.mxu0 0.0
    %1522 = vmatpush2.msra.mxu0 0.0
    %1523 = vmatprep.subr.mxu0 0.0
    %1524 = vmatpush2.msra.mxu0 0.0
    %1525 = vmatprep.subr.mxu0 0.0
    %1526 = vmatpush2.msra.mxu0 0.0
    %1527 = vmatprep.subr.mxu0 0.0
    %1528 = vmatpush2.msra.mxu0 0.0
    %1529 = vmatprep.subr.mxu0 0.0
    %1530 = vmatpush2.msra.mxu0 0.0
    %1531 = vmatprep.subr.mxu0 0.0
    %1532 = vmatpush2.msra.mxu0 0.0
    %1533 = vmatprep.mubr.f32.mxu0 0.0
    %1534 = vmatmul.mubr.f32.gmra.mxu0 %v1464
    %v1535 = vpop.f32.mrf.mxu0
    %v1536 = vadd.f32 %v1462, %v1535
    %v1537 = vpop.f32.mrf.mxu0
    %1538 = vmatprep.mubr.f32.mxu0 0.0
    %1539 = vmatmul.mubr.f32.gmra.mxu0 %v1467
    %v1540 = vpop.f32.mrf.mxu0
    %v1541 = vadd.f32 %v1462, %v1540
    %v1542 = vpop.f32.mrf.mxu0
    %1543 = vdwg.mxu0
    %1546 = vrot.lane.b32.xlu0 %v1536, 96
    %v1547 = vpop.permute.xlu0 %1546
    %1548 = vrot.lane.b32.xlu0 %v1541, 96
    %v1549 = vpop.permute.xlu0 %1548
    %v1550 = vsel %vm202, %v1536, 0
    %v1552 = vsel %vm202, %v1541, 0
    %v1554 = vsel %vm202, %v1547, 0
    %v1556 = vsel %vm202, %v1549, 0
    %1558 = vmatprep.subr.mxu0 0.0
    %1559 = vmatpush1.xpose.msra.mxu0 0.0
    %1560 = vmatprep.subr.mxu0 0.0
    %1561 = vmatpush1.xpose.msra.mxu0 0.0
    %1562 = vmatprep.subr.mxu0 0.0
    %1563 = vmatpush1.xpose.msra.mxu0 0.0
    %1564 = vmatprep.subr.mxu0 0.0
    %1565 = vmatpush1.xpose.msra.mxu0 0.0
    %1566 = vmatprep.subr.mxu0 0.0
    %1567 = vmatpush1.xpose.msra.mxu0 0.0
    %1568 = vmatprep.subr.mxu0 0.0
    %1569 = vmatpush1.xpose.msra.mxu0 0.0
    %1570 = vmatprep.subr.mxu0 0.0
    %1571 = vmatpush1.xpose.msra.mxu0 0.0
    %1572 = vmatprep.subr.mxu0 0.0
    %1573 = vmatpush1.xpose.msra.mxu0 0.0
    %1574 = vmatprep.subr.mxu0 0.0
    %1575 = vmatpush1.xpose.msra.mxu0 0.0
    %1576 = vmatprep.subr.mxu0 0.0
    %1577 = vmatpush1.xpose.msra.mxu0 0.0
    %1578 = vmatprep.subr.mxu0 0.0
    %1579 = vmatpush1.xpose.msra.mxu0 0.0
    %1580 = vmatprep.subr.mxu0 0.0
    %1581 = vmatpush1.xpose.msra.mxu0 0.0
    %1582 = vmatprep.subr.mxu0 0.0
    %1583 = vmatpush1.xpose.msra.mxu0 0.0
    %1584 = vmatprep.subr.mxu0 0.0
    %1585 = vmatpush1.xpose.msra.mxu0 0.0
    %1586 = vmatprep.subr.mxu0 0.0
    %1587 = vmatpush1.xpose.msra.mxu0 %v1556
    %1588 = vmatprep.subr.mxu0 0.0
    %1589 = vmatpush1.xpose.msra.mxu0 %v1554
    %1590 = vmatprep.subr.mxu0 0.0
    %1591 = vmatpush2.xpose.msra.mxu0 0.0
    %1592 = vmatprep.subr.mxu0 0.0
    %1593 = vmatpush2.xpose.msra.mxu0 0.0
    %1594 = vmatprep.subr.mxu0 0.0
    %1595 = vmatpush2.xpose.msra.mxu0 0.0
    %1596 = vmatprep.subr.mxu0 0.0
    %1597 = vmatpush2.xpose.msra.mxu0 0.0
    %1598 = vmatprep.subr.mxu0 0.0
    %1599 = vmatpush2.xpose.msra.mxu0 0.0
    %1600 = vmatprep.subr.mxu0 0.0
    %1601 = vmatpush2.xpose.msra.mxu0 0.0
    %1602 = vmatprep.subr.mxu0 0.0
    %1603 = vmatpush2.xpose.msra.mxu0 0.0
    %1604 = vmatprep.subr.mxu0 0.0
    %1605 = vmatpush2.xpose.msra.mxu0 0.0
    %1606 = vmatprep.subr.mxu0 0.0
    %1607 = vmatpush2.xpose.msra.mxu0 0.0
    %1608 = vmatprep.subr.mxu0 0.0
    %1609 = vmatpush2.xpose.msra.mxu0 0.0
    %1610 = vmatprep.subr.mxu0 0.0
    %1611 = vmatpush2.xpose.msra.mxu0 0.0
    %1612 = vmatprep.subr.mxu0 0.0
    %1613 = vmatpush2.xpose.msra.mxu0 0.0
    %1614 = vmatprep.subr.mxu0 0.0
    %1615 = vmatpush2.xpose.msra.mxu0 0.0
    %1616 = vmatprep.subr.mxu0 0.0
    %1617 = vmatpush2.xpose.msra.mxu0 0.0
    %1618 = vmatprep.subr.mxu0 0.0
    %1619 = vmatpush2.xpose.msra.mxu0 0.0
    %1620 = vmatprep.subr.mxu0 0.0
    %1621 = vmatpush2.xpose.msra.mxu0 0.0
    %1622 = vmatprep.mubr.f32.mxu0 0.0
    %1623 = vmatmul.mubr.f32.gmra.mxu0 %v1550
    %v1624 = vpop.f32.mrf.mxu0
    %v1625 = vadd.f32 0.0, %v1624
    %v1626 = vpop.f32.mrf.mxu0
    %1627 = vmatprep.mubr.f32.mxu0 0.0
    %1628 = vmatmul.mubr.f32.gmra.mxu0 %v1552
    %v1629 = vpop.f32.mrf.mxu0
    %v1630 = vadd.f32 0.0, %v1629
    %v1631 = vpop.f32.mrf.mxu0
    %1632 = vdwg.mxu0
    %v1633 = vmul.f32 %v1625, 0.35355338
    %v1634 = vmul.f32 %v1630, 0.35355338
    %v1635 = vadd.f32 %v1633, %v62
    %v1636 = vadd.f32 %v1634, %v63
    %v1637 = vsel %vm290, %v1635, -inf
    %1638 = vmax.xlane.f32.xlu0 %v1637
    %v1639 = vpop.xlane.xlu0 %1638
    %v1640 = vsel %vm290, %v1636, -inf
    %1641 = vmax.xlane.f32.xlu0 %v1640
    %v1642 = vpop.xlane.xlu0 %1641
    %v1643 = vsub.f32 %v1635, %v1639
    %v1644 = vsub.f32 %v1636, %v1642
    %v1645 = vmul.f32 %v1643, 1.442695
    %v1646 = vpow.pop %v1645
    %v1647 = vmul.f32 %v1644, 1.442695
    %v1648 = vpow.pop %v1647
    %v1649 = vsel %vm290, %v1646, 0.0
    %1650 = vadd.xlane.f32.xlu0 %v1649
    %v1651 = vpop.xlane.xlu0 %1650
    %v1652 = vsel %vm290, %v1648, 0.0
    %1653 = vadd.xlane.f32.xlu0 %v1652
    %v1654 = vpop.xlane.xlu0 %1653
    %v1655 = vrcp.pop %v1651
    %v1656 = vrcp.pop %v1654
    %v1657 = vmul.f32 %v1646, %v1655
    %v1658 = vmul.f32 %v1648, %v1656
    %1659 = vrot.lane.b32.xlu0 %v1536, 64
    %v1660 = vpop.permute.xlu0 %1659
    %1661 = vrot.lane.b32.xlu0 %v1541, 64
    %v1662 = vpop.permute.xlu0 %1661
    %v1666 = vsel %vm290, %v1657, 0
    %v1669 = vsel %vm290, %v1658, 0
    %1671 = vmatprep.subr.mxu0 0.0
    %1672 = vmatpush1.msra.mxu0 0.0
    %1673 = vmatprep.subr.mxu0 0.0
    %1674 = vmatpush1.msra.mxu0 0.0
    %1675 = vmatprep.subr.mxu0 0.0
    %1676 = vmatpush1.msra.mxu0 0.0
    %1677 = vmatprep.subr.mxu0 0.0
    %1678 = vmatpush1.msra.mxu0 0.0
    %1679 = vmatprep.subr.mxu0 0.0
    %1680 = vmatpush1.msra.mxu0 0.0
    %1681 = vmatprep.subr.mxu0 0.0
    %1682 = vmatpush1.msra.mxu0 0.0
    %1683 = vmatprep.subr.mxu0 0.0
    %1684 = vmatpush1.msra.mxu0 0.0
    %1685 = vmatprep.subr.mxu0 0.0
    %1686 = vmatpush1.msra.mxu0 0.0
    %1687 = vmatprep.subr.mxu0 0.0
    %1688 = vmatpush1.msra.mxu0 0.0
    %1689 = vmatprep.subr.mxu0 0.0
    %1690 = vmatpush1.msra.mxu0 0.0
    %1691 = vmatprep.subr.mxu0 0.0
    %1692 = vmatpush1.msra.mxu0 0.0
    %1693 = vmatprep.subr.mxu0 0.0
    %1694 = vmatpush1.msra.mxu0 0.0
    %1695 = vmatprep.subr.mxu0 0.0
    %1696 = vmatpush1.msra.mxu0 0.0
    %1697 = vmatprep.subr.mxu0 0.0
    %1698 = vmatpush1.msra.mxu0 0.0
    %1699 = vmatprep.subr.mxu0 0.0
    %1700 = vmatpush1.msra.mxu0 %v1662
    %1701 = vmatprep.subr.mxu0 0.0
    %1702 = vmatpush1.msra.mxu0 %v1660
    %1703 = vmatprep.subr.mxu0 0.0
    %1704 = vmatpush2.msra.mxu0 0.0
    %1705 = vmatprep.subr.mxu0 0.0
    %1706 = vmatpush2.msra.mxu0 0.0
    %1707 = vmatprep.subr.mxu0 0.0
    %1708 = vmatpush2.msra.mxu0 0.0
    %1709 = vmatprep.subr.mxu0 0.0
    %1710 = vmatpush2.msra.mxu0 0.0
    %1711 = vmatprep.subr.mxu0 0.0
    %1712 = vmatpush2.msra.mxu0 0.0
    %1713 = vmatprep.subr.mxu0 0.0
    %1714 = vmatpush2.msra.mxu0 0.0
    %1715 = vmatprep.subr.mxu0 0.0
    %1716 = vmatpush2.msra.mxu0 0.0
    %1717 = vmatprep.subr.mxu0 0.0
    %1718 = vmatpush2.msra.mxu0 0.0
    %1719 = vmatprep.subr.mxu0 0.0
    %1720 = vmatpush2.msra.mxu0 0.0
    %1721 = vmatprep.subr.mxu0 0.0
    %1722 = vmatpush2.msra.mxu0 0.0
    %1723 = vmatprep.subr.mxu0 0.0
    %1724 = vmatpush2.msra.mxu0 0.0
    %1725 = vmatprep.subr.mxu0 0.0
    %1726 = vmatpush2.msra.mxu0 0.0
    %1727 = vmatprep.subr.mxu0 0.0
    %1728 = vmatpush2.msra.mxu0 0.0
    %1729 = vmatprep.subr.mxu0 0.0
    %1730 = vmatpush2.msra.mxu0 0.0
    %1731 = vmatprep.subr.mxu0 0.0
    %1732 = vmatpush2.msra.mxu0 0.0
    %1733 = vmatprep.subr.mxu0 0.0
    %1734 = vmatpush2.msra.mxu0 0.0
    %1735 = vmatprep.mubr.f32.mxu0 0.0
    %1736 = vmatmul.mubr.f32.gmra.mxu0 %v1666
    %v1737 = vpop.f32.mrf.mxu0
    %v1738 = vadd.f32 0.0, %v1737
    %v1739 = vpop.f32.mrf.mxu0
    %1740 = vmatprep.mubr.f32.mxu0 0.0
    %1741 = vmatmul.mubr.f32.gmra.mxu0 %v1669
    %v1742 = vpop.f32.mrf.mxu0
    %v1743 = vadd.f32 0.0, %v1742
    %v1744 = vpop.f32.mrf.mxu0
    %1745 = vdwg.mxu0
    %1746 = vrot.lane.b32.xlu0 %v1536, 120
    %v1747 = vpop.permute.xlu0 %1746
    %1748 = vrot.lane.b32.xlu0 %v1541, 120
    %v1749 = vpop.permute.xlu0 %1748
    %1750 = vrot.lane.b32.xlu0 %v1536, 88
    %v1751 = vpop.permute.xlu0 %1750
    %1752 = vrot.lane.b32.xlu0 %v1541, 88
    %v1753 = vpop.permute.xlu0 %1752
    %v1754 = vsel %vm202, %v1747, 0
    %v1756 = vsel %vm202, %v1749, 0
    %v1758 = vsel %vm202, %v1751, 0
    %v1760 = vsel %vm202, %v1753, 0
    %1762 = vmatprep.subr.mxu0 0.0
    %1763 = vmatpush1.xpose.msra.mxu0 0.0
    %1764 = vmatprep.subr.mxu0 0.0
    %1765 = vmatpush1.xpose.msra.mxu0 0.0
    %1766 = vmatprep.subr.mxu0 0.0
    %1767 = vmatpush1.xpose.msra.mxu0 0.0
    %1768 = vmatprep.subr.mxu0 0.0
    %1769 = vmatpush1.xpose.msra.mxu0 0.0
    %1770 = vmatprep.subr.mxu0 0.0
    %1771 = vmatpush1.xpose.msra.mxu0 0.0
    %1772 = vmatprep.subr.mxu0 0.0
    %1773 = vmatpush1.xpose.msra.mxu0 0.0
    %1774 = vmatprep.subr.mxu0 0.0
    %1775 = vmatpush1.xpose.msra.mxu0 0.0
    %1776 = vmatprep.subr.mxu0 0.0
    %1777 = vmatpush1.xpose.msra.mxu0 0.0
    %1778 = vmatprep.subr.mxu0 0.0
    %1779 = vmatpush1.xpose.msra.mxu0 0.0
    %1780 = vmatprep.subr.mxu0 0.0
    %1781 = vmatpush1.xpose.msra.mxu0 0.0
    %1782 = vmatprep.subr.mxu0 0.0
    %1783 = vmatpush1.xpose.msra.mxu0 0.0
    %1784 = vmatprep.subr.mxu0 0.0
    %1785 = vmatpush1.xpose.msra.mxu0 0.0
    %1786 = vmatprep.subr.mxu0 0.0
    %1787 = vmatpush1.xpose.msra.mxu0 0.0
    %1788 = vmatprep.subr.mxu0 0.0
    %1789 = vmatpush1.xpose.msra.mxu0 0.0
    %1790 = vmatprep.subr.mxu0 0.0
    %1791 = vmatpush1.xpose.msra.mxu0 %v1760
    %1792 = vmatprep.subr.mxu0 0.0
    %1793 = vmatpush1.xpose.msra.mxu0 %v1758
    %1794 = vmatprep.subr.mxu0 0.0
    %1795 = vmatpush2.xpose.msra.mxu0 0.0
    %1796 = vmatprep.subr.mxu0 0.0
    %1797 = vmatpush2.xpose.msra.mxu0 0.0
    %1798 = vmatprep.subr.mxu0 0.0
    %1799 = vmatpush2.xpose.msra.mxu0 0.0
    %1800 = vmatprep.subr.mxu0 0.0
    %1801 = vmatpush2.xpose.msra.mxu0 0.0
    %1802 = vmatprep.subr.mxu0 0.0
    %1803 = vmatpush2.xpose.msra.mxu0 0.0
    %1804 = vmatprep.subr.mxu0 0.0
    %1805 = vmatpush2.xpose.msra.mxu0 0.0
    %1806 = vmatprep.subr.mxu0 0.0
    %1807 = vmatpush2.xpose.msra.mxu0 0.0
    %1808 = vmatprep.subr.mxu0 0.0
    %1809 = vmatpush2.xpose.msra.mxu0 0.0
    %1810 = vmatprep.subr.mxu0 0.0
    %1811 = vmatpush2.xpose.msra.mxu0 0.0
    %1812 = vmatprep.subr.mxu0 0.0
    %1813 = vmatpush2.xpose.msra.mxu0 0.0
    %1814 = vmatprep.subr.mxu0 0.0
    %1815 = vmatpush2.xpose.msra.mxu0 0.0
    %1816 = vmatprep.subr.mxu0 0.0
    %1817 = vmatpush2.xpose.msra.mxu0 0.0
    %1818 = vmatprep.subr.mxu0 0.0
    %1819 = vmatpush2.xpose.msra.mxu0 0.0
    %1820 = vmatprep.subr.mxu0 0.0
    %1821 = vmatpush2.xpose.msra.mxu0 0.0
    %1822 = vmatprep.subr.mxu0 0.0
    %1823 = vmatpush2.xpose.msra.mxu0 0.0
    %1824 = vmatprep.subr.mxu0 0.0
    %1825 = vmatpush2.xpose.msra.mxu0 0.0
    %1826 = vmatprep.mubr.f32.mxu0 0.0
    %1827 = vmatmul.mubr.f32.gmra.mxu0 %v1754
    %v1828 = vpop.f32.mrf.mxu0
    %v1829 = vadd.f32 0.0, %v1828
    %v1830 = vpop.f32.mrf.mxu0
    %1831 = vmatprep.mubr.f32.mxu0 0.0
    %1832 = vmatmul.mubr.f32.gmra.mxu0 %v1756
    %v1833 = vpop.f32.mrf.mxu0
    %v1834 = vadd.f32 0.0, %v1833
    %v1835 = vpop.f32.mrf.mxu0
    %1836 = vdwg.mxu0
    %v1837 = vmul.f32 %v1829, 0.35355338
    %v1838 = vmul.f32 %v1834, 0.35355338
    %v1839 = vadd.f32 %v1837, %v62
    %v1840 = vadd.f32 %v1838, %v63
    %v1841 = vsel %vm290, %v1839, -inf
    %1842 = vmax.xlane.f32.xlu0 %v1841
    %v1843 = vpop.xlane.xlu0 %1842
    %v1844 = vsel %vm290, %v1840, -inf
    %1845 = vmax.xlane.f32.xlu0 %v1844
    %v1846 = vpop.xlane.xlu0 %1845
    %v1847 = vsub.f32 %v1839, %v1843
    %v1848 = vsub.f32 %v1840, %v1846
    %v1849 = vmul.f32 %v1847, 1.442695
    %v1850 = vpow.pop %v1849
    %v1851 = vmul.f32 %v1848, 1.442695
    %v1852 = vpow.pop %v1851
    %v1853 = vsel %vm290, %v1850, 0.0
    %1854 = vadd.xlane.f32.xlu0 %v1853
    %v1855 = vpop.xlane.xlu0 %1854
    %v1856 = vsel %vm290, %v1852, 0.0
    %1857 = vadd.xlane.f32.xlu0 %v1856
    %v1858 = vpop.xlane.xlu0 %1857
    %v1859 = vrcp.pop %v1855
    %v1860 = vrcp.pop %v1858
    %v1861 = vmul.f32 %v1850, %v1859
    %v1862 = vmul.f32 %v1852, %v1860
    %1863 = vrot.lane.b32.xlu0 %v1536, 56
    %v1864 = vpop.permute.xlu0 %1863
    %1865 = vrot.lane.b32.xlu0 %v1541, 56
    %v1866 = vpop.permute.xlu0 %1865
    %v1870 = vsel %vm290, %v1861, 0
    %v1873 = vsel %vm290, %v1862, 0
    %1875 = vmatprep.subr.mxu0 0.0
    %1876 = vmatpush1.msra.mxu0 0.0
    %1877 = vmatprep.subr.mxu0 0.0
    %1878 = vmatpush1.msra.mxu0 0.0
    %1879 = vmatprep.subr.mxu0 0.0
    %1880 = vmatpush1.msra.mxu0 0.0
    %1881 = vmatprep.subr.mxu0 0.0
    %1882 = vmatpush1.msra.mxu0 0.0
    %1883 = vmatprep.subr.mxu0 0.0
    %1884 = vmatpush1.msra.mxu0 0.0
    %1885 = vmatprep.subr.mxu0 0.0
    %1886 = vmatpush1.msra.mxu0 0.0
    %1887 = vmatprep.subr.mxu0 0.0
    %1888 = vmatpush1.msra.mxu0 0.0
    %1889 = vmatprep.subr.mxu0 0.0
    %1890 = vmatpush1.msra.mxu0 0.0
    %1891 = vmatprep.subr.mxu0 0.0
    %1892 = vmatpush1.msra.mxu0 0.0
    %1893 = vmatprep.subr.mxu0 0.0
    %1894 = vmatpush1.msra.mxu0 0.0
    %1895 = vmatprep.subr.mxu0 0.0
    %1896 = vmatpush1.msra.mxu0 0.0
    %1897 = vmatprep.subr.mxu0 0.0
    %1898 = vmatpush1.msra.mxu0 0.0
    %1899 = vmatprep.subr.mxu0 0.0
    %1900 = vmatpush1.msra.mxu0 0.0
    %1901 = vmatprep.subr.mxu0 0.0
    %1902 = vmatpush1.msra.mxu0 0.0
    %1903 = vmatprep.subr.mxu0 0.0
    %1904 = vmatpush1.msra.mxu0 %v1866
    %1905 = vmatprep.subr.mxu0 0.0
    %1906 = vmatpush1.msra.mxu0 %v1864
    %1907 = vmatprep.subr.mxu0 0.0
    %1908 = vmatpush2.msra.mxu0 0.0
    %1909 = vmatprep.subr.mxu0 0.0
    %1910 = vmatpush2.msra.mxu0 0.0
    %1911 = vmatprep.subr.mxu0 0.0
    %1912 = vmatpush2.msra.mxu0 0.0
    %1913 = vmatprep.subr.mxu0 0.0
    %1914 = vmatpush2.msra.mxu0 0.0
    %1915 = vmatprep.subr.mxu0 0.0
    %1916 = vmatpush2.msra.mxu0 0.0
    %1917 = vmatprep.subr.mxu0 0.0
    %1918 = vmatpush2.msra.mxu0 0.0
    %1919 = vmatprep.subr.mxu0 0.0
    %1920 = vmatpush2.msra.mxu0 0.0
    %1921 = vmatprep.subr.mxu0 0.0
    %1922 = vmatpush2.msra.mxu0 0.0
    %1923 = vmatprep.subr.mxu0 0.0
    %1924 = vmatpush2.msra.mxu0 0.0
    %1925 = vmatprep.subr.mxu0 0.0
    %1926 = vmatpush2.msra.mxu0 0.0
    %1927 = vmatprep.subr.mxu0 0.0
    %1928 = vmatpush2.msra.mxu0 0.0
    %1929 = vmatprep.subr.mxu0 0.0
    %1930 = vmatpush2.msra.mxu0 0.0
    %1931 = vmatprep.subr.mxu0 0.0
    %1932 = vmatpush2.msra.mxu0 0.0
    %1933 = vmatprep.subr.mxu0 0.0
    %1934 = vmatpush2.msra.mxu0 0.0
    %1935 = vmatprep.subr.mxu0 0.0
    %1936 = vmatpush2.msra.mxu0 0.0
    %1937 = vmatprep.subr.mxu0 0.0
    %1938 = vmatpush2.msra.mxu0 0.0
    %1939 = vmatprep.mubr.f32.mxu0 0.0
    %1940 = vmatmul.mubr.f32.gmra.mxu0 %v1870
    %v1941 = vpop.f32.mrf.mxu0
    %v1942 = vadd.f32 0.0, %v1941
    %v1943 = vpop.f32.mrf.mxu0
    %1944 = vmatprep.mubr.f32.mxu0 0.0
    %1945 = vmatmul.mubr.f32.gmra.mxu0 %v1873
    %v1946 = vpop.f32.mrf.mxu0
    %v1947 = vadd.f32 0.0, %v1946
    %v1948 = vpop.f32.mrf.mxu0
    %1949 = vdwg.mxu0
    %1950 = vrot.lane.b32.xlu0 %v1536, 112
    %v1951 = vpop.permute.xlu0 %1950
    %1952 = vrot.lane.b32.xlu0 %v1541, 112
    %v1953 = vpop.permute.xlu0 %1952
    %1954 = vrot.lane.b32.xlu0 %v1536, 80
    %v1955 = vpop.permute.xlu0 %1954
    %1956 = vrot.lane.b32.xlu0 %v1541, 80
    %v1957 = vpop.permute.xlu0 %1956
    %v1958 = vsel %vm202, %v1951, 0
    %v1960 = vsel %vm202, %v1953, 0
    %v1962 = vsel %vm202, %v1955, 0
    %v1964 = vsel %vm202, %v1957, 0
    %1966 = vmatprep.subr.mxu0 0.0
    %1967 = vmatpush1.xpose.msra.mxu0 0.0
    %1968 = vmatprep.subr.mxu0 0.0
    %1969 = vmatpush1.xpose.msra.mxu0 0.0
    %1970 = vmatprep.subr.mxu0 0.0
    %1971 = vmatpush1.xpose.msra.mxu0 0.0
    %1972 = vmatprep.subr.mxu0 0.0
    %1973 = vmatpush1.xpose.msra.mxu0 0.0
    %1974 = vmatprep.subr.mxu0 0.0
    %1975 = vmatpush1.xpose.msra.mxu0 0.0
    %1976 = vmatprep.subr.mxu0 0.0
    %1977 = vmatpush1.xpose.msra.mxu0 0.0
    %1978 = vmatprep.subr.mxu0 0.0
    %1979 = vmatpush1.xpose.msra.mxu0 0.0
    %1980 = vmatprep.subr.mxu0 0.0
    %1981 = vmatpush1.xpose.msra.mxu0 0.0
    %1982 = vmatprep.subr.mxu0 0.0
    %1983 = vmatpush1.xpose.msra.mxu0 0.0
    %1984 = vmatprep.subr.mxu0 0.0
    %1985 = vmatpush1.xpose.msra.mxu0 0.0
    %1986 = vmatprep.subr.mxu0 0.0
    %1987 = vmatpush1.xpose.msra.mxu0 0.0
    %1988 = vmatprep.subr.mxu0 0.0
    %1989 = vmatpush1.xpose.msra.mxu0 0.0
    %1990 = vmatprep.subr.mxu0 0.0
    %1991 = vmatpush1.xpose.msra.mxu0 0.0
    %1992 = vmatprep.subr.mxu0 0.0
    %1993 = vmatpush1.xpose.msra.mxu0 0.0
    %1994 = vmatprep.subr.mxu0 0.0
    %1995 = vmatpush1.xpose.msra.mxu0 %v1964
    %1996 = vmatprep.subr.mxu0 0.0
    %1997 = vmatpush1.xpose.msra.mxu0 %v1962
    %1998 = vmatprep.subr.mxu0 0.0
    %1999 = vmatpush2.xpose.msra.mxu0 0.0
    %2000 = vmatprep.subr.mxu0 0.0
    %2001 = vmatpush2.xpose.msra.mxu0 0.0
    %2002 = vmatprep.subr.mxu0 0.0
    %2003 = vmatpush2.xpose.msra.mxu0 0.0
    %2004 = vmatprep.subr.mxu0 0.0
    %2005 = vmatpush2.xpose.msra.mxu0 0.0
    %2006 = vmatprep.subr.mxu0 0.0
    %2007 = vmatpush2.xpose.msra.mxu0 0.0
    %2008 = vmatprep.subr.mxu0 0.0
    %2009 = vmatpush2.xpose.msra.mxu0 0.0
    %2010 = vmatprep.subr.mxu0 0.0
    %2011 = vmatpush2.xpose.msra.mxu0 0.0
    %2012 = vmatprep.subr.mxu0 0.0
    %2013 = vmatpush2.xpose.msra.mxu0 0.0
    %2014 = vmatprep.subr.mxu0 0.0
    %2015 = vmatpush2.xpose.msra.mxu0 0.0
    %2016 = vmatprep.subr.mxu0 0.0
    %2017 = vmatpush2.xpose.msra.mxu0 0.0
    %2018 = vmatprep.subr.mxu0 0.0
    %2019 = vmatpush2.xpose.msra.mxu0 0.0
    %2020 = vmatprep.subr.mxu0 0.0
    %2021 = vmatpush2.xpose.msra.mxu0 0.0
    %2022 = vmatprep.subr.mxu0 0.0
    %2023 = vmatpush2.xpose.msra.mxu0 0.0
    %2024 = vmatprep.subr.mxu0 0.0
    %2025 = vmatpush2.xpose.msra.mxu0 0.0
    %2026 = vmatprep.subr.mxu0 0.0
    %2027 = vmatpush2.xpose.msra.mxu0 0.0
    %2028 = vmatprep.subr.mxu0 0.0
    %2029 = vmatpush2.xpose.msra.mxu0 0.0
    %2030 = vmatprep.mubr.f32.mxu0 0.0
    %2031 = vmatmul.mubr.f32.gmra.mxu0 %v1958
    %v2032 = vpop.f32.mrf.mxu0
    %v2033 = vadd.f32 0.0, %v2032
    %v2034 = vpop.f32.mrf.mxu0
    %2035 = vmatprep.mubr.f32.mxu0 0.0
    %2036 = vmatmul.mubr.f32.gmra.mxu0 %v1960
    %v2037 = vpop.f32.mrf.mxu0
    %v2038 = vadd.f32 0.0, %v2037
    %v2039 = vpop.f32.mrf.mxu0
    %2040 = vdwg.mxu0
    %v2041 = vmul.f32 %v2033, 0.35355338
    %v2042 = vmul.f32 %v2038, 0.35355338
    %v2043 = vadd.f32 %v2041, %v62
    %v2044 = vadd.f32 %v2042, %v63
    %v2045 = vsel %vm290, %v2043, -inf
    %2046 = vmax.xlane.f32.xlu0 %v2045
    %v2047 = vpop.xlane.xlu0 %2046
    %v2048 = vsel %vm290, %v2044, -inf
    %2049 = vmax.xlane.f32.xlu0 %v2048
    %v2050 = vpop.xlane.xlu0 %2049
    %v2051 = vsub.f32 %v2043, %v2047
    %v2052 = vsub.f32 %v2044, %v2050
    %v2053 = vmul.f32 %v2051, 1.442695
    %v2054 = vpow.pop %v2053
    %v2055 = vmul.f32 %v2052, 1.442695
    %v2056 = vpow.pop %v2055
    %v2057 = vsel %vm290, %v2054, 0.0
    %2058 = vadd.xlane.f32.xlu0 %v2057
    %v2059 = vpop.xlane.xlu0 %2058
    %v2060 = vsel %vm290, %v2056, 0.0
    %2061 = vadd.xlane.f32.xlu0 %v2060
    %v2062 = vpop.xlane.xlu0 %2061
    %v2063 = vrcp.pop %v2059
    %v2064 = vrcp.pop %v2062
    %v2065 = vmul.f32 %v2054, %v2063
    %v2066 = vmul.f32 %v2056, %v2064
    %2067 = vrot.lane.b32.xlu0 %v1536, 48
    %v2068 = vpop.permute.xlu0 %2067
    %2069 = vrot.lane.b32.xlu0 %v1541, 48
    %v2070 = vpop.permute.xlu0 %2069
    %v2074 = vsel %vm290, %v2065, 0
    %v2077 = vsel %vm290, %v2066, 0
    %2079 = vmatprep.subr.mxu0 0.0
    %2080 = vmatpush1.msra.mxu0 0.0
    %2081 = vmatprep.subr.mxu0 0.0
    %2082 = vmatpush1.msra.mxu0 0.0
    %2083 = vmatprep.subr.mxu0 0.0
    %2084 = vmatpush1.msra.mxu0 0.0
    %2085 = vmatprep.subr.mxu0 0.0
    %2086 = vmatpush1.msra.mxu0 0.0
    %2087 = vmatprep.subr.mxu0 0.0
    %2088 = vmatpush1.msra.mxu0 0.0
    %2089 = vmatprep.subr.mxu0 0.0
    %2090 = vmatpush1.msra.mxu0 0.0
    %2091 = vmatprep.subr.mxu0 0.0
    %2092 = vmatpush1.msra.mxu0 0.0
    %2093 = vmatprep.subr.mxu0 0.0
    %2094 = vmatpush1.msra.mxu0 0.0
    %2095 = vmatprep.subr.mxu0 0.0
    %2096 = vmatpush1.msra.mxu0 0.0
    %2097 = vmatprep.subr.mxu0 0.0
    %2098 = vmatpush1.msra.mxu0 0.0
    %2099 = vmatprep.subr.mxu0 0.0
    %2100 = vmatpush1.msra.mxu0 0.0
    %2101 = vmatprep.subr.mxu0 0.0
    %2102 = vmatpush1.msra.mxu0 0.0
    %2103 = vmatprep.subr.mxu0 0.0
    %2104 = vmatpush1.msra.mxu0 0.0
    %2105 = vmatprep.subr.mxu0 0.0
    %2106 = vmatpush1.msra.mxu0 0.0
    %2107 = vmatprep.subr.mxu0 0.0
    %2108 = vmatpush1.msra.mxu0 %v2070
    %2109 = vmatprep.subr.mxu0 0.0
    %2110 = vmatpush1.msra.mxu0 %v2068
    %2111 = vmatprep.subr.mxu0 0.0
    %2112 = vmatpush2.msra.mxu0 0.0
    %2113 = vmatprep.subr.mxu0 0.0
    %2114 = vmatpush2.msra.mxu0 0.0
    %2115 = vmatprep.subr.mxu0 0.0
    %2116 = vmatpush2.msra.mxu0 0.0
    %2117 = vmatprep.subr.mxu0 0.0
    %2118 = vmatpush2.msra.mxu0 0.0
    %2119 = vmatprep.subr.mxu0 0.0
    %2120 = vmatpush2.msra.mxu0 0.0
    %2121 = vmatprep.subr.mxu0 0.0
    %2122 = vmatpush2.msra.mxu0 0.0
    %2123 = vmatprep.subr.mxu0 0.0
    %2124 = vmatpush2.msra.mxu0 0.0
    %2125 = vmatprep.subr.mxu0 0.0
    %2126 = vmatpush2.msra.mxu0 0.0
    %2127 = vmatprep.subr.mxu0 0.0
    %2128 = vmatpush2.msra.mxu0 0.0
    %2129 = vmatprep.subr.mxu0 0.0
    %2130 = vmatpush2.msra.mxu0 0.0
    %2131 = vmatprep.subr.mxu0 0.0
    %2132 = vmatpush2.msra.mxu0 0.0
    %2133 = vmatprep.subr.mxu0 0.0
    %2134 = vmatpush2.msra.mxu0 0.0
    %2135 = vmatprep.subr.mxu0 0.0
    %2136 = vmatpush2.msra.mxu0 0.0
    %2137 = vmatprep.subr.mxu0 0.0
    %2138 = vmatpush2.msra.mxu0 0.0
    %2139 = vmatprep.subr.mxu0 0.0
    %2140 = vmatpush2.msra.mxu0 0.0
    %2141 = vmatprep.subr.mxu0 0.0
    %2142 = vmatpush2.msra.mxu0 0.0
    %2143 = vmatprep.mubr.f32.mxu0 0.0
    %2144 = vmatmul.mubr.f32.gmra.mxu0 %v2074
    %v2145 = vpop.f32.mrf.mxu0
    %v2146 = vadd.f32 0.0, %v2145
    %v2147 = vpop.f32.mrf.mxu0
    %2148 = vmatprep.mubr.f32.mxu0 0.0
    %2149 = vmatmul.mubr.f32.gmra.mxu0 %v2077
    %v2150 = vpop.f32.mrf.mxu0
    %v2151 = vadd.f32 0.0, %v2150
    %v2152 = vpop.f32.mrf.mxu0
    %2153 = vdwg.mxu0
    %2154 = vrot.lane.b32.xlu0 %v1536, 104
    %v2155 = vpop.permute.xlu0 %2154
    %2156 = vrot.lane.b32.xlu0 %v1541, 104
    %v2157 = vpop.permute.xlu0 %2156
    %2158 = vrot.lane.b32.xlu0 %v1536, 72
    %v2159 = vpop.permute.xlu0 %2158
    %2160 = vrot.lane.b32.xlu0 %v1541, 72
    %v2161 = vpop.permute.xlu0 %2160
    %v2162 = vsel %vm202, %v2155, 0
    %v2164 = vsel %vm202, %v2157, 0
    %v2166 = vsel %vm202, %v2159, 0
    %v2168 = vsel %vm202, %v2161, 0
    %2170 = vmatprep.subr.mxu0 0.0
    %2171 = vmatpush1.xpose.msra.mxu0 0.0
    %2172 = vmatprep.subr.mxu0 0.0
    %2173 = vmatpush1.xpose.msra.mxu0 0.0
    %2174 = vmatprep.subr.mxu0 0.0
    %2175 = vmatpush1.xpose.msra.mxu0 0.0
    %2176 = vmatprep.subr.mxu0 0.0
    %2177 = vmatpush1.xpose.msra.mxu0 0.0
    %2178 = vmatprep.subr.mxu0 0.0
    %2179 = vmatpush1.xpose.msra.mxu0 0.0
    %2180 = vmatprep.subr.mxu0 0.0
    %2181 = vmatpush1.xpose.msra.mxu0 0.0
    %2182 = vmatprep.subr.mxu0 0.0
    %2183 = vmatpush1.xpose.msra.mxu0 0.0
    %2184 = vmatprep.subr.mxu0 0.0
    %2185 = vmatpush1.xpose.msra.mxu0 0.0
    %2186 = vmatprep.subr.mxu0 0.0
    %2187 = vmatpush1.xpose.msra.mxu0 0.0
    %2188 = vmatprep.subr.mxu0 0.0
    %2189 = vmatpush1.xpose.msra.mxu0 0.0
    %2190 = vmatprep.subr.mxu0 0.0
    %2191 = vmatpush1.xpose.msra.mxu0 0.0
    %2192 = vmatprep.subr.mxu0 0.0
    %2193 = vmatpush1.xpose.msra.mxu0 0.0
    %2194 = vmatprep.subr.mxu0 0.0
    %2195 = vmatpush1.xpose.msra.mxu0 0.0
    %2196 = vmatprep.subr.mxu0 0.0
    %2197 = vmatpush1.xpose.msra.mxu0 0.0
    %2198 = vmatprep.subr.mxu0 0.0
    %2199 = vmatpush1.xpose.msra.mxu0 %v2168
    %2200 = vmatprep.subr.mxu0 0.0
    %2201 = vmatpush1.xpose.msra.mxu0 %v2166
    %2202 = vmatprep.subr.mxu0 0.0
    %2203 = vmatpush2.xpose.msra.mxu0 0.0
    %2204 = vmatprep.subr.mxu0 0.0
    %2205 = vmatpush2.xpose.msra.mxu0 0.0
    %2206 = vmatprep.subr.mxu0 0.0
    %2207 = vmatpush2.xpose.msra.mxu0 0.0
    %2208 = vmatprep.subr.mxu0 0.0
    %2209 = vmatpush2.xpose.msra.mxu0 0.0
    %2210 = vmatprep.subr.mxu0 0.0
    %2211 = vmatpush2.xpose.msra.mxu0 0.0
    %2212 = vmatprep.subr.mxu0 0.0
    %2213 = vmatpush2.xpose.msra.mxu0 0.0
    %2214 = vmatprep.subr.mxu0 0.0
    %2215 = vmatpush2.xpose.msra.mxu0 0.0
    %2216 = vmatprep.subr.mxu0 0.0
    %2217 = vmatpush2.xpose.msra.mxu0 0.0
    %2218 = vmatprep.subr.mxu0 0.0
    %2219 = vmatpush2.xpose.msra.mxu0 0.0
    %2220 = vmatprep.subr.mxu0 0.0
    %2221 = vmatpush2.xpose.msra.mxu0 0.0
    %2222 = vmatprep.subr.mxu0 0.0
    %2223 = vmatpush2.xpose.msra.mxu0 0.0
    %2224 = vmatprep.subr.mxu0 0.0
    %2225 = vmatpush2.xpose.msra.mxu0 0.0
    %2226 = vmatprep.subr.mxu0 0.0
    %2227 = vmatpush2.xpose.msra.mxu0 0.0
    %2228 = vmatprep.subr.mxu0 0.0
    %2229 = vmatpush2.xpose.msra.mxu0 0.0
    %2230 = vmatprep.subr.mxu0 0.0
    %2231 = vmatpush2.xpose.msra.mxu0 0.0
    %2232 = vmatprep.subr.mxu0 0.0
    %2233 = vmatpush2.xpose.msra.mxu0 0.0
    %2234 = vmatprep.mubr.f32.mxu0 0.0
    %2235 = vmatmul.mubr.f32.gmra.mxu0 %v2162
    %v2236 = vpop.f32.mrf.mxu0
    %v2237 = vadd.f32 0.0, %v2236
    %v2238 = vpop.f32.mrf.mxu0
    %2239 = vmatprep.mubr.f32.mxu0 0.0
    %2240 = vmatmul.mubr.f32.gmra.mxu0 %v2164
    %v2241 = vpop.f32.mrf.mxu0
    %v2242 = vadd.f32 0.0, %v2241
    %v2243 = vpop.f32.mrf.mxu0
    %2244 = vdwg.mxu0
    %v2245 = vmul.f32 %v2237, 0.35355338
    %v2246 = vmul.f32 %v2242, 0.35355338
    %v2247 = vadd.f32 %v2245, %v62
    %v2248 = vadd.f32 %v2246, %v63
    %v2249 = vsel %vm290, %v2247, -inf
    %2250 = vmax.xlane.f32.xlu0 %v2249
    %v2251 = vpop.xlane.xlu0 %2250
    %v2252 = vsel %vm290, %v2248, -inf
    %2253 = vmax.xlane.f32.xlu0 %v2252
    %v2254 = vpop.xlane.xlu0 %2253
    %v2255 = vsub.f32 %v2247, %v2251
    %v2256 = vsub.f32 %v2248, %v2254
    %v2257 = vmul.f32 %v2255, 1.442695
    %v2258 = vpow.pop %v2257
    %v2259 = vmul.f32 %v2256, 1.442695
    %v2260 = vpow.pop %v2259
    %v2261 = vsel %vm290, %v2258, 0.0
    %2262 = vadd.xlane.f32.xlu0 %v2261
    %v2263 = vpop.xlane.xlu0 %2262
    %v2264 = vsel %vm290, %v2260, 0.0
    %2265 = vadd.xlane.f32.xlu0 %v2264
    %v2266 = vpop.xlane.xlu0 %2265
    %v2267 = vrcp.pop %v2263
    %v2268 = vrcp.pop %v2266
    %v2269 = vmul.f32 %v2258, %v2267
    %v2270 = vmul.f32 %v2260, %v2268
    %2271 = vrot.lane.b32.xlu0 %v1536, 40
    %v2272 = vpop.permute.xlu0 %2271
    %2273 = vrot.lane.b32.xlu0 %v1541, 40
    %v2274 = vpop.permute.xlu0 %2273
    %v2278 = vsel %vm290, %v2269, 0
    %v2281 = vsel %vm290, %v2270, 0
    %2283 = vmatprep.subr.mxu0 0.0
    %2284 = vmatpush1.msra.mxu0 0.0
    %2285 = vmatprep.subr.mxu0 0.0
    %2286 = vmatpush1.msra.mxu0 0.0
    %2287 = vmatprep.subr.mxu0 0.0
    %2288 = vmatpush1.msra.mxu0 0.0
    %2289 = vmatprep.subr.mxu0 0.0
    %2290 = vmatpush1.msra.mxu0 0.0
    %2291 = vmatprep.subr.mxu0 0.0
    %2292 = vmatpush1.msra.mxu0 0.0
    %2293 = vmatprep.subr.mxu0 0.0
    %2294 = vmatpush1.msra.mxu0 0.0
    %2295 = vmatprep.subr.mxu0 0.0
    %2296 = vmatpush1.msra.mxu0 0.0
    %2297 = vmatprep.subr.mxu0 0.0
    %2298 = vmatpush1.msra.mxu0 0.0
    %2299 = vmatprep.subr.mxu0 0.0
    %2300 = vmatpush1.msra.mxu0 0.0
    %2301 = vmatprep.subr.mxu0 0.0
    %2302 = vmatpush1.msra.mxu0 0.0
    %2303 = vmatprep.subr.mxu0 0.0
    %2304 = vmatpush1.msra.mxu0 0.0
    %2305 = vmatprep.subr.mxu0 0.0
    %2306 = vmatpush1.msra.mxu0 0.0
    %2307 = vmatprep.subr.mxu0 0.0
    %2308 = vmatpush1.msra.mxu0 0.0
    %2309 = vmatprep.subr.mxu0 0.0
    %2310 = vmatpush1.msra.mxu0 0.0
    %2311 = vmatprep.subr.mxu0 0.0
    %2312 = vmatpush1.msra.mxu0 %v2274
    %2313 = vmatprep.subr.mxu0 0.0
    %2314 = vmatpush1.msra.mxu0 %v2272
    %2315 = vmatprep.subr.mxu0 0.0
    %2316 = vmatpush2.msra.mxu0 0.0
    %2317 = vmatprep.subr.mxu0 0.0
    %2318 = vmatpush2.msra.mxu0 0.0
    %2319 = vmatprep.subr.mxu0 0.0
    %2320 = vmatpush2.msra.mxu0 0.0
    %2321 = vmatprep.subr.mxu0 0.0
    %2322 = vmatpush2.msra.mxu0 0.0
    %2323 = vmatprep.subr.mxu0 0.0
    %2324 = vmatpush2.msra.mxu0 0.0
    %2325 = vmatprep.subr.mxu0 0.0
    %2326 = vmatpush2.msra.mxu0 0.0
    %2327 = vmatprep.subr.mxu0 0.0
    %2328 = vmatpush2.msra.mxu0 0.0
    %2329 = vmatprep.subr.mxu0 0.0
    %2330 = vmatpush2.msra.mxu0 0.0
    %2331 = vmatprep.subr.mxu0 0.0
    %2332 = vmatpush2.msra.mxu0 0.0
    %2333 = vmatprep.subr.mxu0 0.0
    %2334 = vmatpush2.msra.mxu0 0.0
    %2335 = vmatprep.subr.mxu0 0.0
    %2336 = vmatpush2.msra.mxu0 0.0
    %2337 = vmatprep.subr.mxu0 0.0
    %2338 = vmatpush2.msra.mxu0 0.0
    %2339 = vmatprep.subr.mxu0 0.0
    %2340 = vmatpush2.msra.mxu0 0.0
    %2341 = vmatprep.subr.mxu0 0.0
    %2342 = vmatpush2.msra.mxu0 0.0
    %2343 = vmatprep.subr.mxu0 0.0
    %2344 = vmatpush2.msra.mxu0 0.0
    %2345 = vmatprep.subr.mxu0 0.0
    %2346 = vmatpush2.msra.mxu0 0.0
    %2347 = vmatprep.mubr.f32.mxu0 0.0
    %2348 = vmatmul.mubr.f32.gmra.mxu0 %v2278
    %v2349 = vpop.f32.mrf.mxu0
    %v2350 = vadd.f32 0.0, %v2349
    %v2351 = vpop.f32.mrf.mxu0
    %2352 = vmatprep.mubr.f32.mxu0 0.0
    %2353 = vmatmul.mubr.f32.gmra.mxu0 %v2281
    %v2354 = vpop.f32.mrf.mxu0
    %v2355 = vadd.f32 0.0, %v2354
    %v2356 = vpop.f32.mrf.mxu0
    %2357 = vdwg.mxu0
    %2358 = vrot.lane.b32.xlu0 %v1861, 16
    %v2359 = vpop.permute.xlu0 %2358
    %2360 = vrot.lane.b32.xlu0 %v1862, 16
    %v2361 = vpop.permute.xlu0 %2360
    %2364 = vrot.lane.b32.xlu0 %v2065, 32
    %v2365 = vpop.permute.xlu0 %2364
    %2366 = vrot.lane.b32.xlu0 %v2066, 32
    %v2367 = vpop.permute.xlu0 %2366
    %2370 = vrot.lane.b32.xlu0 %v2269, 48
    %v2371 = vpop.permute.xlu0 %2370
    %2372 = vrot.lane.b32.xlu0 %v2270, 48
    %v2373 = vpop.permute.xlu0 %2372
    %v2376 = vsel %vm290, %v1657, %v2359
    %v2377 = vsel %vm290, %v1658, %v2361
    %v2378 = vsel %vm66, %v2376, %v2365
    %v2379 = vsel %vm66, %v2377, %v2367
    %v2380 = vsel %vm1034, %v2378, %v2371
    %v2381 = vsel %vm1034, %v2379, %v2373
    %s2382 = scalar_lea.vmem [#allocation4], 16
    %2383 = vst.msk [vmem:[%s2382] sm:$0xff] %vm1037, %v2380
    %2384 = vst.msk [vmem:[%s2382 + $0x8] sm:$0xff] %vm1037, %v2381
    %2387 = vrot.lane.b32.xlu0 %v1942, 8
    %v2388 = vpop.permute.xlu0 %2387
    %2389 = vrot.lane.b32.xlu0 %v1947, 8
    %v2390 = vpop.permute.xlu0 %2389
    %2395 = vrot.lane.b32.xlu0 %v2146, 16
    %v2396 = vpop.permute.xlu0 %2395
    %2397 = vrot.lane.b32.xlu0 %v2151, 16
    %v2398 = vpop.permute.xlu0 %2397
    %2403 = vrot.lane.b32.xlu0 %v2350, 24
    %v2404 = vpop.permute.xlu0 %2403
    %2405 = vrot.lane.b32.xlu0 %v2355, 24
    %v2406 = vpop.permute.xlu0 %2405
    %v2409 = vsel %vm202, %v1738, %v2388
    %v2410 = vsel %vm202, %v1743, %v2390
    %v2411 = vsel %vm290, %v2409, %v2396
    %v2412 = vsel %vm290, %v2410, %v2398
    %v2413 = vsel %vm1068, %v2411, %v2404
    %v2414 = vsel %vm1068, %v2412, %v2406
    %s2415 = scalar_lea.vmem %s6, 32
    %v2416 = vld [vmem:[%s2415] sm:$0xff]
    %v2417 = vld [vmem:[%s2415 + $0x8] sm:$0xff]
    %v2418 = vld [vmem:[%s2415 + $0x10] sm:$0xff]
    %v2419 = vld [vmem:[%s2415 + $0x18] sm:$0xff]
    %v2421 = vsel %vm66, %v2413, 0
    %v2424 = vsel %vm66, %v2414, 0
    %2426 = vmatprep.subr.mxu0 0.0
    %2427 = vmatpush1.msra.mxu0 0.0
    %2428 = vmatprep.subr.mxu0 0.0
    %2429 = vmatpush1.msra.mxu0 0.0
    %2430 = vmatprep.subr.mxu0 0.0
    %2431 = vmatpush1.msra.mxu0 0.0
    %2432 = vmatprep.subr.mxu0 0.0
    %2433 = vmatpush1.msra.mxu0 0.0
    %2434 = vmatprep.subr.mxu0 0.0
    %2435 = vmatpush1.msra.mxu0 0.0
    %2436 = vmatprep.subr.mxu0 0.0
    %2437 = vmatpush1.msra.mxu0 0.0
    %2438 = vmatprep.subr.mxu0 0.0
    %2439 = vmatpush1.msra.mxu0 0.0
    %2440 = vmatprep.subr.mxu0 0.0
    %2441 = vmatpush1.msra.mxu0 0.0
    %2442 = vmatprep.subr.mxu0 0.0
    %2443 = vmatpush1.msra.mxu0 0.0
    %2444 = vmatprep.subr.mxu0 0.0
    %2445 = vmatpush1.msra.mxu0 0.0
    %2446 = vmatprep.subr.mxu0 0.0
    %2447 = vmatpush1.msra.mxu0 0.0
    %2448 = vmatprep.subr.mxu0 0.0
    %2449 = vmatpush1.msra.mxu0 0.0
    %2450 = vmatprep.subr.mxu0 0.0
    %2451 = vmatpush1.msra.mxu0 %v2419
    %2452 = vmatprep.subr.mxu0 0.0
    %2453 = vmatpush1.msra.mxu0 %v2418
    %2454 = vmatprep.subr.mxu0 0.0
    %2455 = vmatpush1.msra.mxu0 %v2417
    %2456 = vmatprep.subr.mxu0 0.0
    %2457 = vmatpush1.msra.mxu0 %v2416
    %2458 = vmatprep.subr.mxu0 0.0
    %2459 = vmatpush2.msra.mxu0 0.0
    %2460 = vmatprep.subr.mxu0 0.0
    %2461 = vmatpush2.msra.mxu0 0.0
    %2462 = vmatprep.subr.mxu0 0.0
    %2463 = vmatpush2.msra.mxu0 0.0
    %2464 = vmatprep.subr.mxu0 0.0
    %2465 = vmatpush2.msra.mxu0 0.0
    %2466 = vmatprep.subr.mxu0 0.0
    %2467 = vmatpush2.msra.mxu0 0.0
    %2468 = vmatprep.subr.mxu0 0.0
    %2469 = vmatpush2.msra.mxu0 0.0
    %2470 = vmatprep.subr.mxu0 0.0
    %2471 = vmatpush2.msra.mxu0 0.0
    %2472 = vmatprep.subr.mxu0 0.0
    %2473 = vmatpush2.msra.mxu0 0.0
    %2474 = vmatprep.subr.mxu0 0.0
    %2475 = vmatpush2.msra.mxu0 0.0
    %2476 = vmatprep.subr.mxu0 0.0
    %2477 = vmatpush2.msra.mxu0 0.0
    %2478 = vmatprep.subr.mxu0 0.0
    %2479 = vmatpush2.msra.mxu0 0.0
    %2480 = vmatprep.subr.mxu0 0.0
    %2481 = vmatpush2.msra.mxu0 0.0
    %2482 = vmatprep.subr.mxu0 0.0
    %2483 = vmatpush2.msra.mxu0 0.0
    %2484 = vmatprep.subr.mxu0 0.0
    %2485 = vmatpush2.msra.mxu0 0.0
    %2486 = vmatprep.subr.mxu0 0.0
    %2487 = vmatpush2.msra.mxu0 0.0
    %2488 = vmatprep.subr.mxu0 0.0
    %2489 = vmatpush2.msra.mxu0 0.0
    %2490 = vmatprep.mubr.f32.mxu0 0.0
    %2491 = vmatmul.mubr.f32.gmra.mxu0 %v2421
    %v2492 = vpop.f32.mrf.mxu0
    %v2493 = vadd.f32 0.0, %v2492
    %v2494 = vpop.f32.mrf.mxu0
    %2495 = vmatprep.mubr.f32.mxu0 0.0
    %2496 = vmatmul.mubr.f32.gmra.mxu0 %v2424
    %v2497 = vpop.f32.mrf.mxu0
    %v2498 = vadd.f32 0.0, %v2497
    %v2499 = vpop.f32.mrf.mxu0
    %2500 = vdwg.mxu0
    %v2501 = vadd.f32 %v1411, %v2493
    %v2502 = vadd.f32 %v1412, %v2498
    %v2503 = vld [vmem:[%s7 + $0x1] sm:$0x1]
    %v2504 = vlaneseq
    %v2505 = vshrl.u32 %v2504, 7
    %v2506 = vsub.s32 0, %v2505
    %v2507 = vrot.slane %v2503, %v2506
    %v2508 = vadd.f32 %v2501, %v2507
    %v2509 = vadd.f32 %v2502, %v2507
    %v2510 = vld [vmem:[%s8 + $0x1] sm:$0x1]
    %v2511 = vld [vmem:[%s9 + $0x1] sm:$0x1]
    %v2512 = vsel %vm66, %v2508, 0.0
    %2513 = vadd.xlane.f32.xlu0 %v2512
    %v2514 = vpop.xlane.xlu0 %2513
    %v2515 = vsel %vm66, %v2509, 0.0
    %2516 = vadd.xlane.f32.xlu0 %v2515
    %v2517 = vpop.xlane.xlu0 %2516
    %v2518 = vmul.f32 %v2514, %v73
    %v2519 = vmul.f32 %v2517, %v73
    %v2520 = vsub.f32 %v2508, %v2518
    %v2521 = vsub.f32 %v2509, %v2519
    %v2522 = vmul.f32 %v2520, %v2520
    %v2523 = vmul.f32 %v2521, %v2521
    %v2524 = vsel %vm66, %v2522, 0.0
    %2525 = vadd.xlane.f32.xlu0 %v2524
    %v2526 = vpop.xlane.xlu0 %2525
    %v2527 = vsel %vm66, %v2523, 0.0
    %2528 = vadd.xlane.f32.xlu0 %v2527
    %v2529 = vpop.xlane.xlu0 %2528
    %v2530 = vmul.f32 %v2526, %v73
    %v2531 = vmul.f32 %v2529, %v73
    %v2532 = vadd.f32 %v2530, 1e-05
    %v2533 = vadd.f32 %v2531, 1e-05
    %v2534 = vrsqrt.pop %v2532
    %v2535 = vrsqrt.pop %v2533
    %v2536 = vmul.f32 %v2520, %v2534
    %v2537 = vmul.f32 %v2521, %v2535
    %v2538 = vlaneseq
    %v2539 = vshrl.u32 %v2538, 7
    %v2540 = vsub.s32 0, %v2539
    %v2541 = vrot.slane %v2510, %v2540
    %v2542 = vmul.f32 %v2536, %v2541
    %v2543 = vmul.f32 %v2537, %v2541
    %v2544 = vlaneseq
    %v2545 = vshrl.u32 %v2544, 7
    %v2546 = vsub.s32 0, %v2545
    %v2547 = vrot.slane %v2511, %v2546
    %v2548 = vadd.f32 %v2542, %v2547
    %v2549 = vadd.f32 %v2543, %v2547
    %s2550 = scalar_lea.vmem %s10, 32
    %v2551 = vld [vmem:[%s2550] sm:$0xff]
    %v2552 = vld [vmem:[%s2550 + $0x8] sm:$0xff]
    %v2553 = vld [vmem:[%s2550 + $0x10] sm:$0xff]
    %v2554 = vld [vmem:[%s2550 + $0x18] sm:$0xff]
    %v2555 = vld [vmem:[%s11 + $0x1] sm:$0x1]
    %v2556 = vlaneseq
    %v2557 = vshrl.u32 %v2556, 7
    %v2558 = vsub.s32 0, %v2557
    %v2559 = vrot.slane %v2555, %v2558
    %v2561 = vsel %vm66, %v2548, 0
    %v2564 = vsel %vm66, %v2549, 0
    %2566 = vmatprep.subr.mxu0 0.0
    %2567 = vmatpush1.msra.mxu0 0.0
    %2568 = vmatprep.subr.mxu0 0.0
    %2569 = vmatpush1.msra.mxu0 0.0
    %2570 = vmatprep.subr.mxu0 0.0
    %2571 = vmatpush1.msra.mxu0 0.0
    %2572 = vmatprep.subr.mxu0 0.0
    %2573 = vmatpush1.msra.mxu0 0.0
    %2574 = vmatprep.subr.mxu0 0.0
    %2575 = vmatpush1.msra.mxu0 0.0
    %2576 = vmatprep.subr.mxu0 0.0
    %2577 = vmatpush1.msra.mxu0 0.0
    %2578 = vmatprep.subr.mxu0 0.0
    %2579 = vmatpush1.msra.mxu0 0.0
    %2580 = vmatprep.subr.mxu0 0.0
    %2581 = vmatpush1.msra.mxu0 0.0
    %2582 = vmatprep.subr.mxu0 0.0
    %2583 = vmatpush1.msra.mxu0 0.0
    %2584 = vmatprep.subr.mxu0 0.0
    %2585 = vmatpush1.msra.mxu0 0.0
    %2586 = vmatprep.subr.mxu0 0.0
    %2587 = vmatpush1.msra.mxu0 0.0
    %2588 = vmatprep.subr.mxu0 0.0
    %2589 = vmatpush1.msra.mxu0 0.0
    %2590 = vmatprep.subr.mxu0 0.0
    %2591 = vmatpush1.msra.mxu0 %v2554
    %2592 = vmatprep.subr.mxu0 0.0
    %2593 = vmatpush1.msra.mxu0 %v2553
    %2594 = vmatprep.subr.mxu0 0.0
    %2595 = vmatpush1.msra.mxu0 %v2552
    %2596 = vmatprep.subr.mxu0 0.0
    %2597 = vmatpush1.msra.mxu0 %v2551
    %2598 = vmatprep.subr.mxu0 0.0
    %2599 = vmatpush2.msra.mxu0 0.0
    %2600 = vmatprep.subr.mxu0 0.0
    %2601 = vmatpush2.msra.mxu0 0.0
    %2602 = vmatprep.subr.mxu0 0.0
    %2603 = vmatpush2.msra.mxu0 0.0
    %2604 = vmatprep.subr.mxu0 0.0
    %2605 = vmatpush2.msra.mxu0 0.0
    %2606 = vmatprep.subr.mxu0 0.0
    %2607 = vmatpush2.msra.mxu0 0.0
    %2608 = vmatprep.subr.mxu0 0.0
    %2609 = vmatpush2.msra.mxu0 0.0
    %2610 = vmatprep.subr.mxu0 0.0
    %2611 = vmatpush2.msra.mxu0 0.0
    %2612 = vmatprep.subr.mxu0 0.0
    %2613 = vmatpush2.msra.mxu0 0.0
    %2614 = vmatprep.subr.mxu0 0.0
    %2615 = vmatpush2.msra.mxu0 0.0
    %2616 = vmatprep.subr.mxu0 0.0
    %2617 = vmatpush2.msra.mxu0 0.0
    %2618 = vmatprep.subr.mxu0 0.0
    %2619 = vmatpush2.msra.mxu0 0.0
    %2620 = vmatprep.subr.mxu0 0.0
    %2621 = vmatpush2.msra.mxu0 0.0
    %2622 = vmatprep.subr.mxu0 0.0
    %2623 = vmatpush2.msra.mxu0 0.0
    %2624 = vmatprep.subr.mxu0 0.0
    %2625 = vmatpush2.msra.mxu0 0.0
    %2626 = vmatprep.subr.mxu0 0.0
    %2627 = vmatpush2.msra.mxu0 0.0
    %2628 = vmatprep.subr.mxu0 0.0
    %2629 = vmatpush2.msra.mxu0 0.0
    %2630 = vmatprep.mubr.f32.mxu0 0.0
    %2631 = vmatmul.mubr.f32.gmra.mxu0 %v2561
    %v2632 = vpop.f32.mrf.mxu0
    %v2633 = vadd.f32 %v2559, %v2632
    %v2634 = vpop.f32.mrf.mxu0
    %2635 = vmatprep.mubr.f32.mxu0 0.0
    %2636 = vmatmul.mubr.f32.gmra.mxu0 %v2564
    %v2637 = vpop.f32.mrf.mxu0
    %v2638 = vadd.f32 %v2559, %v2637
    %v2639 = vpop.f32.mrf.mxu0
    %2640 = vdwg.mxu0
    %v2641 = vmul.f32 %v2633, 0.5
    %v2642 = vmul.f32 %v2638, 0.5
    %v2643 = vmul.f32 %v2633, 0.044715
    %v2644 = vmul.f32 %v2638, 0.044715
    %v2645 = vmul.f32 %v2643, %v2633
    %v2646 = vmul.f32 %v2644, %v2638
    %v2647 = vmul.f32 %v2645, %v2633
    %v2648 = vmul.f32 %v2646, %v2638
    %v2649 = vadd.f32 %v2633, %v2647
    %v2650 = vadd.f32 %v2638, %v2648
    %v2651 = vmul.f32 %v2649, 0.7978846
    %v2652 = vmul.f32 %v2650, 0.7978846
    %v2653 = vtanh.pop %v2651
    %v2654 = vtanh.pop %v2652
    %v2655 = vadd.f32 %v2653, 1.0
    %v2656 = vadd.f32 %v2654, 1.0
    %v2657 = vmul.f32 %v2641, %v2655
    %v2658 = vmul.f32 %v2642, %v2656
    %s2659 = scalar_lea.vmem %s12, 128
    %v2660 = vld [vmem:[%s2659] sm:$0xff]
    %v2661 = vld [vmem:[%s2659 + $0x8] sm:$0xff]
    %v2662 = vld [vmem:[%s2659 + $0x10] sm:$0xff]
    %v2663 = vld [vmem:[%s2659 + $0x18] sm:$0xff]
    %v2664 = vld [vmem:[%s2659 + $0x20] sm:$0xff]
    %v2665 = vld [vmem:[%s2659 + $0x28] sm:$0xff]
    %v2666 = vld [vmem:[%s2659 + $0x30] sm:$0xff]
    %v2667 = vld [vmem:[%s2659 + $0x38] sm:$0xff]
    %v2668 = vld [vmem:[%s2659 + $0x40] sm:$0xff]
    %v2669 = vld [vmem:[%s2659 + $0x48] sm:$0xff]
    %v2670 = vld [vmem:[%s2659 + $0x50] sm:$0xff]
    %v2671 = vld [vmem:[%s2659 + $0x58] sm:$0xff]
    %v2672 = vld [vmem:[%s2659 + $0x60] sm:$0xff]
    %v2673 = vld [vmem:[%s2659 + $0x68] sm:$0xff]
    %v2674 = vld [vmem:[%s2659 + $0x70] sm:$0xff]
    %v2675 = vld [vmem:[%s2659 + $0x78] sm:$0xff]
    %2676 = vmatprep.subr.mxu0 0.0
    %2677 = vmatpush1.msra.mxu0 %v2675
    %2678 = vmatprep.subr.mxu0 0.0
    %2679 = vmatpush1.msra.mxu0 %v2674
    %2680 = vmatprep.subr.mxu0 0.0
    %2681 = vmatpush1.msra.mxu0 %v2673
    %2682 = vmatprep.subr.mxu0 0.0
    %2683 = vmatpush1.msra.mxu0 %v2672
    %2684 = vmatprep.subr.mxu0 0.0
    %2685 = vmatpush1.msra.mxu0 %v2671
    %2686 = vmatprep.subr.mxu0 0.0
    %2687 = vmatpush1.msra.mxu0 %v2670
    %2688 = vmatprep.subr.mxu0 0.0
    %2689 = vmatpush1.msra.mxu0 %v2669
    %2690 = vmatprep.subr.mxu0 0.0
    %2691 = vmatpush1.msra.mxu0 %v2668
    %2692 = vmatprep.subr.mxu0 0.0
    %2693 = vmatpush1.msra.mxu0 %v2667
    %2694 = vmatprep.subr.mxu0 0.0
    %2695 = vmatpush1.msra.mxu0 %v2666
    %2696 = vmatprep.subr.mxu0 0.0
    %2697 = vmatpush1.msra.mxu0 %v2665
    %2698 = vmatprep.subr.mxu0 0.0
    %2699 = vmatpush1.msra.mxu0 %v2664
    %2700 = vmatprep.subr.mxu0 0.0
    %2701 = vmatpush1.msra.mxu0 %v2663
    %2702 = vmatprep.subr.mxu0 0.0
    %2703 = vmatpush1.msra.mxu0 %v2662
    %2704 = vmatprep.subr.mxu0 0.0
    %2705 = vmatpush1.msra.mxu0 %v2661
    %2706 = vmatprep.subr.mxu0 0.0
    %2707 = vmatpush1.msra.mxu0 %v2660
    %2708 = vmatprep.subr.mxu0 0.0
    %2709 = vmatpush2.msra.mxu0 0.0
    %2710 = vmatprep.subr.mxu0 0.0
    %2711 = vmatpush2.msra.mxu0 0.0
    %2712 = vmatprep.subr.mxu0 0.0
    %2713 = vmatpush2.msra.mxu0 0.0
    %2714 = vmatprep.subr.mxu0 0.0
    %2715 = vmatpush2.msra.mxu0 0.0
    %2716 = vmatprep.subr.mxu0 0.0
    %2717 = vmatpush2.msra.mxu0 0.0
    %2718 = vmatprep.subr.mxu0 0.0
    %2719 = vmatpush2.msra.mxu0 0.0
    %2720 = vmatprep.subr.mxu0 0.0
    %2721 = vmatpush2.msra.mxu0 0.0
    %2722 = vmatprep.subr.mxu0 0.0
    %2723 = vmatpush2.msra.mxu0 0.0
    %2724 = vmatprep.subr.mxu0 0.0
    %2725 = vmatpush2.msra.mxu0 0.0
    %2726 = vmatprep.subr.mxu0 0.0
    %2727 = vmatpush2.msra.mxu0 0.0
    %2728 = vmatprep.subr.mxu0 0.0
    %2729 = vmatpush2.msra.mxu0 0.0
    %2730 = vmatprep.subr.mxu0 0.0
    %2731 = vmatpush2.msra.mxu0 0.0
    %2732 = vmatprep.subr.mxu0 0.0
    %2733 = vmatpush2.msra.mxu0 0.0
    %2734 = vmatprep.subr.mxu0 0.0
    %2735 = vmatpush2.msra.mxu0 0.0
    %2736 = vmatprep.subr.mxu0 0.0
    %2737 = vmatpush2.msra.mxu0 0.0
    %2738 = vmatprep.subr.mxu0 0.0
    %2739 = vmatpush2.msra.mxu0 0.0
    %2740 = vmatprep.mubr.f32.mxu0 0.0
    %2741 = vmatmul.mubr.f32.gmra.mxu0 %v2657
    %v2742 = vpop.f32.mrf.mxu0
    %v2743 = vadd.f32 0.0, %v2742
    %v2744 = vpop.f32.mrf.mxu0
    %2745 = vmatprep.mubr.f32.mxu0 0.0
    %2746 = vmatmul.mubr.f32.gmra.mxu0 %v2658
    %v2747 = vpop.f32.mrf.mxu0
    %v2748 = vadd.f32 0.0, %v2747
    %v2749 = vpop.f32.mrf.mxu0
    %2750 = vdwg.mxu0
    %v2751 = vadd.f32 %v2508, %v2743
    %v2752 = vadd.f32 %v2509, %v2748
    %v2753 = vld [vmem:[%s13 + $0x1] sm:$0x1]
    %v2754 = vlaneseq
    %v2755 = vshrl.u32 %v2754, 7
    %v2756 = vsub.s32 0, %v2755
    %v2757 = vrot.slane %v2753, %v2756
    %v2758 = vadd.f32 %v2751, %v2757
    %v2759 = vadd.f32 %v2752, %v2757
    %v2760 = vld [vmem:[%s14] sm:$0x1]
    %v2761 = vld [vmem:[%s15] sm:$0x1]
    %v2762 = vsel %vm66, %v2758, 0.0
    %2763 = vadd.xlane.f32.xlu0 %v2762
    %v2764 = vpop.xlane.xlu0 %2763
    %v2765 = vsel %vm66, %v2759, 0.0
    %2766 = vadd.xlane.f32.xlu0 %v2765
    %v2767 = vpop.xlane.xlu0 %2766
    %v2768 = vmul.f32 %v2764, %v73
    %v2769 = vmul.f32 %v2767, %v73
    %v2770 = vsub.f32 %v2758, %v2768
    %v2771 = vsub.f32 %v2759, %v2769
    %v2772 = vmul.f32 %v2770, %v2770
    %v2773 = vmul.f32 %v2771, %v2771
    %v2774 = vsel %vm66, %v2772, 0.0
    %2775 = vadd.xlane.f32.xlu0 %v2774
    %v2776 = vpop.xlane.xlu0 %2775
    %v2777 = vsel %vm66, %v2773, 0.0
    %2778 = vadd.xlane.f32.xlu0 %v2777
    %v2779 = vpop.xlane.xlu0 %2778
    %v2780 = vmul.f32 %v2776, %v73
    %v2781 = vmul.f32 %v2779, %v73
    %v2782 = vadd.f32 %v2780, 1e-05
    %v2783 = vadd.f32 %v2781, 1e-05
    %v2784 = vrsqrt.pop %v2782
    %v2785 = vrsqrt.pop %v2783
    %v2786 = vmul.f32 %v2770, %v2784
    %v2787 = vmul.f32 %v2771, %v2785
    %v2789 = vlaneseq
    %v2790 = vshrl.u32 %v2789, 7
    %v2791 = vsub.s32 0, %v2790
    %v2792 = vrot.slane %v2760, %v2791
    %v2794 = vmul.f32 %v2786, %v2792
    %v2795 = vmul.f32 %v2787, %v2792
    %v2797 = vlaneseq
    %v2798 = vshrl.u32 %v2797, 7
    %v2799 = vsub.s32 0, %v2798
    %v2800 = vrot.slane %v2761, %v2799
    %v2802 = vadd.f32 %v2794, %v2800
    %v2803 = vadd.f32 %v2795, %v2800
    %v2804 = vld [vmem:[%s16] sm:$0xff]
    %v2805 = vld [vmem:[%s16 + $0x8] sm:$0xff]
    %v2806 = vld [vmem:[%s16 + $0x10] sm:$0xff]
    %v2807 = vld [vmem:[%s16 + $0x18] sm:$0xff]
    %v2809 = vsel %vm66, %v2802, 0
    %v2812 = vsel %vm66, %v2803, 0
    %2814 = vmatprep.subr.mxu0 0.0
    %2815 = vmatpush1.msra.mxu0 0.0
    %2816 = vmatprep.subr.mxu0 0.0
    %2817 = vmatpush1.msra.mxu0 0.0
    %2818 = vmatprep.subr.mxu0 0.0
    %2819 = vmatpush1.msra.mxu0 0.0
    %2820 = vmatprep.subr.mxu0 0.0
    %2821 = vmatpush1.msra.mxu0 0.0
    %2822 = vmatprep.subr.mxu0 0.0
    %2823 = vmatpush1.msra.mxu0 0.0
    %2824 = vmatprep.subr.mxu0 0.0
    %2825 = vmatpush1.msra.mxu0 0.0
    %2826 = vmatprep.subr.mxu0 0.0
    %2827 = vmatpush1.msra.mxu0 0.0
    %2828 = vmatprep.subr.mxu0 0.0
    %2829 = vmatpush1.msra.mxu0 0.0
    %2830 = vmatprep.subr.mxu0 0.0
    %2831 = vmatpush1.msra.mxu0 0.0
    %2832 = vmatprep.subr.mxu0 0.0
    %2833 = vmatpush1.msra.mxu0 0.0
    %2834 = vmatprep.subr.mxu0 0.0
    %2835 = vmatpush1.msra.mxu0 0.0
    %2836 = vmatprep.subr.mxu0 0.0
    %2837 = vmatpush1.msra.mxu0 0.0
    %2838 = vmatprep.subr.mxu0 0.0
    %2839 = vmatpush1.msra.mxu0 %v2807
    %2840 = vmatprep.subr.mxu0 0.0
    %2841 = vmatpush1.msra.mxu0 %v2806
    %2842 = vmatprep.subr.mxu0 0.0
    %2843 = vmatpush1.msra.mxu0 %v2805
    %2844 = vmatprep.subr.mxu0 0.0
    %2845 = vmatpush1.msra.mxu0 %v2804
    %2846 = vmatprep.subr.mxu0 0.0
    %2847 = vmatpush2.msra.mxu0 0.0
    %2848 = vmatprep.subr.mxu0 0.0
    %2849 = vmatpush2.msra.mxu0 0.0
    %2850 = vmatprep.subr.mxu0 0.0
    %2851 = vmatpush2.msra.mxu0 0.0
    %2852 = vmatprep.subr.mxu0 0.0
    %2853 = vmatpush2.msra.mxu0 0.0
    %2854 = vmatprep.subr.mxu0 0.0
    %2855 = vmatpush2.msra.mxu0 0.0
    %2856 = vmatprep.subr.mxu0 0.0
    %2857 = vmatpush2.msra.mxu0 0.0
    %2858 = vmatprep.subr.mxu0 0.0
    %2859 = vmatpush2.msra.mxu0 0.0
    %2860 = vmatprep.subr.mxu0 0.0
    %2861 = vmatpush2.msra.mxu0 0.0
    %2862 = vmatprep.subr.mxu0 0.0
    %2863 = vmatpush2.msra.mxu0 0.0
    %2864 = vmatprep.subr.mxu0 0.0
    %2865 = vmatpush2.msra.mxu0 0.0
    %2866 = vmatprep.subr.mxu0 0.0
    %2867 = vmatpush2.msra.mxu0 0.0
    %2868 = vmatprep.subr.mxu0 0.0
    %2869 = vmatpush2.msra.mxu0 0.0
    %2870 = vmatprep.subr.mxu0 0.0
    %2871 = vmatpush2.msra.mxu0 0.0
    %2872 = vmatprep.subr.mxu0 0.0
    %2873 = vmatpush2.msra.mxu0 0.0
    %2874 = vmatprep.subr.mxu0 0.0
    %2875 = vmatpush2.msra.mxu0 0.0
    %2876 = vmatprep.subr.mxu0 0.0
    %2877 = vmatpush2.msra.mxu0 0.0
    %2878 = vmatprep.mubr.f32.mxu0 0.0
    %2879 = vmatmul.mubr.f32.gmra.mxu0 %v2809
    %v2880 = vpop.f32.mrf.mxu0
    %v2881 = vadd.f32 0.0, %v2880
    %v2882 = vpop.f32.mrf.mxu0
    %2883 = vmatprep.mubr.f32.mxu0 0.0
    %2884 = vmatmul.mubr.f32.gmra.mxu0 %v2812
    %v2885 = vpop.f32.mrf.mxu0
    %v2886 = vadd.f32 0.0, %v2885
    %v2887 = vpop.f32.mrf.mxu0
    %2888 = vdwg.mxu0
    %2889 = vst [vmem:[#allocation2] sm:$0xff] %v2881
    %2890 = vst [vmem:[#allocation2 + $0x8] sm:$0xff] %v2886
    // Predicated region
    $region70: #{tpu_custom_call.1} parent=1 // pred_check
      _
    $region71: #{tpu_custom_call.1} parent=1 // pred_check_branch
      %2892 = sbr.rel (0) target = $region73
    $region72: #{tpu_custom_call.1} parent=1 // pred_region
      %s2894 = ssub.s32 256, 256
      %2895 = vsyncadd [#allocation3], %s2894
      %s2896 = sshll.u32 [#allocation2], 4
      %s2897 = int_to_ptr.vmem [resolvable:$true] %s2896
      %2902 = dma.vmem_to_hbm [thread:$0]  %s2897, 256, %s17, [#allocation3], 128, 128, 8
    $region73: #{tpu_custom_call.1} parent=1 // pred_fallthru
      _
    // Predicated region
    $region74: #{tpu_custom_call.1} parent=1 // pred_check
      _
    $region75: #{tpu_custom_call.1} parent=1 // pred_check_branch
      %2904 = sbr.rel (0) target = $region77
    $region76: #{tpu_custom_call.1} parent=1 // pred_region
      %s2906 = ssub.s32 512, 512
      %2907 = vsyncadd [#allocation5], %s2906
      %s2908 = sshll.u32 [#allocation4], 4
      %s2909 = int_to_ptr.vmem [resolvable:$true] %s2908
      %2914 = dma.vmem_to_hbm [thread:$0]  %s2909, 512, %s18, [#allocation5], 128, 128, 8
    $region77: #{tpu_custom_call.1} parent=1 // pred_fallthru
      _
    // Predicated region
    $region78: #{tpu_custom_call.1} parent=1 // pred_check
      _
    $region79: #{tpu_custom_call.1} parent=1 // pred_check_branch
      %2916 = sbr.rel (0) target = $region81
    $region80: #{tpu_custom_call.1} parent=1 // pred_region
      %2917 = dma.done [#allocation3], 256
    $region81: #{tpu_custom_call.1} parent=1 // pred_fallthru
      _
    // Predicated region
    $region82: #{tpu_custom_call.1} parent=1 // pred_check
      _
    $region83: #{tpu_custom_call.1} parent=1 // pred_check_branch
      %2919 = sbr.rel (0) target = $region85
    $region84: #{tpu_custom_call.1} parent=1 // pred_region
      %2920 = dma.done [#allocation5], 512
    $region85: #{tpu_custom_call.1} parent=1 // pred_fallthru
      _
    %2921 = vsyncpa [#allocation3], 1
    %2922 = vsyncpa [#allocation5], 1

</llo_original>
